<compile_context>
chip_gen: v7x
topology: tpu7x:2x2x1
jax: 0.10.0
libtpu: 0.0.40
codegen_flags: <defaults>
</compile_context>

<pallas_src>
import jax
import jax.numpy as jnp
from jax import lax
from jax.experimental import pallas as pl
from jax.experimental.pallas import tpu as pltpu


# -----------------------------------------------------------------------------
# In-kernel fused MLP chain (Linear + folded-BN [+ ReLU]) on 2-D slabs.
# -----------------------------------------------------------------------------
def _chain(parts, params, num_layers, relu_flags):
    """parts: list of f32 (rows, Ci) slabs whose channel-concat is the layer-0 input.
    params: flat refs [W0_p0, ..., W0_p{P-1}, b0, W1, b1, ...]; W* are bf16 with the BN
    scale already folded in, b* are f32 (1, Co).  Matmuls run bf16 on the MXU with f32
    accumulation; the bias/ReLU epilogue stays f32 (v5e has no bf16 VPU).
    Returns (output, number of param refs consumed)."""
    idx = 0
    acc = None
    for p in parts:                          # split layer-0: sum of partial matmuls
        w = params[idx][...]
        idx += 1
        d = jnp.dot(p.astype(jnp.bfloat16), w, preferred_element_type=jnp.float32)
        acc = d if acc is None else acc + d
    h = acc + params[idx][...]
    idx += 1
    if relu_flags[0]:
        h = jnp.maximum(h, 0.0)
    for li in range(1, num_layers):
        w = params[idx][...]
        b = params[idx + 1][...]
        idx += 2
        h = jnp.dot(h.astype(jnp.bfloat16), w, preferred_element_type=jnp.float32) + b
        if relu_flags[li]:
            h = jnp.maximum(h, 0.0)
    return h, idx


def _make_sa_kernel(num_parts, num_layers):
    """Fused shared-MLP + neighbor max-pool for one tile of TG groups x K neighbors."""
    def kernel(*refs):
        o_ref = refs[-1]
        part_refs = refs[:num_parts]
        params = refs[num_parts:-1]
        tg, kk, _ = part_refs[0].shape
        # collapse (TG, K, Ci) -> (TG*K, Ci): lane dim unchanged, contiguous flatten
        parts = [r[...].reshape(tg * kk, r.shape[-1]) for r in part_refs]
        h, _ = _chain(parts, params, num_layers, (True,) * num_layers)
        cout = h.shape[-1]
        # fused neighborhood max-pool: (TG*K, Cout) -> (TG, K, Cout) -> max over K
        o_ref[...] = jnp.max(h.reshape(tg, kk, cout), axis=1).astype(o_ref.dtype)
    return kernel


def _make_groupall_cls_kernel(num_parts, n_sa_layers, n_cls_layers, cls_relu):
    """Fused PointNetAModule (shared MLP + global max-pool) + classifier head,
    one grid step per batch element."""
    def kernel(*refs):
        o_ref = refs[-1]
        part_refs = refs[:num_parts]
        oh_ref = refs[num_parts]
        params = refs[num_parts + 1:-1]
        n = part_refs[0].shape[1]
        parts = [r[...].reshape(n, r.shape[-1]) for r in part_refs]
        h, used = _chain(parts, params, n_sa_layers, (True,) * n_sa_layers)
        pooled = jnp.max(h, axis=0, keepdims=True)          # (1, C_sa) global max-pool
        oh = oh_ref[...].reshape(1, -1)                     # (1, num_classes)
        z, _ = _chain([pooled, oh], params[used:], n_cls_layers, cls_relu)
        o_ref[...] = z.reshape(1, 1, -1).astype(o_ref.dtype)
    return kernel


# -----------------------------------------------------------------------------
# Wrappers (tiling, BN folding, bf16 weight prep)
# -----------------------------------------------------------------------------
def _pick_group_tile(g, k, c_max, budget_bytes=6 << 20):
    """Groups per tile: a multiple of 8 dividing g (or g itself), with the activation
    slab bounded by a VMEM budget (sized conservatively for v7x's 64 MiB VMEM), and
    preferring >=2 grid steps so the parallel axis feeds both v7x TensorCores."""
    max_rows = max(k, budget_bytes // max(1, 4 * c_max * 4))   # f32 bytes x ~4 live slabs
    cands = [t for t in range(8, g + 1, 8) if g % t == 0 and t * k <= max_rows]
    multi = [t for t in cands if g // t >= 2]
    if multi:
        return max(multi)
    if cands:
        return max(cands)
    return g   # tiny / awkward group counts: single block (fine at these sizes)


def _fold_chain_params(layers, split_sizes):
    """layers: list of (W (Ci,Co) f32, bn_scale (Co,), bias (Co,)).  Folds the BN scale
    into the weight, casts weights to bf16, splits the layer-0 weight along its input
    axis per `split_sizes` (so the kernel never materializes the channel concat).
    Done ONCE at model init.  Returns the flat list of param arrays (all 2-D)."""
    flat = []
    for li, (w, s, b) in enumerate(layers):
        wf = (w * s[None, :]).astype(jnp.bfloat16)        # fold BN scale into the weight
        bias = b.reshape(1, -1).astype(jnp.float32)
        if li == 0 and split_sizes is not None and len(split_sizes) > 1:
            off = 0
            for sz in split_sizes:
                flat.append(wf[off:off + sz])
                off += sz
        else:
            flat.append(wf)
        flat.append(bias)
    return flat


def _param_specs(flat):
    """Grid-invariant BlockSpecs for the (all 2-D) folded params."""
    return [pl.BlockSpec(a.shape, lambda i: (0, 0)) for a in flat]


def sa_fused(parts, flat_params, num_layers, cout):
    """Fused SA stage: parts are (G, K, Ci) f32 arrays (relative coords [+ gathered
    features]); returns (G, Cout) = max over K of the shared MLP on each neighbor."""
    g, k, _ = parts[0].shape
    c_max = max([p.shape[-1] for p in parts] + [a.shape[-1] for a in flat_params])
    tg = _pick_group_tile(g, k, c_max)
    in_specs = [pl.BlockSpec((tg, k, p.shape[-1]), lambda i: (i, 0, 0)) for p in parts]
    return pl.pallas_call(
        _make_sa_kernel(len(parts), num_layers),
        out_shape=jax.ShapeDtypeStruct((g, cout), jnp.float32),
        grid=(g // tg,),
        in_specs=in_specs + _param_specs(flat_params),
        out_specs=pl.BlockSpec((tg, cout), lambda i: (i, 0)),
        compiler_params=pltpu.CompilerParams(dimension_semantics=("parallel",)),
    )(*parts, *flat_params)


def groupall_classifier(features, coords, one_hot, sa_flat, n_sa_layers,
                        cls_flat, n_cls_layers, cls_relu, out_dim):
    """Fused final group-all SA stage + classifier head (one grid step per batch)."""
    b, n, _ = coords.shape
    parts = []
    if features is not None:
        parts.append(features.astype(jnp.float32))
    parts.append(coords)
    nc = one_hot.shape[-1]
    oh3 = one_hot.reshape(b, 1, nc).astype(jnp.float32)

    in_specs = [pl.BlockSpec((1, n, p.shape[-1]), lambda i: (i, 0, 0)) for p in parts]
    in_specs.append(pl.BlockSpec((1, 1, nc), lambda i: (i, 0, 0)))
    all_params = list(sa_flat) + list(cls_flat)

    out = pl.pallas_call(
        _make_groupall_cls_kernel(len(parts), n_sa_layers, n_cls_layers, tuple(cls_relu)),
        out_shape=jax.ShapeDtypeStruct((b, 1, out_dim), jnp.float32),
        grid=(b,),
        in_specs=in_specs + _param_specs(all_params),
        out_specs=pl.BlockSpec((1, 1, out_dim), lambda i: (i, 0, 0)),
        compiler_params=pltpu.CompilerParams(dimension_semantics=("parallel",)),
    )(*parts, oh3, *all_params)
    return out.reshape(b, out_dim)


# -----------------------------------------------------------------------------
# Plain-JAX glue: sampling & grouping (data-dependent gathers)
# -----------------------------------------------------------------------------
def farthest_point_sample(coords, num_samples):
    # TODO(synk): sequential FPS is a data-dependent argmax/gather loop; kept in plain JAX.
    _, n, _ = coords.shape

    def one(c):
        def body(i, state):
            sel, dists, last = state
            d = jnp.sum((c - c[last]) ** 2, axis=-1)
            dists = jnp.minimum(dists, d)
            nxt = jnp.argmax(dists).astype(jnp.int32)
            sel = sel.at[i].set(nxt)
            return sel, dists, nxt

        sel0 = jnp.zeros((num_samples,), jnp.int32)
        init = (sel0, jnp.full((n,), jnp.inf, jnp.float32), jnp.int32(0))
        sel, _, _ = lax.fori_loop(1, num_samples, body, init)
        return sel

    return jax.vmap(one)(coords)


def ball_query(coords, centers, radius, k):
    # TODO(synk): ball-query neighbor search is a data-dependent gather; kept in plain JAX.
    n = coords.shape[1]
    d2 = jnp.sum((centers[:, :, None, :] - coords[:, None, :, :]) ** 2, axis=-1)  # (B,M,N)
    arange = jnp.arange(n, dtype=jnp.int32)
    keys = jnp.where(d2 < radius * radius, arange[None, None, :], n)
    # k smallest keys == first k in-radius indices (CUDA reference order); top_k, not sort.
    neg_top, _ = lax.top_k(-keys, k)
    knn = -neg_top                                        # ascending, sentinels (=n) last
    first = knn[:, :, :1]
    first = jnp.where(first >= n, 0, first)               # no in-radius point -> index 0
    idx = jnp.where(knn >= n, first, knn)                 # missing slots replicate first
    return idx.astype(jnp.int32)


def gather_points(x, idx):
    # x: (B, N, C), idx: (B, ...) -> (B, ..., C)
    return jax.vmap(lambda xb, ib: xb[ib])(x, idx)


# -----------------------------------------------------------------------------
# Parameter init (deterministic, synthetic; folded BatchNorm in eval mode:
# running_mean=0, running_var=1 -> scale = gamma/sqrt(1+eps), bias = conv_b*scale + beta)
# -----------------------------------------------------------------------------
def _init_mlp_params(key, in_ch, out_channels):
    layers = []
    c = in_ch
    for oc in out_channels:
        key, k1, k2, k3, k4 = jax.random.split(key, 5)
        w = jax.random.normal(k1, (c, oc), jnp.float32) / jnp.sqrt(jnp.float32(c))
        conv_b = 0.02 * jax.random.normal(k2, (oc,), jnp.float32)
        gamma = 1.0 + 0.1 * jax.random.normal(k3, (oc,), jnp.float32)
        beta = 0.1 * jax.random.normal(k4, (oc,), jnp.float32)
        scale = gamma / jnp.sqrt(1.0 + 1e-5)
        bias = conv_b * scale + beta
        layers.append((w, scale, bias))
        c = oc
    return key, layers, c


# -----------------------------------------------------------------------------
# Model
# -----------------------------------------------------------------------------
class BoxEstimationNet2:
    def __init__(self, num_classes, sa_blocks, num_heading_angle_bins,
                 num_size_templates, width_multiplier=1, key=None):
        if key is None:
            key = jax.random.PRNGKey(0)
        r = width_multiplier
        self.num_classes = num_classes

        # PointNet++ SA components (extra_feature_channels = 0, with_se = False)
        self.sa_params = []
        in_feat = 0
        for conv_configs, sa_configs in sa_blocks:
            # TODO(synk): PVConv pre-blocks (conv_configs) unused by the frustum config.
            assert conv_configs is None
            num_centers, radius, num_neighbors, out_channels = sa_configs
            out_channels = [int(r * oc) for oc in out_channels]
            key, layers, out_feat = _init_mlp_params(key, in_feat + 3, out_channels)
            if num_centers is not None:
                # grouped stage: input concat order is [rel_coords | gathered_features]
                split = [3] if in_feat == 0 else [3, in_feat]
            else:
                # group-all PointNetAModule: concat order is [features | coords]
                split = [3] if in_feat == 0 else [in_feat, 3]
            flat = _fold_chain_params(layers, split)
            self.sa_params.append(dict(num_centers=num_centers, radius=radius,
                                       num_neighbors=num_neighbors,
                                       flat=flat, num_layers=len(layers),
                                       cout=out_feat))
            in_feat = out_feat

        channels_sa_features, num_centers_final = in_feat, 1
        cls_in = channels_sa_features * num_centers_final + num_classes
        out_dim = 3 + num_heading_angle_bins * 2 + num_size_templates * 4
        self.out_dim = out_dim

        key, cls_layers, c = _init_mlp_params(key, cls_in, [int(r * 512), int(r * 256)])
        key, k1, k2 = jax.random.split(key, 3)
        w_last = jax.random.normal(k1, (c, out_dim), jnp.float32) / jnp.sqrt(jnp.float32(c))
        b_last = 0.02 * jax.random.normal(k2, (out_dim,), jnp.float32)
        cls_layers.append((w_last, jnp.ones((out_dim,), jnp.float32), b_last))
        self.cls_flat = _fold_chain_params(
            cls_layers, [channels_sa_features * num_centers_final, num_classes])
        self.n_cls_layers = len(cls_layers)
        self.cls_relu = (True, True, False)   # final classifier layer is a plain Linear

    def _sa_module(self, features, coords, p):
        """PointNetSAModule: FPS -> ball-query group -> fused(shared MLP + max over K)."""
        b = coords.shape[0]
        m, k = p['num_centers'], p['num_neighbors']
        centers_idx = farthest_point_sample(coords, m)                  # (B, M)
        centers = gather_points(coords, centers_idx)                    # (B, M, 3)
        nbr_idx = ball_query(coords, centers, p['radius'], k)           # (B, M, K)
        rel = gather_points(coords, nbr_idx) - centers[:, :, None, :]   # (B, M, K, 3)
        parts = [rel.reshape(b * m, k, 3)]
        if features is not None:
            gf = gather_points(features, nbr_idx)                       # (B, M, K, Cf)
            parts.append(gf.reshape(b * m, k, gf.shape[-1]))
        h = sa_fused(parts, p['flat'], p['num_layers'], p['cout'])      # (B*M, Cout)
        return h.reshape(b, m, p['cout']), centers

    def __call__(self, inputs):
        coords_cn = inputs['coords']                 # (B, 3, N) -- matches PyTorch layout
        one_hot = inputs['one_hot_vectors']          # (B, num_classes)
        assert one_hot.ndim == 2
        coords = jnp.transpose(coords_cn, (0, 2, 1)).astype(jnp.float32)   # (B, N, 3)

        assert self.sa_params and self.sa_params[-1]['num_centers'] is None, \
            "expected the group-all PointNetAModule as the final SA block"
        features = None
        for p in self.sa_params[:-1]:
            assert p['num_centers'] is not None
            features, coords = self._sa_module(features, coords, p)

        # final group-all SA stage + classifier head, fused into one pallas_call
        pf = self.sa_params[-1]
        return groupall_classifier(features, coords, one_hot.astype(jnp.float32),
                                   pf['flat'], pf['num_layers'],
                                   self.cls_flat, self.n_cls_layers,
                                   self.cls_relu, self.out_dim)


# -----------------------------------------------------------------------------
if __name__ == "__main__":
    key = jax.random.PRNGKey(0)
    k_coords, k_cls = jax.random.split(key)

    B, N = 2, 32
    num_classes, num_heading_angle_bins, num_size_templates = 3, 12, 8
    # Frustum-PointNet2 style SA blocks, scaled down; width_multiplier shrinks channels.
    sa_blocks = [
        (None, (16, 0.5, 8, (64, 64, 128))),
        (None, (8, 1.0, 8, (128, 128, 256))),
        (None, (None, None, None, (256, 256, 512))),
    ]

    model = BoxEstimationNet2(num_classes, sa_blocks, num_heading_angle_bins,
                              num_size_templates, width_multiplier=0.25,
                              key=jax.random.PRNGKey(42))

    coords = jax.random.normal(k_coords, (B, 3, N), jnp.float32)
    class_ids = jax.random.randint(k_cls, (B,), 0, num_classes)
    one_hot = jax.nn.one_hot(class_ids, num_classes, dtype=jnp.float32)

    # One jitted forward: the plain-JAX glue fuses around the Pallas custom calls.
    fwd = jax.jit(lambda c, oh: model({'coords': c, 'one_hot_vectors': oh}))
    out = jax.block_until_ready(fwd(coords, one_hot))

    expected = (B, 3 + num_heading_angle_bins * 2 + num_size_templates * 4)
    assert out.shape == expected, (out.shape, expected)
    assert bool(jnp.all(jnp.isfinite(out)))
    print("KERNEL_OK")
</pallas_src>

<mosaic_0001>
module attributes {stable_mosaic.version = 11 : i64} {
  func.func @kernel(%arg0: i32, %arg1: memref<16x8x3xf32, #tpu.memory_space<vmem>>, %arg2: memref<3x16xbf16, #tpu.memory_space<vmem>>, %arg3: memref<1x16xf32, #tpu.memory_space<vmem>>, %arg4: memref<16x16xbf16, #tpu.memory_space<vmem>>, %arg5: memref<1x16xf32, #tpu.memory_space<vmem>>, %arg6: memref<16x32xbf16, #tpu.memory_space<vmem>>, %arg7: memref<1x32xf32, #tpu.memory_space<vmem>>, %arg8: memref<16x32xf32, #tpu.memory_space<vmem>>) attributes {dimension_semantics = [#tpu.dimension_semantics<parallel>], iteration_bounds = array<i64: 2>, scalar_prefetch = 0 : i64, scratch_operands = 0 : i64, tpu.core_type = #tpu.core_type<tc>, window_params = [{transform_indices = @transform_0, window_bounds = array<i64: 16, 8, 3>}, {pipeline_mode = #tpu.pipeline_mode<synchronous>, transform_indices = @transform_1, window_bounds = array<i64: 3, 16>}, {pipeline_mode = #tpu.pipeline_mode<synchronous>, transform_indices = @transform_2, window_bounds = array<i64: 1, 16>}, {pipeline_mode = #tpu.pipeline_mode<synchronous>, transform_indices = @transform_3, window_bounds = array<i64: 16, 16>}, {pipeline_mode = #tpu.pipeline_mode<synchronous>, transform_indices = @transform_4, window_bounds = array<i64: 1, 16>}, {pipeline_mode = #tpu.pipeline_mode<synchronous>, transform_indices = @transform_5, window_bounds = array<i64: 16, 32>}, {pipeline_mode = #tpu.pipeline_mode<synchronous>, transform_indices = @transform_6, window_bounds = array<i64: 1, 32>}, {transform_indices = @transform_7, window_bounds = array<i64: 16, 32>}]} {
    %c0 = arith.constant 0 : index
    %c0_0 = arith.constant 0 : index
    %c0_1 = arith.constant 0 : index
    %0 = vector.load %arg1[%c0, %c0_0, %c0_1] : memref<16x8x3xf32, #tpu.memory_space<vmem>>, vector<16x8x3xf32>
    %1 = vector.shape_cast %0 : vector<16x8x3xf32> to vector<128x3xf32>
    %c0_2 = arith.constant 0 : index
    %c0_3 = arith.constant 0 : index
    %2 = vector.load %arg2[%c0_2, %c0_3] : memref<3x16xbf16, #tpu.memory_space<vmem>>, vector<3x16xbf16>
    %3 = arith.truncf %1 : vector<128x3xf32> to vector<128x3xbf16>
    %cst = arith.constant dense<0.000000e+00> : vector<128x16xf32>
    %4 = tpu.matmul %3, %2, %cst {dimension_numbers = #tpu.dot_dimension_numbers<[1], [0], [0], [1], [0, 0, 1, 1], [], []>} : vector<128x3xbf16>, vector<3x16xbf16>, vector<128x16xf32> -> vector<128x16xf32>
    %c0_4 = arith.constant 0 : index
    %c0_5 = arith.constant 0 : index
    %5 = vector.load %arg3[%c0_4, %c0_5] : memref<1x16xf32, #tpu.memory_space<vmem>>, vector<1x16xf32>
    %6 = vector.broadcast %5 : vector<1x16xf32> to vector<128x16xf32>
    %7 = arith.addf %4, %6 : vector<128x16xf32>
    %cst_6 = arith.constant 0.000000e+00 : f32
    %8 = vector.broadcast %cst_6 : f32 to vector<128x16xf32>
    %9 = arith.maximumf %7, %8 : vector<128x16xf32>
    %c0_7 = arith.constant 0 : index
    %c0_8 = arith.constant 0 : index
    %10 = vector.load %arg4[%c0_7, %c0_8] : memref<16x16xbf16, #tpu.memory_space<vmem>>, vector<16x16xbf16>
    %c0_9 = arith.constant 0 : index
    %c0_10 = arith.constant 0 : index
    %11 = vector.load %arg5[%c0_9, %c0_10] : memref<1x16xf32, #tpu.memory_space<vmem>>, vector<1x16xf32>
    %12 = arith.truncf %9 : vector<128x16xf32> to vector<128x16xbf16>
    %cst_11 = arith.constant dense<0.000000e+00> : vector<128x16xf32>
    %13 = tpu.matmul %12, %10, %cst_11 {dimension_numbers = #tpu.dot_dimension_numbers<[1], [0], [0], [1], [0, 0, 1, 1], [], []>} : vector<128x16xbf16>, vector<16x16xbf16>, vector<128x16xf32> -> vector<128x16xf32>
    %14 = vector.broadcast %11 : vector<1x16xf32> to vector<128x16xf32>
    %15 = arith.addf %13, %14 : vector<128x16xf32>
    %cst_12 = arith.constant 0.000000e+00 : f32
    %16 = vector.broadcast %cst_12 : f32 to vector<128x16xf32>
    %17 = arith.maximumf %15, %16 : vector<128x16xf32>
    %c0_13 = arith.constant 0 : index
    %c0_14 = arith.constant 0 : index
    %18 = vector.load %arg6[%c0_13, %c0_14] : memref<16x32xbf16, #tpu.memory_space<vmem>>, vector<16x32xbf16>
    %c0_15 = arith.constant 0 : index
    %c0_16 = arith.constant 0 : index
    %19 = vector.load %arg7[%c0_15, %c0_16] : memref<1x32xf32, #tpu.memory_space<vmem>>, vector<1x32xf32>
    %20 = arith.truncf %17 : vector<128x16xf32> to vector<128x16xbf16>
    %cst_17 = arith.constant dense<0.000000e+00> : vector<128x32xf32>
    %21 = tpu.matmul %20, %18, %cst_17 {dimension_numbers = #tpu.dot_dimension_numbers<[1], [0], [0], [1], [0, 0, 1, 1], [], []>} : vector<128x16xbf16>, vector<16x32xbf16>, vector<128x32xf32> -> vector<128x32xf32>
    %22 = vector.broadcast %19 : vector<1x32xf32> to vector<128x32xf32>
    %23 = arith.addf %21, %22 : vector<128x32xf32>
    %cst_18 = arith.constant 0.000000e+00 : f32
    %24 = vector.broadcast %cst_18 : f32 to vector<128x32xf32>
    %25 = arith.maximumf %23, %24 : vector<128x32xf32>
    %26 = vector.shape_cast %25 : vector<128x32xf32> to vector<16x8x32xf32>
    %cst_19 = arith.constant dense<0xFF800000> : vector<16x32xf32>
    %27 = vector.multi_reduction <maximumf>, %26, %cst_19 [1] : vector<16x8x32xf32> to vector<16x32xf32>
    %c0_20 = arith.constant 0 : index
    %c0_21 = arith.constant 0 : index
    %28 = vector.load %arg8[%c0_20, %c0_21] : memref<16x32xf32, #tpu.memory_space<vmem>>, vector<16x32xf32>
    tpu.vector_store %arg8[%c0_20, %c0_21], %27 {strides = array<i32>} : memref<16x32xf32, #tpu.memory_space<vmem>>, vector<16x32xf32>,
    return
  }
  func.func @transform_0(%arg0: i32) -> (i32, i32, i32) {
    %c0_i32 = arith.constant 0 : i32
    %c0_i32_0 = arith.constant 0 : i32
    %c0_i32_1 = arith.constant 0 : i32
    return %arg0, %c0_i32, %c0_i32_0 : i32, i32, i32
  }
  func.func @transform_1(%arg0: i32) -> (i32, i32) {
    %c0_i32 = arith.constant 0 : i32
    %c0_i32_0 = arith.constant 0 : i32
    %c0_i32_1 = arith.constant 0 : i32
    return %c0_i32, %c0_i32_0 : i32, i32
  }
  func.func @transform_2(%arg0: i32) -> (i32, i32) {
    %c0_i32 = arith.constant 0 : i32
    %c0_i32_0 = arith.constant 0 : i32
    %c0_i32_1 = arith.constant 0 : i32
    return %c0_i32, %c0_i32_0 : i32, i32
  }
  func.func @transform_3(%arg0: i32) -> (i32, i32) {
    %c0_i32 = arith.constant 0 : i32
    %c0_i32_0 = arith.constant 0 : i32
    %c0_i32_1 = arith.constant 0 : i32
    return %c0_i32, %c0_i32_0 : i32, i32
  }
  func.func @transform_4(%arg0: i32) -> (i32, i32) {
    %c0_i32 = arith.constant 0 : i32
    %c0_i32_0 = arith.constant 0 : i32
    %c0_i32_1 = arith.constant 0 : i32
    return %c0_i32, %c0_i32_0 : i32, i32
  }
  func.func @transform_5(%arg0: i32) -> (i32, i32) {
    %c0_i32 = arith.constant 0 : i32
    %c0_i32_0 = arith.constant 0 : i32
    %c0_i32_1 = arith.constant 0 : i32
    return %c0_i32, %c0_i32_0 : i32, i32
  }
  func.func @transform_6(%arg0: i32) -> (i32, i32) {
    %c0_i32 = arith.constant 0 : i32
    %c0_i32_0 = arith.constant 0 : i32
    %c0_i32_1 = arith.constant 0 : i32
    return %c0_i32, %c0_i32_0 : i32, i32
  }
  func.func @transform_7(%arg0: i32) -> (i32, i32) {
    %c0_i32 = arith.constant 0 : i32
    %c0_i32_0 = arith.constant 0 : i32
    return %arg0, %c0_i32 : i32, i32
  }
}

module attributes {stable_mosaic.version = 11 : i64} {
  func.func @kernel(%arg0: i32, %arg1: memref<8x8x3xf32, #tpu.memory_space<vmem>>, %arg2: memref<8x8x32xf32, #tpu.memory_space<vmem>>, %arg3: memref<3x32xbf16, #tpu.memory_space<vmem>>, %arg4: memref<32x32xbf16, #tpu.memory_space<vmem>>, %arg5: memref<1x32xf32, #tpu.memory_space<vmem>>, %arg6: memref<32x32xbf16, #tpu.memory_space<vmem>>, %arg7: memref<1x32xf32, #tpu.memory_space<vmem>>, %arg8: memref<32x64xbf16, #tpu.memory_space<vmem>>, %arg9: memref<1x64xf32, #tpu.memory_space<vmem>>, %arg10: memref<8x64xf32, #tpu.memory_space<vmem>>) attributes {dimension_semantics = [#tpu.dimension_semantics<parallel>], iteration_bounds = array<i64: 2>, scalar_prefetch = 0 : i64, scratch_operands = 0 : i64, tpu.core_type = #tpu.core_type<tc>, window_params = [{transform_indices = @transform_0, window_bounds = array<i64: 8, 8, 3>}, {transform_indices = @transform_1, window_bounds = array<i64: 8, 8, 32>}, {pipeline_mode = #tpu.pipeline_mode<synchronous>, transform_indices = @transform_2, window_bounds = array<i64: 3, 32>}, {pipeline_mode = #tpu.pipeline_mode<synchronous>, transform_indices = @transform_3, window_bounds = array<i64: 32, 32>}, {pipeline_mode = #tpu.pipeline_mode<synchronous>, transform_indices = @transform_4, window_bounds = array<i64: 1, 32>}, {pipeline_mode = #tpu.pipeline_mode<synchronous>, transform_indices = @transform_5, window_bounds = array<i64: 32, 32>}, {pipeline_mode = #tpu.pipeline_mode<synchronous>, transform_indices = @transform_6, window_bounds = array<i64: 1, 32>}, {pipeline_mode = #tpu.pipeline_mode<synchronous>, transform_indices = @transform_7, window_bounds = array<i64: 32, 64>}, {pipeline_mode = #tpu.pipeline_mode<synchronous>, transform_indices = @transform_8, window_bounds = array<i64: 1, 64>}, {transform_indices = @transform_9, window_bounds = array<i64: 8, 64>}]} {
    %c0 = arith.constant 0 : index
    %c0_0 = arith.constant 0 : index
    %c0_1 = arith.constant 0 : index
    %0 = vector.load %arg1[%c0, %c0_0, %c0_1] : memref<8x8x3xf32, #tpu.memory_space<vmem>>, vector<8x8x3xf32>
    %1 = vector.shape_cast %0 : vector<8x8x3xf32> to vector<64x3xf32>
    %c0_2 = arith.constant 0 : index
    %c0_3 = arith.constant 0 : index
    %c0_4 = arith.constant 0 : index
    %2 = vector.load %arg2[%c0_2, %c0_3, %c0_4] : memref<8x8x32xf32, #tpu.memory_space<vmem>>, vector<8x8x32xf32>
    %3 = vector.shape_cast %2 : vector<8x8x32xf32> to vector<64x32xf32>
    %c0_5 = arith.constant 0 : index
    %c0_6 = arith.constant 0 : index
    %4 = vector.load %arg3[%c0_5, %c0_6] : memref<3x32xbf16, #tpu.memory_space<vmem>>, vector<3x32xbf16>
    %5 = arith.truncf %1 : vector<64x3xf32> to vector<64x3xbf16>
    %cst = arith.constant dense<0.000000e+00> : vector<64x32xf32>
    %6 = tpu.matmul %5, %4, %cst {dimension_numbers = #tpu.dot_dimension_numbers<[1], [0], [0], [1], [0, 0, 1, 1], [], []>} : vector<64x3xbf16>, vector<3x32xbf16>, vector<64x32xf32> -> vector<64x32xf32>
    %c0_7 = arith.constant 0 : index
    %c0_8 = arith.constant 0 : index
    %7 = vector.load %arg4[%c0_7, %c0_8] : memref<32x32xbf16, #tpu.memory_space<vmem>>, vector<32x32xbf16>
    %8 = arith.truncf %3 : vector<64x32xf32> to vector<64x32xbf16>
    %cst_9 = arith.constant dense<0.000000e+00> : vector<64x32xf32>
    %9 = tpu.matmul %8, %7, %cst_9 {dimension_numbers = #tpu.dot_dimension_numbers<[1], [0], [0], [1], [0, 0, 1, 1], [], []>} : vector<64x32xbf16>, vector<32x32xbf16>, vector<64x32xf32> -> vector<64x32xf32>
    %10 = arith.addf %6, %9 : vector<64x32xf32>
    %c0_10 = arith.constant 0 : index
    %c0_11 = arith.constant 0 : index
    %11 = vector.load %arg5[%c0_10, %c0_11] : memref<1x32xf32, #tpu.memory_space<vmem>>, vector<1x32xf32>
    %12 = vector.broadcast %11 : vector<1x32xf32> to vector<64x32xf32>
    %13 = arith.addf %10, %12 : vector<64x32xf32>
    %cst_12 = arith.constant 0.000000e+00 : f32
    %14 = vector.broadcast %cst_12 : f32 to vector<64x32xf32>
    %15 = arith.maximumf %13, %14 : vector<64x32xf32>
    %c0_13 = arith.constant 0 : index
    %c0_14 = arith.constant 0 : index
    %16 = vector.load %arg6[%c0_13, %c0_14] : memref<32x32xbf16, #tpu.memory_space<vmem>>, vector<32x32xbf16>
    %c0_15 = arith.constant 0 : index
    %c0_16 = arith.constant 0 : index
    %17 = vector.load %arg7[%c0_15, %c0_16] : memref<1x32xf32, #tpu.memory_space<vmem>>, vector<1x32xf32>
    %18 = arith.truncf %15 : vector<64x32xf32> to vector<64x32xbf16>
    %cst_17 = arith.constant dense<0.000000e+00> : vector<64x32xf32>
    %19 = tpu.matmul %18, %16, %cst_17 {dimension_numbers = #tpu.dot_dimension_numbers<[1], [0], [0], [1], [0, 0, 1, 1], [], []>} : vector<64x32xbf16>, vector<32x32xbf16>, vector<64x32xf32> -> vector<64x32xf32>
    %20 = vector.broadcast %17 : vector<1x32xf32> to vector<64x32xf32>
    %21 = arith.addf %19, %20 : vector<64x32xf32>
    %cst_18 = arith.constant 0.000000e+00 : f32
    %22 = vector.broadcast %cst_18 : f32 to vector<64x32xf32>
    %23 = arith.maximumf %21, %22 : vector<64x32xf32>
    %c0_19 = arith.constant 0 : index
    %c0_20 = arith.constant 0 : index
    %24 = vector.load %arg8[%c0_19, %c0_20] : memref<32x64xbf16, #tpu.memory_space<vmem>>, vector<32x64xbf16>
    %c0_21 = arith.constant 0 : index
    %c0_22 = arith.constant 0 : index
    %25 = vector.load %arg9[%c0_21, %c0_22] : memref<1x64xf32, #tpu.memory_space<vmem>>, vector<1x64xf32>
    %26 = arith.truncf %23 : vector<64x32xf32> to vector<64x32xbf16>
    %cst_23 = arith.constant dense<0.000000e+00> : vector<64x64xf32>
    %27 = tpu.matmul %26, %24, %cst_23 {dimension_numbers = #tpu.dot_dimension_numbers<[1], [0], [0], [1], [0, 0, 1, 1], [], []>} : vector<64x32xbf16>, vector<32x64xbf16>, vector<64x64xf32> -> vector<64x64xf32>
    %28 = vector.broadcast %25 : vector<1x64xf32> to vector<64x64xf32>
    %29 = arith.addf %27, %28 : vector<64x64xf32>
    %cst_24 = arith.constant 0.000000e+00 : f32
    %30 = vector.broadcast %cst_24 : f32 to vector<64x64xf32>
    %31 = arith.maximumf %29, %30 : vector<64x64xf32>
    %32 = vector.shape_cast %31 : vector<64x64xf32> to vector<8x8x64xf32>
    %cst_25 = arith.constant dense<0xFF800000> : vector<8x64xf32>
    %33 = vector.multi_reduction <maximumf>, %32, %cst_25 [1] : vector<8x8x64xf32> to vector<8x64xf32>
    %c0_26 = arith.constant 0 : index
    %c0_27 = arith.constant 0 : index
    %34 = vector.load %arg10[%c0_26, %c0_27] : memref<8x64xf32, #tpu.memory_space<vmem>>, vector<8x64xf32>
    tpu.vector_store %arg10[%c0_26, %c0_27], %33 {strides = array<i32>} : memref<8x64xf32, #tpu.memory_space<vmem>>, vector<8x64xf32>,
    return
  }
  func.func @transform_0(%arg0: i32) -> (i32, i32, i32) {
    %c0_i32 = arith.constant 0 : i32
    %c0_i32_0 = arith.constant 0 : i32
    %c0_i32_1 = arith.constant 0 : i32
    return %arg0, %c0_i32, %c0_i32_0 : i32, i32, i32
  }
  func.func @transform_1(%arg0: i32) -> (i32, i32, i32) {
    %c0_i32 = arith.constant 0 : i32
    %c0_i32_0 = arith.constant 0 : i32
    %c0_i32_1 = arith.constant 0 : i32
    return %arg0, %c0_i32, %c0_i32_0 : i32, i32, i32
  }
  func.func @transform_2(%arg0: i32) -> (i32, i32) {
    %c0_i32 = arith.constant 0 : i32
    %c0_i32_0 = arith.constant 0 : i32
    %c0_i32_1 = arith.constant 0 : i32
    return %c0_i32, %c0_i32_0 : i32, i32
  }
  func.func @transform_3(%arg0: i32) -> (i32, i32) {
    %c0_i32 = arith.constant 0 : i32
    %c0_i32_0 = arith.constant 0 : i32
    %c0_i32_1 = arith.constant 0 : i32
    return %c0_i32, %c0_i32_0 : i32, i32
  }
  func.func @transform_4(%arg0: i32) -> (i32, i32) {
    %c0_i32 = arith.constant 0 : i32
    %c0_i32_0 = arith.constant 0 : i32
    %c0_i32_1 = arith.constant 0 : i32
    return %c0_i32, %c0_i32_0 : i32, i32
  }
  func.func @transform_5(%arg0: i32) -> (i32, i32) {
    %c0_i32 = arith.constant 0 : i32
    %c0_i32_0 = arith.constant 0 : i32
    %c0_i32_1 = arith.constant 0 : i32
    return %c0_i32, %c0_i32_0 : i32, i32
  }
  func.func @transform_6(%arg0: i32) -> (i32, i32) {
    %c0_i32 = arith.constant 0 : i32
    %c0_i32_0 = arith.constant 0 : i32
    %c0_i32_1 = arith.constant 0 : i32
    return %c0_i32, %c0_i32_0 : i32, i32
  }
  func.func @transform_7(%arg0: i32) -> (i32, i32) {
    %c0_i32 = arith.constant 0 : i32
    %c0_i32_0 = arith.constant 0 : i32
    %c0_i32_1 = arith.constant 0 : i32
    return %c0_i32, %c0_i32_0 : i32, i32
  }
  func.func @transform_8(%arg0: i32) -> (i32, i32) {
    %c0_i32 = arith.constant 0 : i32
    %c0_i32_0 = arith.constant 0 : i32
    %c0_i32_1 = arith.constant 0 : i32
    return %c0_i32, %c0_i32_0 : i32, i32
  }
  func.func @transform_9(%arg0: i32) -> (i32, i32) {
    %c0_i32 = arith.constant 0 : i32
    %c0_i32_0 = arith.constant 0 : i32
    return %arg0, %c0_i32 : i32, i32
  }
}

module attributes {stable_mosaic.version = 11 : i64} {
  func.func @kernel(%arg0: i32, %arg1: memref<1x8x64xf32, #tpu.memory_space<vmem>>, %arg2: memref<1x8x3xf32, #tpu.memory_space<vmem>>, %arg3: memref<1x1x3xf32, #tpu.memory_space<vmem>>, %arg4: memref<64x64xbf16, #tpu.memory_space<vmem>>, %arg5: memref<3x64xbf16, #tpu.memory_space<vmem>>, %arg6: memref<1x64xf32, #tpu.memory_space<vmem>>, %arg7: memref<64x64xbf16, #tpu.memory_space<vmem>>, %arg8: memref<1x64xf32, #tpu.memory_space<vmem>>, %arg9: memref<64x128xbf16, #tpu.memory_space<vmem>>, %arg10: memref<1x128xf32, #tpu.memory_space<vmem>>, %arg11: memref<128x128xbf16, #tpu.memory_space<vmem>>, %arg12: memref<3x128xbf16, #tpu.memory_space<vmem>>, %arg13: memref<1x128xf32, #tpu.memory_space<vmem>>, %arg14: memref<128x64xbf16, #tpu.memory_space<vmem>>, %arg15: memref<1x64xf32, #tpu.memory_space<vmem>>, %arg16: memref<64x59xbf16, #tpu.memory_space<vmem>>, %arg17: memref<1x59xf32, #tpu.memory_space<vmem>>, %arg18: memref<1x1x59xf32, #tpu.memory_space<vmem>>) attributes {dimension_semantics = [#tpu.dimension_semantics<parallel>], iteration_bounds = array<i64: 2>, scalar_prefetch = 0 : i64, scratch_operands = 0 : i64, tpu.core_type = #tpu.core_type<tc>, window_params = [{transform_indices = @transform_0, window_bounds = array<i64: 1, 8, 64>}, {transform_indices = @transform_1, window_bounds = array<i64: 1, 8, 3>}, {transform_indices = @transform_2, window_bounds = array<i64: 1, 1, 3>}, {pipeline_mode = #tpu.pipeline_mode<synchronous>, transform_indices = @transform_3, window_bounds = array<i64: 64, 64>}, {pipeline_mode = #tpu.pipeline_mode<synchronous>, transform_indices = @transform_4, window_bounds = array<i64: 3, 64>}, {pipeline_mode = #tpu.pipeline_mode<synchronous>, transform_indices = @transform_5, window_bounds = array<i64: 1, 64>}, {pipeline_mode = #tpu.pipeline_mode<synchronous>, transform_indices = @transform_6, window_bounds = array<i64: 64, 64>}, {pipeline_mode = #tpu.pipeline_mode<synchronous>, transform_indices = @transform_7, window_bounds = array<i64: 1, 64>}, {pipeline_mode = #tpu.pipeline_mode<synchronous>, transform_indices = @transform_8, window_bounds = array<i64: 64, 128>}, {pipeline_mode = #tpu.pipeline_mode<synchronous>, transform_indices = @transform_9, window_bounds = array<i64: 1, 128>}, {pipeline_mode = #tpu.pipeline_mode<synchronous>, transform_indices = @transform_10, window_bounds = array<i64: 128, 128>}, {pipeline_mode = #tpu.pipeline_mode<synchronous>, transform_indices = @transform_11, window_bounds = array<i64: 3, 128>}, {pipeline_mode = #tpu.pipeline_mode<synchronous>, transform_indices = @transform_12, window_bounds = array<i64: 1, 128>}, {pipeline_mode = #tpu.pipeline_mode<synchronous>, transform_indices = @transform_13, window_bounds = array<i64: 128, 64>}, {pipeline_mode = #tpu.pipeline_mode<synchronous>, transform_indices = @transform_14, window_bounds = array<i64: 1, 64>}, {pipeline_mode = #tpu.pipeline_mode<synchronous>, transform_indices = @transform_15, window_bounds = array<i64: 64, 59>}, {pipeline_mode = #tpu.pipeline_mode<synchronous>, transform_indices = @transform_16, window_bounds = array<i64: 1, 59>}, {transform_indices = @transform_17, window_bounds = array<i64: 1, 1, 59>}]} {
    %c0 = arith.constant 0 : index
    %c0_0 = arith.constant 0 : index
    %c0_1 = arith.constant 0 : index
    %0 = vector.load %arg1[%c0, %c0_0, %c0_1] : memref<1x8x64xf32, #tpu.memory_space<vmem>>, vector<1x8x64xf32>
    %1 = vector.shape_cast %0 : vector<1x8x64xf32> to vector<8x64xf32>
    %c0_2 = arith.constant 0 : index
    %c0_3 = arith.constant 0 : index
    %c0_4 = arith.constant 0 : index
    %2 = vector.load %arg2[%c0_2, %c0_3, %c0_4] : memref<1x8x3xf32, #tpu.memory_space<vmem>>, vector<1x8x3xf32>
    %3 = vector.shape_cast %2 : vector<1x8x3xf32> to vector<8x3xf32>
    %c0_5 = arith.constant 0 : index
    %c0_6 = arith.constant 0 : index
    %4 = vector.load %arg4[%c0_5, %c0_6] : memref<64x64xbf16, #tpu.memory_space<vmem>>, vector<64x64xbf16>
    %5 = arith.truncf %1 : vector<8x64xf32> to vector<8x64xbf16>
    %cst = arith.constant dense<0.000000e+00> : vector<8x64xf32>
    %6 = tpu.matmul %5, %4, %cst {dimension_numbers = #tpu.dot_dimension_numbers<[1], [0], [0], [1], [0, 0, 1, 1], [], []>} : vector<8x64xbf16>, vector<64x64xbf16>, vector<8x64xf32> -> vector<8x64xf32>
    %c0_7 = arith.constant 0 : index
    %c0_8 = arith.constant 0 : index
    %7 = vector.load %arg5[%c0_7, %c0_8] : memref<3x64xbf16, #tpu.memory_space<vmem>>, vector<3x64xbf16>
    %8 = arith.truncf %3 : vector<8x3xf32> to vector<8x3xbf16>
    %cst_9 = arith.constant dense<0.000000e+00> : vector<8x64xf32>
    %9 = tpu.matmul %8, %7, %cst_9 {dimension_numbers = #tpu.dot_dimension_numbers<[1], [0], [0], [1], [0, 0, 1, 1], [], []>} : vector<8x3xbf16>, vector<3x64xbf16>, vector<8x64xf32> -> vector<8x64xf32>
    %10 = arith.addf %6, %9 : vector<8x64xf32>
    %c0_10 = arith.constant 0 : index
    %c0_11 = arith.constant 0 : index
    %11 = vector.load %arg6[%c0_10, %c0_11] : memref<1x64xf32, #tpu.memory_space<vmem>>, vector<1x64xf32>
    %12 = vector.broadcast %11 : vector<1x64xf32> to vector<8x64xf32>
    %13 = arith.addf %10, %12 : vector<8x64xf32>
    %cst_12 = arith.constant 0.000000e+00 : f32
    %14 = vector.broadcast %cst_12 : f32 to vector<8x64xf32>
    %15 = arith.maximumf %13, %14 : vector<8x64xf32>
    %c0_13 = arith.constant 0 : index
    %c0_14 = arith.constant 0 : index
    %16 = vector.load %arg7[%c0_13, %c0_14] : memref<64x64xbf16, #tpu.memory_space<vmem>>, vector<64x64xbf16>
    %c0_15 = arith.constant 0 : index
    %c0_16 = arith.constant 0 : index
    %17 = vector.load %arg8[%c0_15, %c0_16] : memref<1x64xf32, #tpu.memory_space<vmem>>, vector<1x64xf32>
    %18 = arith.truncf %15 : vector<8x64xf32> to vector<8x64xbf16>
    %cst_17 = arith.constant dense<0.000000e+00> : vector<8x64xf32>
    %19 = tpu.matmul %18, %16, %cst_17 {dimension_numbers = #tpu.dot_dimension_numbers<[1], [0], [0], [1], [0, 0, 1, 1], [], []>} : vector<8x64xbf16>, vector<64x64xbf16>, vector<8x64xf32> -> vector<8x64xf32>
    %20 = vector.broadcast %17 : vector<1x64xf32> to vector<8x64xf32>
    %21 = arith.addf %19, %20 : vector<8x64xf32>
    %cst_18 = arith.constant 0.000000e+00 : f32
    %22 = vector.broadcast %cst_18 : f32 to vector<8x64xf32>
    %23 = arith.maximumf %21, %22 : vector<8x64xf32>
    %c0_19 = arith.constant 0 : index
    %c0_20 = arith.constant 0 : index
    %24 = vector.load %arg9[%c0_19, %c0_20] : memref<64x128xbf16, #tpu.memory_space<vmem>>, vector<64x128xbf16>
    %c0_21 = arith.constant 0 : index
    %c0_22 = arith.constant 0 : index
    %25 = vector.load %arg10[%c0_21, %c0_22] : memref<1x128xf32, #tpu.memory_space<vmem>>, vector<1x128xf32>
    %26 = arith.truncf %23 : vector<8x64xf32> to vector<8x64xbf16>
    %cst_23 = arith.constant dense<0.000000e+00> : vector<8x128xf32>
    %27 = tpu.matmul %26, %24, %cst_23 {dimension_numbers = #tpu.dot_dimension_numbers<[1], [0], [0], [1], [0, 0, 1, 1], [], []>} : vector<8x64xbf16>, vector<64x128xbf16>, vector<8x128xf32> -> vector<8x128xf32>
    %28 = vector.broadcast %25 : vector<1x128xf32> to vector<8x128xf32>
    %29 = arith.addf %27, %28 : vector<8x128xf32>
    %cst_24 = arith.constant 0.000000e+00 : f32
    %30 = vector.broadcast %cst_24 : f32 to vector<8x128xf32>
    %31 = arith.maximumf %29, %30 : vector<8x128xf32>
    %cst_25 = arith.constant dense<0xFF800000> : vector<128xf32>
    %32 = vector.multi_reduction <maximumf>, %31, %cst_25 [0] : vector<8x128xf32> to vector<128xf32>
    %33 = vector.shape_cast %32 : vector<128xf32> to vector<1x128xf32>
    %c0_26 = arith.constant 0 : index
    %c0_27 = arith.constant 0 : index
    %c0_28 = arith.constant 0 : index
    %34 = vector.load %arg3[%c0_26, %c0_27, %c0_28] : memref<1x1x3xf32, #tpu.memory_space<vmem>>, vector<1x1x3xf32>
    %35 = vector.shape_cast %34 : vector<1x1x3xf32> to vector<1x3xf32>
    %c0_29 = arith.constant 0 : index
    %c0_30 = arith.constant 0 : index
    %36 = vector.load %arg11[%c0_29, %c0_30] : memref<128x128xbf16, #tpu.memory_space<vmem>>, vector<128x128xbf16>
    %37 = arith.truncf %33 : vector<1x128xf32> to vector<1x128xbf16>
    %cst_31 = arith.constant dense<0.000000e+00> : vector<1x128xf32>
    %38 = tpu.matmul %37, %36, %cst_31 {dimension_numbers = #tpu.dot_dimension_numbers<[1], [0], [0], [1], [0, 0, 1, 1], [], []>} : vector<1x128xbf16>, vector<128x128xbf16>, vector<1x128xf32> -> vector<1x128xf32>
    %c0_32 = arith.constant 0 : index
    %c0_33 = arith.constant 0 : index
    %39 = vector.load %arg12[%c0_32, %c0_33] : memref<3x128xbf16, #tpu.memory_space<vmem>>, vector<3x128xbf16>
    %40 = arith.truncf %35 : vector<1x3xf32> to vector<1x3xbf16>
    %cst_34 = arith.constant dense<0.000000e+00> : vector<1x128xf32>
    %41 = tpu.matmul %40, %39, %cst_34 {dimension_numbers = #tpu.dot_dimension_numbers<[1], [0], [0], [1], [0, 0, 1, 1], [], []>} : vector<1x3xbf16>, vector<3x128xbf16>, vector<1x128xf32> -> vector<1x128xf32>
    %42 = arith.addf %38, %41 : vector<1x128xf32>
    %c0_35 = arith.constant 0 : index
    %c0_36 = arith.constant 0 : index
    %43 = vector.load %arg13[%c0_35, %c0_36] : memref<1x128xf32, #tpu.memory_space<vmem>>, vector<1x128xf32>
    %44 = arith.addf %42, %43 : vector<1x128xf32>
    %cst_37 = arith.constant 0.000000e+00 : f32
    %45 = vector.broadcast %cst_37 : f32 to vector<1x128xf32>
    %46 = arith.maximumf %44, %45 : vector<1x128xf32>
    %c0_38 = arith.constant 0 : index
    %c0_39 = arith.constant 0 : index
    %47 = vector.load %arg14[%c0_38, %c0_39] : memref<128x64xbf16, #tpu.memory_space<vmem>>, vector<128x64xbf16>
    %c0_40 = arith.constant 0 : index
    %c0_41 = arith.constant 0 : index
    %48 = vector.load %arg15[%c0_40, %c0_41] : memref<1x64xf32, #tpu.memory_space<vmem>>, vector<1x64xf32>
    %49 = arith.truncf %46 : vector<1x128xf32> to vector<1x128xbf16>
    %cst_42 = arith.constant dense<0.000000e+00> : vector<1x64xf32>
    %50 = tpu.matmul %49, %47, %cst_42 {dimension_numbers = #tpu.dot_dimension_numbers<[1], [0], [0], [1], [0, 0, 1, 1], [], []>} : vector<1x128xbf16>, vector<128x64xbf16>, vector<1x64xf32> -> vector<1x64xf32>
    %51 = arith.addf %50, %48 : vector<1x64xf32>
    %cst_43 = arith.constant 0.000000e+00 : f32
    %52 = vector.broadcast %cst_43 : f32 to vector<1x64xf32>
    %53 = arith.maximumf %51, %52 : vector<1x64xf32>
    %c0_44 = arith.constant 0 : index
    %c0_45 = arith.constant 0 : index
    %54 = vector.load %arg16[%c0_44, %c0_45] : memref<64x59xbf16, #tpu.memory_space<vmem>>, vector<64x59xbf16>
    %c0_46 = arith.constant 0 : index
    %c0_47 = arith.constant 0 : index
    %55 = vector.load %arg17[%c0_46, %c0_47] : memref<1x59xf32, #tpu.memory_space<vmem>>, vector<1x59xf32>
    %56 = arith.truncf %53 : vector<1x64xf32> to vector<1x64xbf16>
    %cst_48 = arith.constant dense<0.000000e+00> : vector<1x59xf32>
    %57 = tpu.matmul %56, %54, %cst_48 {dimension_numbers = #tpu.dot_dimension_numbers<[1], [0], [0], [1], [0, 0, 1, 1], [], []>} : vector<1x64xbf16>, vector<64x59xbf16>, vector<1x59xf32> -> vector<1x59xf32>
    %58 = arith.addf %57, %55 : vector<1x59xf32>
    %59 = vector.shape_cast %58 : vector<1x59xf32> to vector<1x1x59xf32>
    %c0_49 = arith.constant 0 : index
    %c0_50 = arith.constant 0 : index
    %c0_51 = arith.constant 0 : index
    %60 = vector.load %arg18[%c0_49, %c0_50, %c0_51] : memref<1x1x59xf32, #tpu.memory_space<vmem>>, vector<1x1x59xf32>
    tpu.vector_store %arg18[%c0_49, %c0_50, %c0_51], %59 {strides = array<i32>} : memref<1x1x59xf32, #tpu.memory_space<vmem>>, vector<1x1x59xf32>,
    return
  }
  func.func @transform_0(%arg0: i32) -> (i32, i32, i32) {
    %c0_i32 = arith.constant 0 : i32
    %c0_i32_0 = arith.constant 0 : i32
    %c0_i32_1 = arith.constant 0 : i32
    return %arg0, %c0_i32, %c0_i32_0 : i32, i32, i32
  }
  func.func @transform_1(%arg0: i32) -> (i32, i32, i32) {
    %c0_i32 = arith.constant 0 : i32
    %c0_i32_0 = arith.constant 0 : i32
    %c0_i32_1 = arith.constant 0 : i32
    return %arg0, %c0_i32, %c0_i32_0 : i32, i32, i32
  }
  func.func @transform_2(%arg0: i32) -> (i32, i32, i32) {
    %c0_i32 = arith.constant 0 : i32
    %c0_i32_0 = arith.constant 0 : i32
    %c0_i32_1 = arith.constant 0 : i32
    return %arg0, %c0_i32, %c0_i32_0 : i32, i32, i32
  }
  func.func @transform_3(%arg0: i32) -> (i32, i32) {
    %c0_i32 = arith.constant 0 : i32
    %c0_i32_0 = arith.constant 0 : i32
    %c0_i32_1 = arith.constant 0 : i32
    return %c0_i32, %c0_i32_0 : i32, i32
  }
  func.func @transform_4(%arg0: i32) -> (i32, i32) {
    %c0_i32 = arith.constant 0 : i32
    %c0_i32_0 = arith.constant 0 : i32
    %c0_i32_1 = arith.constant 0 : i32
    return %c0_i32, %c0_i32_0 : i32, i32
  }
  func.func @transform_5(%arg0: i32) -> (i32, i32) {
    %c0_i32 = arith.constant 0 : i32
    %c0_i32_0 = arith.constant 0 : i32
    %c0_i32_1 = arith.constant 0 : i32
    return %c0_i32, %c0_i32_0 : i32, i32
  }
  func.func @transform_6(%arg0: i32) -> (i32, i32) {
    %c0_i32 = arith.constant 0 : i32
    %c0_i32_0 = arith.constant 0 : i32
    %c0_i32_1 = arith.constant 0 : i32
    return %c0_i32, %c0_i32_0 : i32, i32
  }
  func.func @transform_7(%arg0: i32) -> (i32, i32) {
    %c0_i32 = arith.constant 0 : i32
    %c0_i32_0 = arith.constant 0 : i32
    %c0_i32_1 = arith.constant 0 : i32
    return %c0_i32, %c0_i32_0 : i32, i32
  }
  func.func @transform_8(%arg0: i32) -> (i32, i32) {
    %c0_i32 = arith.constant 0 : i32
    %c0_i32_0 = arith.constant 0 : i32
    %c0_i32_1 = arith.constant 0 : i32
    return %c0_i32, %c0_i32_0 : i32, i32
  }
  func.func @transform_9(%arg0: i32) -> (i32, i32) {
    %c0_i32 = arith.constant 0 : i32
    %c0_i32_0 = arith.constant 0 : i32
    %c0_i32_1 = arith.constant 0 : i32
    return %c0_i32, %c0_i32_0 : i32, i32
  }
  func.func @transform_10(%arg0: i32) -> (i32, i32) {
    %c0_i32 = arith.constant 0 : i32
    %c0_i32_0 = arith.constant 0 : i32
    %c0_i32_1 = arith.constant 0 : i32
    return %c0_i32, %c0_i32_0 : i32, i32
  }
  func.func @transform_11(%arg0: i32) -> (i32, i32) {
    %c0_i32 = arith.constant 0 : i32
    %c0_i32_0 = arith.constant 0 : i32
    %c0_i32_1 = arith.constant 0 : i32
    return %c0_i32, %c0_i32_0 : i32, i32
  }
  func.func @transform_12(%arg0: i32) -> (i32, i32) {
    %c0_i32 = arith.constant 0 : i32
    %c0_i32_0 = arith.constant 0 : i32
    %c0_i32_1 = arith.constant 0 : i32
    return %c0_i32, %c0_i32_0 : i32, i32
  }
  func.func @transform_13(%arg0: i32) -> (i32, i32) {
    %c0_i32 = arith.constant 0 : i32
    %c0_i32_0 = arith.constant 0 : i32
    %c0_i32_1 = arith.constant 0 : i32
    return %c0_i32, %c0_i32_0 : i32, i32
  }
  func.func @transform_14(%arg0: i32) -> (i32, i32) {
    %c0_i32 = arith.constant 0 : i32
    %c0_i32_0 = arith.constant 0 : i32
    %c0_i32_1 = arith.constant 0 : i32
    return %c0_i32, %c0_i32_0 : i32, i32
  }
  func.func @transform_15(%arg0: i32) -> (i32, i32) {
    %c0_i32 = arith.constant 0 : i32
    %c0_i32_0 = arith.constant 0 : i32
    %c0_i32_1 = arith.constant 0 : i32
    return %c0_i32, %c0_i32_0 : i32, i32
  }
  func.func @transform_16(%arg0: i32) -> (i32, i32) {
    %c0_i32 = arith.constant 0 : i32
    %c0_i32_0 = arith.constant 0 : i32
    %c0_i32_1 = arith.constant 0 : i32
    return %c0_i32, %c0_i32_0 : i32, i32
  }
  func.func @transform_17(%arg0: i32) -> (i32, i32, i32) {
    %c0_i32 = arith.constant 0 : i32
    %c0_i32_0 = arith.constant 0 : i32
    %c0_i32_1 = arith.constant 0 : i32
    return %arg0, %c0_i32, %c0_i32_0 : i32, i32, i32
  }
}

</mosaic_0001>

<llo_original>
// kernel: custom-call.14
$region0: #{custom-call.14}
  %s0 = inlined_call_operand.vmem [shape: f32[2,32], index: 0, kind: output, shape index: {}]

// kernel: custom-call.15
$region0: #{custom-call.15}
  %s0 = inlined_call_operand.vmem [shape: f32[2,16], index: 0, kind: output, shape index: {}]

// kernel: _lambda_.4
$region0: #{_lambda_.4}
  #allocation0 [shape = 'u32[]', space=smem, size = 0x4, offset = 0x4, fixed_abs, tag = 'smem constant byte address 0x4 - core index']
  #allocation1 [shape = 'u32[144,128]{1,0:T(1,128)}', space=vmem, size = 0x12000, scoped, tag = 'internal scratch']
  %s0 = inlined_call_operand.vmem [shape: f32[16,8,3], index: 0, kind: input, shape index: {}]
  %s1 = inlined_call_operand.vmem [shape: f32[16,8,32], index: 1, kind: input, shape index: {}]
  %s2 = inlined_call_operand.vmem [shape: bf16[3,32], index: 2, kind: input, shape index: {}]
  %s3 = inlined_call_operand.vmem [shape: bf16[32,32], index: 3, kind: input, shape index: {}]
  %s4 = inlined_call_operand.vmem [shape: f32[1,32], index: 4, kind: input, shape index: {}]
  %s5 = inlined_call_operand.vmem [shape: bf16[32,32], index: 5, kind: input, shape index: {}]
  %s6 = inlined_call_operand.vmem [shape: f32[1,32], index: 6, kind: input, shape index: {}]
  %s7 = inlined_call_operand.vmem [shape: bf16[32,64], index: 7, kind: input, shape index: {}]
  %s8 = inlined_call_operand.vmem [shape: f32[1,64], index: 8, kind: input, shape index: {}]
  %s9 = inlined_call_operand.vmem [shape: f32[16,64], index: 9, kind: output, shape index: {}]
  %s10 = sld [smem:[#allocation0]]
  $region69: #{_lambda_.4} parent=0
    _
  %s12 = ssub.s32 1, %s10
  %s13 = scalar_select 0, %s12, %s10
  loop: start=0, step=1, limit=4
  $region2: #{_lambda_.4} parent=0 // loop_pre_header
    _
  $region3: #{_lambda_.4} parent=0 // loop_header
    %s15 = sphi 0, %s19
    %p16 = scmp.ge.s32.totalorder %s15, 4
    %s25 = sphi 0, %s27
    %s28 = sphi 0, %s25
    %s29 = sphi 0, %s28
    %s45 = sphi 0, %s29
    %s51 = sphi 0, %s53
    %s54 = sphi 0, %s51
    %s55 = sphi 0, %s54
    %s71 = sphi 0, %s55
    %s75 = sphi 0, %s75
    %s77 = sphi 0, %s75
    %s78 = sphi 0, %s77
    %s92 = sphi 0, %s78
    %s96 = sphi 0, %s96
    %s98 = sphi 0, %s96
    %s99 = sphi 0, %s98
    %s113 = sphi 0, %s99
    %s117 = sphi 0, %s117
    %s119 = sphi 0, %s117
    %s120 = sphi 0, %s119
    %s134 = sphi 0, %s120
    %s138 = sphi 0, %s138
    %s140 = sphi 0, %s138
    %s141 = sphi 0, %s140
    %s155 = sphi 0, %s141
    %s159 = sphi 0, %s159
    %s161 = sphi 0, %s159
    %s162 = sphi 0, %s161
    %s176 = sphi 0, %s162
    %s180 = sphi 0, %s180
    %s182 = sphi 0, %s180
    %s183 = sphi 0, %s182
    %s197 = sphi 0, %s183
    %s201 = sphi 0, %s201
    %s203 = sphi 0, %s201
    %s204 = sphi 0, %s203
    %s218 = sphi 0, %s204
    %s224 = sphi 0, %s226
    %s227 = sphi 0, %s224
    %s228 = sphi 0, %s227
    %s244 = sphi 0, %s228
  $region4: #{_lambda_.4} parent=0 // loop_header_branch
    %18 = sbr.rel (%p16) target = $region8
  $region5: #{_lambda_.4} parent=0 // loop_body
    %s20 = ssub.s32 %s15, 1
    %s21 = ssub.s32 %s15, 2
    %s22 = sadd.s32 %s15, 1
    %s23 = ssub.s32 %s15, %s22
    %p24 = scmp.eq.s32.totalorder %s23, 0
    %s26 = sadd.s32 %s25, 1
    %s27 = scalar_select %p24, %s25, %s26
    %p30 = pneg %p24
    %p31 = scmp.eq.s32.totalorder %s15, 1
    %p32 = por %p30, %p31
    %p33 = scmp.ne.s32.totalorder %s25, %s28
    %p34 = scmp.eq.s32.totalorder %s15, 0
    %p35 = por %p33, %p34
    %p36 = scmp.ne.s32.totalorder %s25, %s28
    %p37 = scmp.eq.s32.totalorder %s20, 1
    %p38 = por %p36, %p37
    %p39 = scmp.ne.s32.totalorder %s28, %s29
    %p40 = scmp.eq.s32.totalorder %s20, 0
    %p41 = por %p39, %p40
    %p42 = scmp.ne.s32.totalorder %s28, %s29
    %p43 = scmp.eq.s32.totalorder %s21, 1
    %p44 = por %p42, %p43
    %p46 = scmp.ne.s32.totalorder %s29, %s45
    %p47 = scmp.eq.s32.totalorder %s21, 0
    %p48 = por %p46, %p47
    %s49 = ssub.s32 %s15, %s22
    %p50 = scmp.eq.s32.totalorder %s49, 0
    %s52 = sadd.s32 %s51, 1
    %s53 = scalar_select %p50, %s51, %s52
    %p56 = pneg %p50
    %p57 = scmp.eq.s32.totalorder %s15, 1
    %p58 = por %p56, %p57
    %p59 = scmp.ne.s32.totalorder %s51, %s54
    %p60 = scmp.eq.s32.totalorder %s15, 0
    %p61 = por %p59, %p60
    %p62 = scmp.ne.s32.totalorder %s51, %s54
    %p63 = scmp.eq.s32.totalorder %s20, 1
    %p64 = por %p62, %p63
    %p65 = scmp.ne.s32.totalorder %s54, %s55
    %p66 = scmp.eq.s32.totalorder %s20, 0
    %p67 = por %p65, %p66
    %p68 = scmp.ne.s32.totalorder %s54, %s55
    %p69 = scmp.eq.s32.totalorder %s21, 1
    %p70 = por %p68, %p69
    %p72 = scmp.ne.s32.totalorder %s55, %s71
    %p73 = scmp.eq.s32.totalorder %s21, 0
    %p74 = por %p72, %p73
    %s76 = sadd.s32 %s75, 1
    %p79 = scmp.eq.s32.totalorder %s15, 1
    %p80 = scmp.ne.s32.totalorder %s75, %s77
    %p81 = scmp.eq.s32.totalorder %s15, 0
    %p82 = por %p80, %p81
    %p83 = scmp.ne.s32.totalorder %s75, %s77
    %p84 = scmp.eq.s32.totalorder %s20, 1
    %p85 = por %p83, %p84
    %p86 = scmp.ne.s32.totalorder %s77, %s78
    %p87 = scmp.eq.s32.totalorder %s20, 0
    %p88 = por %p86, %p87
    %p89 = scmp.ne.s32.totalorder %s77, %s78
    %p90 = scmp.eq.s32.totalorder %s21, 1
    %p91 = por %p89, %p90
    %p93 = scmp.ne.s32.totalorder %s78, %s92
    %p94 = scmp.eq.s32.totalorder %s21, 0
    %p95 = por %p93, %p94
    %s97 = sadd.s32 %s96, 1
    %p100 = scmp.eq.s32.totalorder %s15, 1
    %p101 = scmp.ne.s32.totalorder %s96, %s98
    %p102 = scmp.eq.s32.totalorder %s15, 0
    %p103 = por %p101, %p102
    %p104 = scmp.ne.s32.totalorder %s96, %s98
    %p105 = scmp.eq.s32.totalorder %s20, 1
    %p106 = por %p104, %p105
    %p107 = scmp.ne.s32.totalorder %s98, %s99
    %p108 = scmp.eq.s32.totalorder %s20, 0
    %p109 = por %p107, %p108
    %p110 = scmp.ne.s32.totalorder %s98, %s99
    %p111 = scmp.eq.s32.totalorder %s21, 1
    %p112 = por %p110, %p111
    %p114 = scmp.ne.s32.totalorder %s99, %s113
    %p115 = scmp.eq.s32.totalorder %s21, 0
    %p116 = por %p114, %p115
    %s118 = sadd.s32 %s117, 1
    %p121 = scmp.eq.s32.totalorder %s15, 1
    %p122 = scmp.ne.s32.totalorder %s117, %s119
    %p123 = scmp.eq.s32.totalorder %s15, 0
    %p124 = por %p122, %p123
    %p125 = scmp.ne.s32.totalorder %s117, %s119
    %p126 = scmp.eq.s32.totalorder %s20, 1
    %p127 = por %p125, %p126
    %p128 = scmp.ne.s32.totalorder %s119, %s120
    %p129 = scmp.eq.s32.totalorder %s20, 0
    %p130 = por %p128, %p129
    %p131 = scmp.ne.s32.totalorder %s119, %s120
    %p132 = scmp.eq.s32.totalorder %s21, 1
    %p133 = por %p131, %p132
    %p135 = scmp.ne.s32.totalorder %s120, %s134
    %p136 = scmp.eq.s32.totalorder %s21, 0
    %p137 = por %p135, %p136
    %s139 = sadd.s32 %s138, 1
    %p142 = scmp.eq.s32.totalorder %s15, 1
    %p143 = scmp.ne.s32.totalorder %s138, %s140
    %p144 = scmp.eq.s32.totalorder %s15, 0
    %p145 = por %p143, %p144
    %p146 = scmp.ne.s32.totalorder %s138, %s140
    %p147 = scmp.eq.s32.totalorder %s20, 1
    %p148 = por %p146, %p147
    %p149 = scmp.ne.s32.totalorder %s140, %s141
    %p150 = scmp.eq.s32.totalorder %s20, 0
    %p151 = por %p149, %p150
    %p152 = scmp.ne.s32.totalorder %s140, %s141
    %p153 = scmp.eq.s32.totalorder %s21, 1
    %p154 = por %p152, %p153
    %p156 = scmp.ne.s32.totalorder %s141, %s155
    %p157 = scmp.eq.s32.totalorder %s21, 0
    %p158 = por %p156, %p157
    %s160 = sadd.s32 %s159, 1
    %p163 = scmp.eq.s32.totalorder %s15, 1
    %p164 = scmp.ne.s32.totalorder %s159, %s161
    %p165 = scmp.eq.s32.totalorder %s15, 0
    %p166 = por %p164, %p165
    %p167 = scmp.ne.s32.totalorder %s159, %s161
    %p168 = scmp.eq.s32.totalorder %s20, 1
    %p169 = por %p167, %p168
    %p170 = scmp.ne.s32.totalorder %s161, %s162
    %p171 = scmp.eq.s32.totalorder %s20, 0
    %p172 = por %p170, %p171
    %p173 = scmp.ne.s32.totalorder %s161, %s162
    %p174 = scmp.eq.s32.totalorder %s21, 1
    %p175 = por %p173, %p174
    %p177 = scmp.ne.s32.totalorder %s162, %s176
    %p178 = scmp.eq.s32.totalorder %s21, 0
    %p179 = por %p177, %p178
    %s181 = sadd.s32 %s180, 1
    %p184 = scmp.eq.s32.totalorder %s15, 1
    %p185 = scmp.ne.s32.totalorder %s180, %s182
    %p186 = scmp.eq.s32.totalorder %s15, 0
    %p187 = por %p185, %p186
    %p188 = scmp.ne.s32.totalorder %s180, %s182
    %p189 = scmp.eq.s32.totalorder %s20, 1
    %p190 = por %p188, %p189
    %p191 = scmp.ne.s32.totalorder %s182, %s183
    %p192 = scmp.eq.s32.totalorder %s20, 0
    %p193 = por %p191, %p192
    %p194 = scmp.ne.s32.totalorder %s182, %s183
    %p195 = scmp.eq.s32.totalorder %s21, 1
    %p196 = por %p194, %p195
    %p198 = scmp.ne.s32.totalorder %s183, %s197
    %p199 = scmp.eq.s32.totalorder %s21, 0
    %p200 = por %p198, %p199
    %s202 = sadd.s32 %s201, 1
    %p205 = scmp.eq.s32.totalorder %s15, 1
    %p206 = scmp.ne.s32.totalorder %s201, %s203
    %p207 = scmp.eq.s32.totalorder %s15, 0
    %p208 = por %p206, %p207
    %p209 = scmp.ne.s32.totalorder %s201, %s203
    %p210 = scmp.eq.s32.totalorder %s20, 1
    %p211 = por %p209, %p210
    %p212 = scmp.ne.s32.totalorder %s203, %s204
    %p213 = scmp.eq.s32.totalorder %s20, 0
    %p214 = por %p212, %p213
    %p215 = scmp.ne.s32.totalorder %s203, %s204
    %p216 = scmp.eq.s32.totalorder %s21, 1
    %p217 = por %p215, %p216
    %p219 = scmp.ne.s32.totalorder %s204, %s218
    %p220 = scmp.eq.s32.totalorder %s21, 0
    %p221 = por %p219, %p220
    %s222 = ssub.s32 %s15, %s22
    %p223 = scmp.eq.s32.totalorder %s222, 0
    %s225 = sadd.s32 %s224, 1
    %s226 = scalar_select %p223, %s224, %s225
    %p229 = pneg %p223
    %p230 = scmp.eq.s32.totalorder %s15, 1
    %p231 = por %p229, %p230
    %p232 = scmp.ne.s32.totalorder %s224, %s227
    %p233 = scmp.eq.s32.totalorder %s15, 0
    %p234 = por %p232, %p233
    %p235 = scmp.ne.s32.totalorder %s224, %s227
    %p236 = scmp.eq.s32.totalorder %s20, 1
    %p237 = por %p235, %p236
    %p238 = scmp.ne.s32.totalorder %s227, %s228
    %p239 = scmp.eq.s32.totalorder %s20, 0
    %p240 = por %p238, %p239
    %p241 = scmp.ne.s32.totalorder %s227, %s228
    %p242 = scmp.eq.s32.totalorder %s21, 1
    %p243 = por %p241, %p242
    %p245 = scmp.ne.s32.totalorder %s228, %s244
    %p246 = scmp.eq.s32.totalorder %s21, 0
    %p247 = por %p245, %p246
    %p248 = scmp.le.s32.totalorder 1, %s15
    %p249 = scmp.lt.s32.totalorder %s15, 3
    %p250 = pnand %p248, %p249
    %p251 = pneg %p250
    // Predicated region
    $region9: #{_lambda_.4} parent=5 // pred_check
      _
    $region10: #{_lambda_.4} parent=5 // pred_check_branch
      %253 = sbr.rel (%p250) target = $region12
    $region11: #{_lambda_.4} parent=5 // pred_region
      %s254 = ssub.s32 %s15, 1
      // Predicated region
      $region13: #{_lambda_.4} parent=11 // pred_check
        %p255 = pneg %p88
      $region14: #{_lambda_.4} parent=11 // pred_check_branch
        %257 = sbr.rel (%p255) target = $region16
      $region15: #{_lambda_.4} parent=11 // pred_region
        _
      $region16: #{_lambda_.4} parent=11 // pred_fallthru
        _
      // Predicated region
      $region17: #{_lambda_.4} parent=11 // pred_check
        %p258 = pneg %p109
      $region18: #{_lambda_.4} parent=11 // pred_check_branch
        %260 = sbr.rel (%p258) target = $region20
      $region19: #{_lambda_.4} parent=11 // pred_region
        _
      $region20: #{_lambda_.4} parent=11 // pred_fallthru
        _
      // Predicated region
      $region21: #{_lambda_.4} parent=11 // pred_check
        %p261 = pneg %p130
      $region22: #{_lambda_.4} parent=11 // pred_check_branch
        %263 = sbr.rel (%p261) target = $region24
      $region23: #{_lambda_.4} parent=11 // pred_region
        _
      $region24: #{_lambda_.4} parent=11 // pred_fallthru
        _
      // Predicated region
      $region25: #{_lambda_.4} parent=11 // pred_check
        %p264 = pneg %p151
      $region26: #{_lambda_.4} parent=11 // pred_check_branch
        %266 = sbr.rel (%p264) target = $region28
      $region27: #{_lambda_.4} parent=11 // pred_region
        _
      $region28: #{_lambda_.4} parent=11 // pred_fallthru
        _
      // Predicated region
      $region29: #{_lambda_.4} parent=11 // pred_check
        %p267 = pneg %p172
      $region30: #{_lambda_.4} parent=11 // pred_check_branch
        %269 = sbr.rel (%p267) target = $region32
      $region31: #{_lambda_.4} parent=11 // pred_region
        _
      $region32: #{_lambda_.4} parent=11 // pred_fallthru
        _
      // Predicated region
      $region33: #{_lambda_.4} parent=11 // pred_check
        %p270 = pneg %p193
      $region34: #{_lambda_.4} parent=11 // pred_check_branch
        %272 = sbr.rel (%p270) target = $region36
      $region35: #{_lambda_.4} parent=11 // pred_region
        _
      $region36: #{_lambda_.4} parent=11 // pred_fallthru
        _
      // Predicated region
      $region37: #{_lambda_.4} parent=11 // pred_check
        %p273 = pneg %p214
      $region38: #{_lambda_.4} parent=11 // pred_check_branch
        %275 = sbr.rel (%p273) target = $region40
      $region39: #{_lambda_.4} parent=11 // pred_region
        _
      $region40: #{_lambda_.4} parent=11 // pred_fallthru
        _
    $region12: #{_lambda_.4} parent=5 // pred_fallthru
      _
    %p276 = scmp.lt.s32.totalorder %s15, 2
    // Predicated region
    $region41: #{_lambda_.4} parent=5 // pred_check
      %p277 = pneg %p276
    $region42: #{_lambda_.4} parent=5 // pred_check_branch
      %279 = sbr.rel (%p277) target = $region44
    $region43: #{_lambda_.4} parent=5 // pred_region
      // Predicated region
      $region45: #{_lambda_.4} parent=43 // pred_check
        %p280 = pneg %p35
      $region46: #{_lambda_.4} parent=43 // pred_check_branch
        %282 = sbr.rel (%p280) target = $region48
      $region47: #{_lambda_.4} parent=43 // pred_region
        %s283 = smul.u32 8, %s15
        %p284 = scmp.lt.s32.totalorder %s283, 15
        %s285 = scalar_select %p284, %s283, 15
        %s286 = smul.addr %s285, 8
        %s287 = scalar_lea.vmem %s0, %s286
        %s288 = smul.u32 8, %s15
      $region48: #{_lambda_.4} parent=43 // pred_fallthru
        _
      // Predicated region
      $region49: #{_lambda_.4} parent=43 // pred_check
        %p289 = pneg %p61
      $region50: #{_lambda_.4} parent=43 // pred_check_branch
        %291 = sbr.rel (%p289) target = $region52
      $region51: #{_lambda_.4} parent=43 // pred_region
        %s292 = smul.u32 8, %s15
        %p293 = scmp.lt.s32.totalorder %s292, 15
        %s294 = scalar_select %p293, %s292, 15
        %s295 = smul.addr %s294, 8
        %s296 = scalar_lea.vmem %s1, %s295
        %s297 = smul.u32 8, %s15
      $region52: #{_lambda_.4} parent=43 // pred_fallthru
        _
    $region44: #{_lambda_.4} parent=5 // pred_fallthru
      _
    %p298 = scmp.le.s32.totalorder 1, %s15
    %p299 = scmp.lt.s32.totalorder %s15, 3
    %p300 = pnand %p298, %p299
    %p301 = pneg %p300
    // Predicated region
    $region53: #{_lambda_.4} parent=5 // pred_check
      _
    $region54: #{_lambda_.4} parent=5 // pred_check_branch
      %303 = sbr.rel (%p300) target = $region56
    $region55: #{_lambda_.4} parent=5 // pred_region
      %s304 = ssub.s32 %s15, 1
      %s305 = smul.u32 8, %s20
      %p306 = scmp.lt.s32.totalorder %s305, 15
      %s307 = scalar_select %p306, %s305, 15
      %s308 = smul.addr %s307, 8
      %s309 = scalar_lea.vmem %s0, %s308
      %p310 = pneg %p41
      %p311 = pneg %p38
      %s312 = smul.u32 8, %s20
      %p313 = scmp.lt.s32.totalorder %s312, 15
      %s314 = scalar_select %p313, %s312, 15
      %s315 = smul.addr %s314, 8
      %s316 = scalar_lea.vmem %s1, %s315
      %p317 = pneg %p67
      %p318 = pneg %p64
      %p319 = pneg %p88
      %p320 = pneg %p85
      %p321 = pneg %p109
      %p322 = pneg %p106
      %p323 = pneg %p130
      %p324 = pneg %p127
      %p325 = pneg %p151
      %p326 = pneg %p148
      %p327 = pneg %p172
      %p328 = pneg %p169
      %p329 = pneg %p193
      %p330 = pneg %p190
      %p331 = pneg %p214
      %p332 = pneg %p211
      %p333 = pneg %p240
      %p334 = pneg %p237
      %p335 = scmp.lt.s32.totalorder %s20, 1
      %s336 = scalar_select %p335, %s20, 1
      %s337 = smul.addr %s336, 8
      %s338 = scalar_lea.vmem %s9, %s337
      %s339 = smul.u32 8, %s20
      %p340 = scmp.lt.s32.totalorder %s339, 15
      %s341 = scalar_select %p340, %s339, 15
      %s342 = smul.addr %s341, 8
      %s343 = scalar_lea.vmem %s0, %s342
      %s344 = smul.u32 8, %s20
      %s345 = smul.u32 8, %s20
      %p346 = scmp.lt.s32.totalorder %s345, 15
      %s347 = scalar_select %p346, %s345, 15
      %s348 = smul.addr %s347, 8
      %s349 = scalar_lea.vmem %s1, %s348
      %s350 = smul.u32 8, %s20
      %p351 = scmp.lt.s32.totalorder %s20, 1
      %s352 = scalar_select %p351, %s20, 1
      %s353 = smul.addr %s352, 8
      %s354 = scalar_lea.vmem %s9, %s353
      %v356 = vld [vmem:[%s343] sm:$0xff]
      %v357 = vld [vmem:[%s343 + $0x8] sm:$0xff]
      %v358 = vld [vmem:[%s343 + $0x10] sm:$0xff]
      %v359 = vld [vmem:[%s343 + $0x18] sm:$0xff]
      %v360 = vld [vmem:[%s343 + $0x20] sm:$0xff]
      %v361 = vld [vmem:[%s343 + $0x28] sm:$0xff]
      %v362 = vld [vmem:[%s343 + $0x30] sm:$0xff]
      %v363 = vld [vmem:[%s343 + $0x38] sm:$0xff]
      %v364 = vld [vmem:[%s349] sm:$0xff]
      %v365 = vld [vmem:[%s349 + $0x8] sm:$0xff]
      %v366 = vld [vmem:[%s349 + $0x10] sm:$0xff]
      %v367 = vld [vmem:[%s349 + $0x18] sm:$0xff]
      %v368 = vld [vmem:[%s349 + $0x20] sm:$0xff]
      %v369 = vld [vmem:[%s349 + $0x28] sm:$0xff]
      %v370 = vld [vmem:[%s349 + $0x30] sm:$0xff]
      %v371 = vld [vmem:[%s349 + $0x38] sm:$0xff]
      %v372 = vld [vmem:[%s2] sm:$0x3]
      %v373 = vpack.c.bf16 %v357, %v356
      %v374 = vpack.c.bf16 %v359, %v358
      %v375 = vpack.c.bf16 %v361, %v360
      %v376 = vpack.c.bf16 %v363, %v362
      %v377 = vld [vmem:[%s3] sm:$0xf]
      %v378 = vld [vmem:[%s3 + $0x4] sm:$0xf]
      %v379 = vld [vmem:[%s3 + $0x8] sm:$0xf]
      %v380 = vld [vmem:[%s3 + $0xc] sm:$0xf]
      %v381 = vpack.c.bf16 %v365, %v364
      %v382 = vpack.c.bf16 %v367, %v366
      %v383 = vpack.c.bf16 %v369, %v368
      %v384 = vpack.c.bf16 %v371, %v370
      %v389 = vunpack.c.l.b16 %v377
      %v390 = vunpack.c.l.b16 %v378
      %v391 = vunpack.c.l.b16 %v379
      %v392 = vunpack.c.l.b16 %v380
      %v393 = vpack.c.b16 %v390, %v389
      %v394 = vpack.c.b16 %v392, %v391
      %vm397 = vcmask 261120
      %v399 = vsel %vm397, %v381, 0
      %v402 = vsel %vm397, %v382, 0
      %v405 = vsel %vm397, %v383, 0
      %v408 = vsel %vm397, %v384, 0
      %410 = vmatprep.subr.bf16.mxu0 0
      %411 = vmatpush1.bf16.msra.mxu0 %v393
      %412 = vmatprep.subr.bf16.mxu0 0
      %413 = vmatpush1.bf16.msra.mxu0 %v394
      %414 = vmatprep.subr.bf16.mxu0 0
      %415 = vmatpush1.bf16.msra.mxu0 0
      %416 = vmatprep.subr.bf16.mxu0 0
      %417 = vmatpush1.bf16.msra.mxu0 0
      %418 = vmatprep.subr.bf16.mxu0 0
      %419 = vmatpush1.bf16.msra.mxu0 0
      %420 = vmatprep.subr.bf16.mxu0 0
      %421 = vmatpush1.bf16.msra.mxu0 0
      %422 = vmatprep.subr.bf16.mxu0 0
      %423 = vmatpush1.bf16.msra.mxu0 0
      %424 = vmatprep.subr.bf16.mxu0 0
      %425 = vmatpush1.bf16.msra.mxu0 0
      %426 = vmatprep.subr.bf16.mxu0 0
      %427 = vmatpush1.bf16.msra.mxu0 0
      %428 = vmatprep.subr.bf16.mxu0 0
      %429 = vmatpush1.bf16.msra.mxu0 0
      %430 = vmatprep.subr.bf16.mxu0 0
      %431 = vmatpush1.bf16.msra.mxu0 0
      %432 = vmatprep.subr.bf16.mxu0 0
      %433 = vmatpush1.bf16.msra.mxu0 0
      %434 = vmatprep.subr.bf16.mxu0 0
      %435 = vmatpush1.bf16.msra.mxu0 0
      %436 = vmatprep.subr.bf16.mxu0 0
      %437 = vmatpush1.bf16.msra.mxu0 0
      %438 = vmatprep.subr.bf16.mxu0 0
      %439 = vmatpush1.bf16.msra.mxu0 0
      %440 = vmatprep.subr.bf16.mxu0 0
      %441 = vmatpush1.bf16.msra.mxu0 0
      %442 = vmatprep.mubr.bf16.mxu0 0
      %443 = vmatmul.mubr.bf16.gmra.mrb[0].mxu0 %v399
      %v444 = vpop.f32.mrb[0].mxu0
      %v445 = vadd.f32 0.0, %v444
      %v446 = vpop.f32.mrb[0].mxu0
      %v447 = vpop.f32.mrb[0].mxu0
      %v448 = vadd.f32 0.0, %v447
      %v449 = vpop.f32.mrb[0].mxu0
      %450 = vmatprep.mubr.bf16.mxu0 0
      %451 = vmatmul.mubr.bf16.gmra.mrb[0].mxu0 %v402
      %v452 = vpop.f32.mrb[0].mxu0
      %v453 = vadd.f32 0.0, %v452
      %v454 = vpop.f32.mrb[0].mxu0
      %v455 = vpop.f32.mrb[0].mxu0
      %v456 = vadd.f32 0.0, %v455
      %v457 = vpop.f32.mrb[0].mxu0
      %458 = vmatprep.mubr.bf16.mxu0 0
      %459 = vmatmul.mubr.bf16.gmra.mrb[0].mxu0 %v405
      %v460 = vpop.f32.mrb[0].mxu0
      %v461 = vadd.f32 0.0, %v460
      %v462 = vpop.f32.mrb[0].mxu0
      %v463 = vpop.f32.mrb[0].mxu0
      %v464 = vadd.f32 0.0, %v463
      %v465 = vpop.f32.mrb[0].mxu0
      %466 = vmatprep.mubr.bf16.mxu0 0
      %467 = vmatmul.mubr.bf16.gmra.mrb[0].mxu0 %v408
      %v468 = vpop.f32.mrb[0].mxu0
      %v469 = vadd.f32 0.0, %v468
      %v470 = vpop.f32.mrb[0].mxu0
      %v471 = vpop.f32.mrb[0].mxu0
      %v472 = vadd.f32 0.0, %v471
      %v473 = vpop.f32.mrb[0].mxu0
      %474 = vdwg.mxu0
      %vm475 = vcmask 23552
      %v477 = vsel %vm475, %v373, 0
      %v480 = vsel %vm475, %v374, 0
      %v483 = vsel %vm475, %v375, 0
      %v486 = vsel %vm475, %v376, 0
      %vm488 = vcmask 1040384
      %vm489 = vcmask 1041408
      %v490 = vsel %vm488, 4294967295, 65535
      %v491 = vsel %vm489, %v490, 0
      %v493 = vand.u32 %v372, %v491
      %495 = vmatprep.subr.bf16.mxu0 0
      %496 = vmatpush1.bf16.msra.mxu0 %v493
      %497 = vmatprep.subr.bf16.mxu0 0
      %498 = vmatpush1.bf16.msra.mxu0 0
      %499 = vmatprep.subr.bf16.mxu0 0
      %500 = vmatpush1.bf16.msra.mxu0 0
      %501 = vmatprep.subr.bf16.mxu0 0
      %502 = vmatpush1.bf16.msra.mxu0 0
      %503 = vmatprep.subr.bf16.mxu0 0
      %504 = vmatpush1.bf16.msra.mxu0 0
      %505 = vmatprep.subr.bf16.mxu0 0
      %506 = vmatpush1.bf16.msra.mxu0 0
      %507 = vmatprep.subr.bf16.mxu0 0
      %508 = vmatpush1.bf16.msra.mxu0 0
      %509 = vmatprep.subr.bf16.mxu0 0
      %510 = vmatpush1.bf16.msra.mxu0 0
      %511 = vmatprep.subr.bf16.mxu0 0
      %512 = vmatpush1.bf16.msra.mxu0 0
      %513 = vmatprep.subr.bf16.mxu0 0
      %514 = vmatpush1.bf16.msra.mxu0 0
      %515 = vmatprep.subr.bf16.mxu0 0
      %516 = vmatpush1.bf16.msra.mxu0 0
      %517 = vmatprep.subr.bf16.mxu0 0
      %518 = vmatpush1.bf16.msra.mxu0 0
      %519 = vmatprep.subr.bf16.mxu0 0
      %520 = vmatpush1.bf16.msra.mxu0 0
      %521 = vmatprep.subr.bf16.mxu0 0
      %522 = vmatpush1.bf16.msra.mxu0 0
      %523 = vmatprep.subr.bf16.mxu0 0
      %524 = vmatpush1.bf16.msra.mxu0 0
      %525 = vmatprep.subr.bf16.mxu0 0
      %526 = vmatpush1.bf16.msra.mxu0 0
      %527 = vmatprep.mubr.bf16.mxu0 0
      %528 = vmatmul.mubr.bf16.gmra.mrb[0].mxu0 %v477
      %v529 = vpop.f32.mrb[0].mxu0
      %v530 = vadd.f32 %v445, %v529
      %v531 = vpop.f32.mrb[0].mxu0
      %v532 = vpop.f32.mrb[0].mxu0
      %v533 = vadd.f32 %v448, %v532
      %v534 = vpop.f32.mrb[0].mxu0
      %535 = vmatprep.mubr.bf16.mxu0 0
      %536 = vmatmul.mubr.bf16.gmra.mrb[0].mxu0 %v480
      %v537 = vpop.f32.mrb[0].mxu0
      %v538 = vadd.f32 %v453, %v537
      %v539 = vpop.f32.mrb[0].mxu0
      %v540 = vpop.f32.mrb[0].mxu0
      %v541 = vadd.f32 %v456, %v540
      %v542 = vpop.f32.mrb[0].mxu0
      %543 = vmatprep.mubr.bf16.mxu0 0
      %544 = vmatmul.mubr.bf16.gmra.mrb[0].mxu0 %v483
      %v545 = vpop.f32.mrb[0].mxu0
      %v546 = vadd.f32 %v461, %v545
      %v547 = vpop.f32.mrb[0].mxu0
      %v548 = vpop.f32.mrb[0].mxu0
      %v549 = vadd.f32 %v464, %v548
      %v550 = vpop.f32.mrb[0].mxu0
      %551 = vmatprep.mubr.bf16.mxu0 0
      %552 = vmatmul.mubr.bf16.gmra.mrb[0].mxu0 %v486
      %v553 = vpop.f32.mrb[0].mxu0
      %v554 = vadd.f32 %v469, %v553
      %v555 = vpop.f32.mrb[0].mxu0
      %v556 = vpop.f32.mrb[0].mxu0
      %v557 = vadd.f32 %v472, %v556
      %v558 = vpop.f32.mrb[0].mxu0
      %559 = vdwg.mxu0
      %v560 = vld [vmem:[%s4] sm:$0x1]
      %v562 = vlaneseq
      %v563 = vshrl.u32 %v562, 7
      %v564 = vsub.s32 0, %v563
      %v565 = vrot.slane %v560, %v564
      %v567 = vadd.f32 %v530, %v565
      %v568 = vadd.f32 %v533, %v565
      %v569 = vadd.f32 %v538, %v565
      %v570 = vadd.f32 %v541, %v565
      %v571 = vadd.f32 %v546, %v565
      %v572 = vadd.f32 %v549, %v565
      %v573 = vadd.f32 %v554, %v565
      %v574 = vadd.f32 %v557, %v565
      %v575 = vmax.f32 %v567, 0.0
      %v576 = vmax.f32 %v568, 0.0
      %v577 = vmax.f32 %v569, 0.0
      %v578 = vmax.f32 %v570, 0.0
      %v579 = vmax.f32 %v571, 0.0
      %v580 = vmax.f32 %v572, 0.0
      %v581 = vmax.f32 %v573, 0.0
      %v582 = vmax.f32 %v574, 0.0
      %v583 = vld [vmem:[%s5] sm:$0xf]
      %v584 = vld [vmem:[%s5 + $0x4] sm:$0xf]
      %v585 = vld [vmem:[%s5 + $0x8] sm:$0xf]
      %v586 = vld [vmem:[%s5 + $0xc] sm:$0xf]
      %v587 = vld [vmem:[%s6] sm:$0x1]
      %v588 = vpack.c.bf16 %v576, %v575
      %v589 = vpack.c.bf16 %v578, %v577
      %v590 = vpack.c.bf16 %v580, %v579
      %v591 = vpack.c.bf16 %v582, %v581
      %v593 = vlaneseq
      %v594 = vshrl.u32 %v593, 7
      %v595 = vsub.s32 0, %v594
      %v596 = vrot.slane %v587, %v595
      %v602 = vunpack.c.l.b16 %v583
      %v603 = vunpack.c.l.b16 %v584
      %v604 = vunpack.c.l.b16 %v585
      %v605 = vunpack.c.l.b16 %v586
      %v606 = vpack.c.b16 %v603, %v602
      %v607 = vpack.c.b16 %v605, %v604
      %v611 = vsel %vm397, %v588, 0
      %v614 = vsel %vm397, %v589, 0
      %v617 = vsel %vm397, %v590, 0
      %v620 = vsel %vm397, %v591, 0
      %622 = vmatprep.subr.bf16.mxu0 0
      %623 = vmatpush1.bf16.msra.mxu0 %v606
      %624 = vmatprep.subr.bf16.mxu0 0
      %625 = vmatpush1.bf16.msra.mxu0 %v607
      %626 = vmatprep.subr.bf16.mxu0 0
      %627 = vmatpush1.bf16.msra.mxu0 0
      %628 = vmatprep.subr.bf16.mxu0 0
      %629 = vmatpush1.bf16.msra.mxu0 0
      %630 = vmatprep.subr.bf16.mxu0 0
      %631 = vmatpush1.bf16.msra.mxu0 0
      %632 = vmatprep.subr.bf16.mxu0 0
      %633 = vmatpush1.bf16.msra.mxu0 0
      %634 = vmatprep.subr.bf16.mxu0 0
      %635 = vmatpush1.bf16.msra.mxu0 0
      %636 = vmatprep.subr.bf16.mxu0 0
      %637 = vmatpush1.bf16.msra.mxu0 0
      %638 = vmatprep.subr.bf16.mxu0 0
      %639 = vmatpush1.bf16.msra.mxu0 0
      %640 = vmatprep.subr.bf16.mxu0 0
      %641 = vmatpush1.bf16.msra.mxu0 0
      %642 = vmatprep.subr.bf16.mxu0 0
      %643 = vmatpush1.bf16.msra.mxu0 0
      %644 = vmatprep.subr.bf16.mxu0 0
      %645 = vmatpush1.bf16.msra.mxu0 0
      %646 = vmatprep.subr.bf16.mxu0 0
      %647 = vmatpush1.bf16.msra.mxu0 0
      %648 = vmatprep.subr.bf16.mxu0 0
      %649 = vmatpush1.bf16.msra.mxu0 0
      %650 = vmatprep.subr.bf16.mxu0 0
      %651 = vmatpush1.bf16.msra.mxu0 0
      %652 = vmatprep.subr.bf16.mxu0 0
      %653 = vmatpush1.bf16.msra.mxu0 0
      %654 = vmatprep.mubr.bf16.mxu0 0
      %655 = vmatmul.mubr.bf16.gmra.mrb[0].mxu0 %v611
      %v656 = vpop.f32.mrb[0].mxu0
      %v657 = vadd.f32 %v596, %v656
      %v658 = vpop.f32.mrb[0].mxu0
      %v659 = vpop.f32.mrb[0].mxu0
      %v660 = vadd.f32 %v596, %v659
      %v661 = vpop.f32.mrb[0].mxu0
      %662 = vmatprep.mubr.bf16.mxu0 0
      %663 = vmatmul.mubr.bf16.gmra.mrb[0].mxu0 %v614
      %v664 = vpop.f32.mrb[0].mxu0
      %v665 = vadd.f32 %v596, %v664
      %v666 = vpop.f32.mrb[0].mxu0
      %v667 = vpop.f32.mrb[0].mxu0
      %v668 = vadd.f32 %v596, %v667
      %v669 = vpop.f32.mrb[0].mxu0
      %670 = vmatprep.mubr.bf16.mxu0 0
      %671 = vmatmul.mubr.bf16.gmra.mrb[0].mxu0 %v617
      %v672 = vpop.f32.mrb[0].mxu0
      %v673 = vadd.f32 %v596, %v672
      %v674 = vpop.f32.mrb[0].mxu0
      %v675 = vpop.f32.mrb[0].mxu0
      %v676 = vadd.f32 %v596, %v675
      %v677 = vpop.f32.mrb[0].mxu0
      %678 = vmatprep.mubr.bf16.mxu0 0
      %679 = vmatmul.mubr.bf16.gmra.mrb[0].mxu0 %v620
      %v680 = vpop.f32.mrb[0].mxu0
      %v681 = vadd.f32 %v596, %v680
      %v682 = vpop.f32.mrb[0].mxu0
      %v683 = vpop.f32.mrb[0].mxu0
      %v684 = vadd.f32 %v596, %v683
      %v685 = vpop.f32.mrb[0].mxu0
      %686 = vdwg.mxu0
      %v687 = vmax.f32 %v657, 0.0
      %v688 = vmax.f32 %v660, 0.0
      %v689 = vmax.f32 %v665, 0.0
      %v690 = vmax.f32 %v668, 0.0
      %v691 = vmax.f32 %v673, 0.0
      %v692 = vmax.f32 %v676, 0.0
      %v693 = vmax.f32 %v681, 0.0
      %v694 = vmax.f32 %v684, 0.0
      %v695 = vld [vmem:[%s7] sm:$0xf]
      %v696 = vld [vmem:[%s7 + $0x4] sm:$0xf]
      %v697 = vld [vmem:[%s7 + $0x8] sm:$0xf]
      %v698 = vld [vmem:[%s7 + $0xc] sm:$0xf]
      %v699 = vld [vmem:[%s8] sm:$0x1]
      %v700 = vpack.c.bf16 %v688, %v687
      %v701 = vpack.c.bf16 %v690, %v689
      %v702 = vpack.c.bf16 %v692, %v691
      %v703 = vpack.c.bf16 %v694, %v693
      %v705 = vlaneseq
      %v706 = vshrl.u32 %v705, 7
      %v707 = vsub.s32 0, %v706
      %v708 = vrot.slane %v699, %v707
      %v714 = vunpack.c.l.b16 %v695
      %v715 = vunpack.c.l.b16 %v696
      %v716 = vunpack.c.l.b16 %v697
      %v717 = vunpack.c.l.b16 %v698
      %v718 = vpack.c.b16 %v715, %v714
      %v719 = vpack.c.b16 %v717, %v716
      %v723 = vsel %vm397, %v700, 0
      %v726 = vsel %vm397, %v701, 0
      %v729 = vsel %vm397, %v702, 0
      %v732 = vsel %vm397, %v703, 0
      %734 = vmatprep.subr.bf16.mxu0 0
      %735 = vmatpush1.bf16.msra.mxu0 %v718
      %736 = vmatprep.subr.bf16.mxu0 0
      %737 = vmatpush1.bf16.msra.mxu0 %v719
      %738 = vmatprep.subr.bf16.mxu0 0
      %739 = vmatpush1.bf16.msra.mxu0 0
      %740 = vmatprep.subr.bf16.mxu0 0
      %741 = vmatpush1.bf16.msra.mxu0 0
      %742 = vmatprep.subr.bf16.mxu0 0
      %743 = vmatpush1.bf16.msra.mxu0 0
      %744 = vmatprep.subr.bf16.mxu0 0
      %745 = vmatpush1.bf16.msra.mxu0 0
      %746 = vmatprep.subr.bf16.mxu0 0
      %747 = vmatpush1.bf16.msra.mxu0 0
      %748 = vmatprep.subr.bf16.mxu0 0
      %749 = vmatpush1.bf16.msra.mxu0 0
      %750 = vmatprep.subr.bf16.mxu0 0
      %751 = vmatpush1.bf16.msra.mxu0 0
      %752 = vmatprep.subr.bf16.mxu0 0
      %753 = vmatpush1.bf16.msra.mxu0 0
      %754 = vmatprep.subr.bf16.mxu0 0
      %755 = vmatpush1.bf16.msra.mxu0 0
      %756 = vmatprep.subr.bf16.mxu0 0
      %757 = vmatpush1.bf16.msra.mxu0 0
      %758 = vmatprep.subr.bf16.mxu0 0
      %759 = vmatpush1.bf16.msra.mxu0 0
      %760 = vmatprep.subr.bf16.mxu0 0
      %761 = vmatpush1.bf16.msra.mxu0 0
      %762 = vmatprep.subr.bf16.mxu0 0
      %763 = vmatpush1.bf16.msra.mxu0 0
      %764 = vmatprep.subr.bf16.mxu0 0
      %765 = vmatpush1.bf16.msra.mxu0 0
      %766 = vmatprep.mubr.bf16.mxu0 0
      %767 = vmatmul.mubr.bf16.gmra.mrb[0].mxu0 %v723
      %v768 = vpop.f32.mrb[0].mxu0
      %v769 = vadd.f32 %v708, %v768
      %v770 = vpop.f32.mrb[0].mxu0
      %v771 = vpop.f32.mrb[0].mxu0
      %v772 = vadd.f32 %v708, %v771
      %v773 = vpop.f32.mrb[0].mxu0
      %774 = vmatprep.mubr.bf16.mxu0 0
      %775 = vmatmul.mubr.bf16.gmra.mrb[0].mxu0 %v726
      %v776 = vpop.f32.mrb[0].mxu0
      %v777 = vadd.f32 %v708, %v776
      %v778 = vpop.f32.mrb[0].mxu0
      %v779 = vpop.f32.mrb[0].mxu0
      %v780 = vadd.f32 %v708, %v779
      %v781 = vpop.f32.mrb[0].mxu0
      %782 = vmatprep.mubr.bf16.mxu0 0
      %783 = vmatmul.mubr.bf16.gmra.mrb[0].mxu0 %v729
      %v784 = vpop.f32.mrb[0].mxu0
      %v785 = vadd.f32 %v708, %v784
      %v786 = vpop.f32.mrb[0].mxu0
      %v787 = vpop.f32.mrb[0].mxu0
      %v788 = vadd.f32 %v708, %v787
      %v789 = vpop.f32.mrb[0].mxu0
      %790 = vmatprep.mubr.bf16.mxu0 0
      %791 = vmatmul.mubr.bf16.gmra.mrb[0].mxu0 %v732
      %v792 = vpop.f32.mrb[0].mxu0
      %v793 = vadd.f32 %v708, %v792
      %v794 = vpop.f32.mrb[0].mxu0
      %v795 = vpop.f32.mrb[0].mxu0
      %v796 = vadd.f32 %v708, %v795
      %v797 = vpop.f32.mrb[0].mxu0
      %798 = vdwg.mxu0
      %v799 = vmax.f32 %v769, 0.0
      %v800 = vmax.f32 %v772, 0.0
      %v801 = vmax.f32 %v777, 0.0
      %v802 = vmax.f32 %v780, 0.0
      %v803 = vmax.f32 %v785, 0.0
      %v804 = vmax.f32 %v788, 0.0
      %v805 = vmax.f32 %v793, 0.0
      %v806 = vmax.f32 %v796, 0.0
      %vm807 = vcmask 523264
      %v808 = vsel %vm807, %v799, -inf
      %v809 = vrot.slane %v808, 4
      %v810 = vmax.f32 %v808, %v809
      %v811 = vrot.slane %v810, 2
      %v812 = vmax.f32 %v810, %v811
      %v813 = vrot.slane %v812, 1
      %v814 = vmax.f32 %v812, %v813
      %v815 = vsel %vm807, %v800, -inf
      %v816 = vrot.slane %v815, 4
      %v817 = vmax.f32 %v815, %v816
      %v818 = vrot.slane %v817, 2
      %v819 = vmax.f32 %v817, %v818
      %v820 = vrot.slane %v819, 1
      %v821 = vmax.f32 %v819, %v820
      %v822 = vsel %vm807, %v801, -inf
      %v823 = vrot.slane %v822, 4
      %v824 = vmax.f32 %v822, %v823
      %v825 = vrot.slane %v824, 2
      %v826 = vmax.f32 %v824, %v825
      %v827 = vrot.slane %v826, 1
      %v828 = vmax.f32 %v826, %v827
      %v829 = vsel %vm807, %v802, -inf
      %v830 = vrot.slane %v829, 4
      %v831 = vmax.f32 %v829, %v830
      %v832 = vrot.slane %v831, 2
      %v833 = vmax.f32 %v831, %v832
      %v834 = vrot.slane %v833, 1
      %v835 = vmax.f32 %v833, %v834
      %v836 = vsel %vm807, %v803, -inf
      %v837 = vrot.slane %v836, 4
      %v838 = vmax.f32 %v836, %v837
      %v839 = vrot.slane %v838, 2
      %v840 = vmax.f32 %v838, %v839
      %v841 = vrot.slane %v840, 1
      %v842 = vmax.f32 %v840, %v841
      %v843 = vsel %vm807, %v804, -inf
      %v844 = vrot.slane %v843, 4
      %v845 = vmax.f32 %v843, %v844
      %v846 = vrot.slane %v845, 2
      %v847 = vmax.f32 %v845, %v846
      %v848 = vrot.slane %v847, 1
      %v849 = vmax.f32 %v847, %v848
      %v850 = vsel %vm807, %v805, -inf
      %v851 = vrot.slane %v850, 4
      %v852 = vmax.f32 %v850, %v851
      %v853 = vrot.slane %v852, 2
      %v854 = vmax.f32 %v852, %v853
      %v855 = vrot.slane %v854, 1
      %v856 = vmax.f32 %v854, %v855
      %v857 = vsel %vm807, %v806, -inf
      %v858 = vrot.slane %v857, 4
      %v859 = vmax.f32 %v857, %v858
      %v860 = vrot.slane %v859, 2
      %v861 = vmax.f32 %v859, %v860
      %v862 = vrot.slane %v861, 1
      %v863 = vmax.f32 %v861, %v862
      %vm872 = vcmask 1041409
      %v873 = vsel %vm872, %v821, %v814
      %vm874 = vcmask 1042434
      %v875 = vsel %vm874, %v828, %v873
      %vm876 = vcmask 1043459
      %v877 = vsel %vm876, %v835, %v875
      %vm878 = vcmask 1044484
      %v879 = vsel %vm878, %v842, %v877
      %vm880 = vcmask 1045509
      %v881 = vsel %vm880, %v849, %v879
      %vm882 = vcmask 1046534
      %v883 = vsel %vm882, %v856, %v881
      %vm884 = vcmask 1047559
      %v885 = vsel %vm884, %v863, %v883
      %887 = vst.msk [vmem:[%s354] sm:$0xff] %vm807, %v885
      %p888 = scmp.lt.s32.totalorder %s20, 1
      %s889 = scalar_select %p888, %s20, 1
      %s890 = smul.addr %s889, 8
      %s891 = scalar_lea.vmem %s9, %s890
      // Predicated region
      $region57: #{_lambda_.4} parent=55 // pred_check
        %p892 = pneg %p237
      $region58: #{_lambda_.4} parent=55 // pred_check_branch
        %894 = sbr.rel (%p892) target = $region60
      $region59: #{_lambda_.4} parent=55 // pred_region
        _
      $region60: #{_lambda_.4} parent=55 // pred_fallthru
        _
    $region56: #{_lambda_.4} parent=5 // pred_fallthru
      _
    %p895 = scmp.le.s32.totalorder 2, %s15
    // Predicated region
    $region61: #{_lambda_.4} parent=5 // pred_check
      %p896 = pneg %p895
    $region62: #{_lambda_.4} parent=5 // pred_check_branch
      %898 = sbr.rel (%p896) target = $region64
    $region63: #{_lambda_.4} parent=5 // pred_region
      %s899 = ssub.s32 %s15, 2
      // Predicated region
      $region65: #{_lambda_.4} parent=63 // pred_check
        %p900 = pneg %p243
      $region66: #{_lambda_.4} parent=63 // pred_check_branch
        %902 = sbr.rel (%p900) target = $region68
      $region67: #{_lambda_.4} parent=63 // pred_region
        %p903 = scmp.lt.s32.totalorder %s21, 1
        %s904 = scalar_select %p903, %s21, 1
        %s905 = smul.addr %s904, 8
        %s906 = scalar_lea.vmem %s9, %s905
      $region68: #{_lambda_.4} parent=63 // pred_fallthru
        _
    $region64: #{_lambda_.4} parent=5 // pred_fallthru
      _
  $region6: #{_lambda_.4} parent=0 // loop_footer
    %s19 = sadd.s32 1, %s15
  $region7: #{_lambda_.4} parent=0 // loop_footer_branch
    %14 = sbr.rel target = $region3
  $region8: #{_lambda_.4} parent=0 // loop_exit
    _

// kernel: _lambda_.3
$region0: #{_lambda_.3}
  #allocation0 [shape = 'u32[]', space=smem, size = 0x4, offset = 0x4, fixed_abs, tag = 'smem constant byte address 0x4 - core index']
  #allocation1 [shape = 'u32[144,128]{1,0:T(1,128)}', space=vmem, size = 0x12000, scoped, tag = 'internal scratch']
  %s0 = inlined_call_operand.vmem [shape: f32[32,8,3], index: 0, kind: input, shape index: {}]
  %s1 = inlined_call_operand.vmem [shape: bf16[3,16], index: 1, kind: input, shape index: {}]
  %s2 = inlined_call_operand.vmem [shape: f32[1,16], index: 2, kind: input, shape index: {}]
  %s3 = inlined_call_operand.vmem [shape: bf16[16,16], index: 3, kind: input, shape index: {}]
  %s4 = inlined_call_operand.vmem [shape: f32[1,16], index: 4, kind: input, shape index: {}]
  %s5 = inlined_call_operand.vmem [shape: bf16[16,32], index: 5, kind: input, shape index: {}]
  %s6 = inlined_call_operand.vmem [shape: f32[1,32], index: 6, kind: input, shape index: {}]
  %s7 = inlined_call_operand.vmem [shape: f32[32,32], index: 7, kind: output, shape index: {}]
  %s8 = sld [smem:[#allocation0]]
  $region61: #{_lambda_.3} parent=0
    _
  %s10 = ssub.s32 1, %s8
  %s11 = scalar_select 0, %s10, %s8
  loop: start=0, step=1, limit=4
  $region2: #{_lambda_.3} parent=0 // loop_pre_header
    _
  $region3: #{_lambda_.3} parent=0 // loop_header
    %s13 = sphi 0, %s17
    %p14 = scmp.ge.s32.totalorder %s13, 4
    %s23 = sphi 0, %s25
    %s26 = sphi 0, %s23
    %s27 = sphi 0, %s26
    %s43 = sphi 0, %s27
    %s47 = sphi 0, %s47
    %s49 = sphi 0, %s47
    %s50 = sphi 0, %s49
    %s64 = sphi 0, %s50
    %s68 = sphi 0, %s68
    %s70 = sphi 0, %s68
    %s71 = sphi 0, %s70
    %s85 = sphi 0, %s71
    %s89 = sphi 0, %s89
    %s91 = sphi 0, %s89
    %s92 = sphi 0, %s91
    %s106 = sphi 0, %s92
    %s110 = sphi 0, %s110
    %s112 = sphi 0, %s110
    %s113 = sphi 0, %s112
    %s127 = sphi 0, %s113
    %s131 = sphi 0, %s131
    %s133 = sphi 0, %s131
    %s134 = sphi 0, %s133
    %s148 = sphi 0, %s134
    %s152 = sphi 0, %s152
    %s154 = sphi 0, %s152
    %s155 = sphi 0, %s154
    %s169 = sphi 0, %s155
    %s175 = sphi 0, %s177
    %s178 = sphi 0, %s175
    %s179 = sphi 0, %s178
    %s195 = sphi 0, %s179
  $region4: #{_lambda_.3} parent=0 // loop_header_branch
    %16 = sbr.rel (%p14) target = $region8
  $region5: #{_lambda_.3} parent=0 // loop_body
    %s18 = ssub.s32 %s13, 1
    %s19 = ssub.s32 %s13, 2
    %s20 = sadd.s32 %s13, 1
    %s21 = ssub.s32 %s13, %s20
    %p22 = scmp.eq.s32.totalorder %s21, 0
    %s24 = sadd.s32 %s23, 1
    %s25 = scalar_select %p22, %s23, %s24
    %p28 = pneg %p22
    %p29 = scmp.eq.s32.totalorder %s13, 1
    %p30 = por %p28, %p29
    %p31 = scmp.ne.s32.totalorder %s23, %s26
    %p32 = scmp.eq.s32.totalorder %s13, 0
    %p33 = por %p31, %p32
    %p34 = scmp.ne.s32.totalorder %s23, %s26
    %p35 = scmp.eq.s32.totalorder %s18, 1
    %p36 = por %p34, %p35
    %p37 = scmp.ne.s32.totalorder %s26, %s27
    %p38 = scmp.eq.s32.totalorder %s18, 0
    %p39 = por %p37, %p38
    %p40 = scmp.ne.s32.totalorder %s26, %s27
    %p41 = scmp.eq.s32.totalorder %s19, 1
    %p42 = por %p40, %p41
    %p44 = scmp.ne.s32.totalorder %s27, %s43
    %p45 = scmp.eq.s32.totalorder %s19, 0
    %p46 = por %p44, %p45
    %s48 = sadd.s32 %s47, 1
    %p51 = scmp.eq.s32.totalorder %s13, 1
    %p52 = scmp.ne.s32.totalorder %s47, %s49
    %p53 = scmp.eq.s32.totalorder %s13, 0
    %p54 = por %p52, %p53
    %p55 = scmp.ne.s32.totalorder %s47, %s49
    %p56 = scmp.eq.s32.totalorder %s18, 1
    %p57 = por %p55, %p56
    %p58 = scmp.ne.s32.totalorder %s49, %s50
    %p59 = scmp.eq.s32.totalorder %s18, 0
    %p60 = por %p58, %p59
    %p61 = scmp.ne.s32.totalorder %s49, %s50
    %p62 = scmp.eq.s32.totalorder %s19, 1
    %p63 = por %p61, %p62
    %p65 = scmp.ne.s32.totalorder %s50, %s64
    %p66 = scmp.eq.s32.totalorder %s19, 0
    %p67 = por %p65, %p66
    %s69 = sadd.s32 %s68, 1
    %p72 = scmp.eq.s32.totalorder %s13, 1
    %p73 = scmp.ne.s32.totalorder %s68, %s70
    %p74 = scmp.eq.s32.totalorder %s13, 0
    %p75 = por %p73, %p74
    %p76 = scmp.ne.s32.totalorder %s68, %s70
    %p77 = scmp.eq.s32.totalorder %s18, 1
    %p78 = por %p76, %p77
    %p79 = scmp.ne.s32.totalorder %s70, %s71
    %p80 = scmp.eq.s32.totalorder %s18, 0
    %p81 = por %p79, %p80
    %p82 = scmp.ne.s32.totalorder %s70, %s71
    %p83 = scmp.eq.s32.totalorder %s19, 1
    %p84 = por %p82, %p83
    %p86 = scmp.ne.s32.totalorder %s71, %s85
    %p87 = scmp.eq.s32.totalorder %s19, 0
    %p88 = por %p86, %p87
    %s90 = sadd.s32 %s89, 1
    %p93 = scmp.eq.s32.totalorder %s13, 1
    %p94 = scmp.ne.s32.totalorder %s89, %s91
    %p95 = scmp.eq.s32.totalorder %s13, 0
    %p96 = por %p94, %p95
    %p97 = scmp.ne.s32.totalorder %s89, %s91
    %p98 = scmp.eq.s32.totalorder %s18, 1
    %p99 = por %p97, %p98
    %p100 = scmp.ne.s32.totalorder %s91, %s92
    %p101 = scmp.eq.s32.totalorder %s18, 0
    %p102 = por %p100, %p101
    %p103 = scmp.ne.s32.totalorder %s91, %s92
    %p104 = scmp.eq.s32.totalorder %s19, 1
    %p105 = por %p103, %p104
    %p107 = scmp.ne.s32.totalorder %s92, %s106
    %p108 = scmp.eq.s32.totalorder %s19, 0
    %p109 = por %p107, %p108
    %s111 = sadd.s32 %s110, 1
    %p114 = scmp.eq.s32.totalorder %s13, 1
    %p115 = scmp.ne.s32.totalorder %s110, %s112
    %p116 = scmp.eq.s32.totalorder %s13, 0
    %p117 = por %p115, %p116
    %p118 = scmp.ne.s32.totalorder %s110, %s112
    %p119 = scmp.eq.s32.totalorder %s18, 1
    %p120 = por %p118, %p119
    %p121 = scmp.ne.s32.totalorder %s112, %s113
    %p122 = scmp.eq.s32.totalorder %s18, 0
    %p123 = por %p121, %p122
    %p124 = scmp.ne.s32.totalorder %s112, %s113
    %p125 = scmp.eq.s32.totalorder %s19, 1
    %p126 = por %p124, %p125
    %p128 = scmp.ne.s32.totalorder %s113, %s127
    %p129 = scmp.eq.s32.totalorder %s19, 0
    %p130 = por %p128, %p129
    %s132 = sadd.s32 %s131, 1
    %p135 = scmp.eq.s32.totalorder %s13, 1
    %p136 = scmp.ne.s32.totalorder %s131, %s133
    %p137 = scmp.eq.s32.totalorder %s13, 0
    %p138 = por %p136, %p137
    %p139 = scmp.ne.s32.totalorder %s131, %s133
    %p140 = scmp.eq.s32.totalorder %s18, 1
    %p141 = por %p139, %p140
    %p142 = scmp.ne.s32.totalorder %s133, %s134
    %p143 = scmp.eq.s32.totalorder %s18, 0
    %p144 = por %p142, %p143
    %p145 = scmp.ne.s32.totalorder %s133, %s134
    %p146 = scmp.eq.s32.totalorder %s19, 1
    %p147 = por %p145, %p146
    %p149 = scmp.ne.s32.totalorder %s134, %s148
    %p150 = scmp.eq.s32.totalorder %s19, 0
    %p151 = por %p149, %p150
    %s153 = sadd.s32 %s152, 1
    %p156 = scmp.eq.s32.totalorder %s13, 1
    %p157 = scmp.ne.s32.totalorder %s152, %s154
    %p158 = scmp.eq.s32.totalorder %s13, 0
    %p159 = por %p157, %p158
    %p160 = scmp.ne.s32.totalorder %s152, %s154
    %p161 = scmp.eq.s32.totalorder %s18, 1
    %p162 = por %p160, %p161
    %p163 = scmp.ne.s32.totalorder %s154, %s155
    %p164 = scmp.eq.s32.totalorder %s18, 0
    %p165 = por %p163, %p164
    %p166 = scmp.ne.s32.totalorder %s154, %s155
    %p167 = scmp.eq.s32.totalorder %s19, 1
    %p168 = por %p166, %p167
    %p170 = scmp.ne.s32.totalorder %s155, %s169
    %p171 = scmp.eq.s32.totalorder %s19, 0
    %p172 = por %p170, %p171
    %s173 = ssub.s32 %s13, %s20
    %p174 = scmp.eq.s32.totalorder %s173, 0
    %s176 = sadd.s32 %s175, 1
    %s177 = scalar_select %p174, %s175, %s176
    %p180 = pneg %p174
    %p181 = scmp.eq.s32.totalorder %s13, 1
    %p182 = por %p180, %p181
    %p183 = scmp.ne.s32.totalorder %s175, %s178
    %p184 = scmp.eq.s32.totalorder %s13, 0
    %p185 = por %p183, %p184
    %p186 = scmp.ne.s32.totalorder %s175, %s178
    %p187 = scmp.eq.s32.totalorder %s18, 1
    %p188 = por %p186, %p187
    %p189 = scmp.ne.s32.totalorder %s178, %s179
    %p190 = scmp.eq.s32.totalorder %s18, 0
    %p191 = por %p189, %p190
    %p192 = scmp.ne.s32.totalorder %s178, %s179
    %p193 = scmp.eq.s32.totalorder %s19, 1
    %p194 = por %p192, %p193
    %p196 = scmp.ne.s32.totalorder %s179, %s195
    %p197 = scmp.eq.s32.totalorder %s19, 0
    %p198 = por %p196, %p197
    %p199 = scmp.le.s32.totalorder 1, %s13
    %p200 = scmp.lt.s32.totalorder %s13, 3
    %p201 = pnand %p199, %p200
    %p202 = pneg %p201
    // Predicated region
    $region9: #{_lambda_.3} parent=5 // pred_check
      _
    $region10: #{_lambda_.3} parent=5 // pred_check_branch
      %204 = sbr.rel (%p201) target = $region12
    $region11: #{_lambda_.3} parent=5 // pred_region
      %s205 = ssub.s32 %s13, 1
      // Predicated region
      $region13: #{_lambda_.3} parent=11 // pred_check
        %p206 = pneg %p60
      $region14: #{_lambda_.3} parent=11 // pred_check_branch
        %208 = sbr.rel (%p206) target = $region16
      $region15: #{_lambda_.3} parent=11 // pred_region
        _
      $region16: #{_lambda_.3} parent=11 // pred_fallthru
        _
      // Predicated region
      $region17: #{_lambda_.3} parent=11 // pred_check
        %p209 = pneg %p81
      $region18: #{_lambda_.3} parent=11 // pred_check_branch
        %211 = sbr.rel (%p209) target = $region20
      $region19: #{_lambda_.3} parent=11 // pred_region
        _
      $region20: #{_lambda_.3} parent=11 // pred_fallthru
        _
      // Predicated region
      $region21: #{_lambda_.3} parent=11 // pred_check
        %p212 = pneg %p102
      $region22: #{_lambda_.3} parent=11 // pred_check_branch
        %214 = sbr.rel (%p212) target = $region24
      $region23: #{_lambda_.3} parent=11 // pred_region
        _
      $region24: #{_lambda_.3} parent=11 // pred_fallthru
        _
      // Predicated region
      $region25: #{_lambda_.3} parent=11 // pred_check
        %p215 = pneg %p123
      $region26: #{_lambda_.3} parent=11 // pred_check_branch
        %217 = sbr.rel (%p215) target = $region28
      $region27: #{_lambda_.3} parent=11 // pred_region
        _
      $region28: #{_lambda_.3} parent=11 // pred_fallthru
        _
      // Predicated region
      $region29: #{_lambda_.3} parent=11 // pred_check
        %p218 = pneg %p144
      $region30: #{_lambda_.3} parent=11 // pred_check_branch
        %220 = sbr.rel (%p218) target = $region32
      $region31: #{_lambda_.3} parent=11 // pred_region
        _
      $region32: #{_lambda_.3} parent=11 // pred_fallthru
        _
      // Predicated region
      $region33: #{_lambda_.3} parent=11 // pred_check
        %p221 = pneg %p165
      $region34: #{_lambda_.3} parent=11 // pred_check_branch
        %223 = sbr.rel (%p221) target = $region36
      $region35: #{_lambda_.3} parent=11 // pred_region
        _
      $region36: #{_lambda_.3} parent=11 // pred_fallthru
        _
    $region12: #{_lambda_.3} parent=5 // pred_fallthru
      _
    %p224 = scmp.lt.s32.totalorder %s13, 2
    // Predicated region
    $region37: #{_lambda_.3} parent=5 // pred_check
      %p225 = pneg %p224
    $region38: #{_lambda_.3} parent=5 // pred_check_branch
      %227 = sbr.rel (%p225) target = $region40
    $region39: #{_lambda_.3} parent=5 // pred_region
      // Predicated region
      $region41: #{_lambda_.3} parent=39 // pred_check
        %p228 = pneg %p33
      $region42: #{_lambda_.3} parent=39 // pred_check_branch
        %230 = sbr.rel (%p228) target = $region44
      $region43: #{_lambda_.3} parent=39 // pred_region
        %s231 = smul.u32 16, %s13
        %p232 = scmp.lt.s32.totalorder %s231, 31
        %s233 = scalar_select %p232, %s231, 31
        %s234 = smul.addr %s233, 8
        %s235 = scalar_lea.vmem %s0, %s234
        %s236 = smul.u32 16, %s13
      $region44: #{_lambda_.3} parent=39 // pred_fallthru
        _
    $region40: #{_lambda_.3} parent=5 // pred_fallthru
      _
    %p237 = scmp.le.s32.totalorder 1, %s13
    %p238 = scmp.lt.s32.totalorder %s13, 3
    %p239 = pnand %p237, %p238
    %p240 = pneg %p239
    // Predicated region
    $region45: #{_lambda_.3} parent=5 // pred_check
      _
    $region46: #{_lambda_.3} parent=5 // pred_check_branch
      %242 = sbr.rel (%p239) target = $region48
    $region47: #{_lambda_.3} parent=5 // pred_region
      %s243 = ssub.s32 %s13, 1
      %s244 = smul.u32 16, %s18
      %p245 = scmp.lt.s32.totalorder %s244, 31
      %s246 = scalar_select %p245, %s244, 31
      %s247 = smul.addr %s246, 8
      %s248 = scalar_lea.vmem %s0, %s247
      %p249 = pneg %p39
      %p250 = pneg %p36
      %p251 = pneg %p60
      %p252 = pneg %p57
      %p253 = pneg %p81
      %p254 = pneg %p78
      %p255 = pneg %p102
      %p256 = pneg %p99
      %p257 = pneg %p123
      %p258 = pneg %p120
      %p259 = pneg %p144
      %p260 = pneg %p141
      %p261 = pneg %p165
      %p262 = pneg %p162
      %p263 = pneg %p191
      %p264 = pneg %p188
      %s265 = smul.u32 2, %s18
      %p266 = scmp.lt.s32.totalorder %s265, 3
      %s267 = scalar_select %p266, %s265, 3
      %s268 = smul.addr %s267, 8
      %s269 = scalar_lea.vmem %s7, %s268
      %s270 = smul.u32 16, %s18
      %p271 = scmp.lt.s32.totalorder %s270, 31
      %s272 = scalar_select %p271, %s270, 31
      %s273 = smul.addr %s272, 8
      %s274 = scalar_lea.vmem %s0, %s273
      %s275 = smul.u32 16, %s18
      %s276 = smul.u32 2, %s18
      %p277 = scmp.lt.s32.totalorder %s276, 3
      %s278 = scalar_select %p277, %s276, 3
      %s279 = smul.addr %s278, 8
      %s280 = scalar_lea.vmem %s7, %s279
      %s281 = smul.u32 2, %s18
      %v283 = vld [vmem:[%s274] sm:$0xff]
      %v284 = vld [vmem:[%s274 + $0x8] sm:$0xff]
      %v285 = vld [vmem:[%s274 + $0x10] sm:$0xff]
      %v286 = vld [vmem:[%s274 + $0x18] sm:$0xff]
      %v287 = vld [vmem:[%s274 + $0x20] sm:$0xff]
      %v288 = vld [vmem:[%s274 + $0x28] sm:$0xff]
      %v289 = vld [vmem:[%s274 + $0x30] sm:$0xff]
      %v290 = vld [vmem:[%s274 + $0x38] sm:$0xff]
      %v291 = vld [vmem:[%s274 + $0x40] sm:$0xff]
      %v292 = vld [vmem:[%s274 + $0x48] sm:$0xff]
      %v293 = vld [vmem:[%s274 + $0x50] sm:$0xff]
      %v294 = vld [vmem:[%s274 + $0x58] sm:$0xff]
      %v295 = vld [vmem:[%s274 + $0x60] sm:$0xff]
      %v296 = vld [vmem:[%s274 + $0x68] sm:$0xff]
      %v297 = vld [vmem:[%s274 + $0x70] sm:$0xff]
      %v298 = vld [vmem:[%s274 + $0x78] sm:$0xff]
      %v299 = vld [vmem:[%s1] sm:$0x3]
      %v300 = vpack.c.bf16 %v284, %v283
      %v301 = vpack.c.bf16 %v286, %v285
      %v302 = vpack.c.bf16 %v288, %v287
      %v303 = vpack.c.bf16 %v290, %v289
      %v304 = vpack.c.bf16 %v292, %v291
      %v305 = vpack.c.bf16 %v294, %v293
      %v306 = vpack.c.bf16 %v296, %v295
      %v307 = vpack.c.bf16 %v298, %v297
      %v308 = vld [vmem:[%s2] sm:$0x1]
      %v310 = vlaneseq
      %v311 = vshrl.u32 %v310, 7
      %v312 = vsub.s32 0, %v311
      %v313 = vrot.slane %v308, %v312
      %vm315 = vcmask 23552
      %v317 = vsel %vm315, %v300, 0
      %v320 = vsel %vm315, %v301, 0
      %v323 = vsel %vm315, %v302, 0
      %v326 = vsel %vm315, %v303, 0
      %v329 = vsel %vm315, %v304, 0
      %v332 = vsel %vm315, %v305, 0
      %v335 = vsel %vm315, %v306, 0
      %v338 = vsel %vm315, %v307, 0
      %vm340 = vcmask 1040384
      %vm341 = vcmask 1041408
      %v342 = vsel %vm340, 4294967295, 65535
      %v343 = vsel %vm341, %v342, 0
      %v345 = vand.u32 %v299, %v343
      %347 = vmatprep.subr.bf16.mxu0 0
      %348 = vmatpush1.bf16.msra.mxu0 %v345
      %349 = vmatprep.subr.bf16.mxu0 0
      %350 = vmatpush1.bf16.msra.mxu0 0
      %351 = vmatprep.subr.bf16.mxu0 0
      %352 = vmatpush1.bf16.msra.mxu0 0
      %353 = vmatprep.subr.bf16.mxu0 0
      %354 = vmatpush1.bf16.msra.mxu0 0
      %355 = vmatprep.subr.bf16.mxu0 0
      %356 = vmatpush1.bf16.msra.mxu0 0
      %357 = vmatprep.subr.bf16.mxu0 0
      %358 = vmatpush1.bf16.msra.mxu0 0
      %359 = vmatprep.subr.bf16.mxu0 0
      %360 = vmatpush1.bf16.msra.mxu0 0
      %361 = vmatprep.subr.bf16.mxu0 0
      %362 = vmatpush1.bf16.msra.mxu0 0
      %363 = vmatprep.subr.bf16.mxu0 0
      %364 = vmatpush1.bf16.msra.mxu0 0
      %365 = vmatprep.subr.bf16.mxu0 0
      %366 = vmatpush1.bf16.msra.mxu0 0
      %367 = vmatprep.subr.bf16.mxu0 0
      %368 = vmatpush1.bf16.msra.mxu0 0
      %369 = vmatprep.subr.bf16.mxu0 0
      %370 = vmatpush1.bf16.msra.mxu0 0
      %371 = vmatprep.subr.bf16.mxu0 0
      %372 = vmatpush1.bf16.msra.mxu0 0
      %373 = vmatprep.subr.bf16.mxu0 0
      %374 = vmatpush1.bf16.msra.mxu0 0
      %375 = vmatprep.subr.bf16.mxu0 0
      %376 = vmatpush1.bf16.msra.mxu0 0
      %377 = vmatprep.subr.bf16.mxu0 0
      %378 = vmatpush1.bf16.msra.mxu0 0
      %379 = vmatprep.mubr.bf16.mxu0 0
      %380 = vmatmul.mubr.bf16.gmra.mrb[0].mxu0 %v317
      %v381 = vpop.f32.mrb[0].mxu0
      %v382 = vadd.f32 %v313, %v381
      %v383 = vpop.f32.mrb[0].mxu0
      %v384 = vpop.f32.mrb[0].mxu0
      %v385 = vadd.f32 %v313, %v384
      %v386 = vpop.f32.mrb[0].mxu0
      %387 = vmatprep.mubr.bf16.mxu0 0
      %388 = vmatmul.mubr.bf16.gmra.mrb[0].mxu0 %v320
      %v389 = vpop.f32.mrb[0].mxu0
      %v390 = vadd.f32 %v313, %v389
      %v391 = vpop.f32.mrb[0].mxu0
      %v392 = vpop.f32.mrb[0].mxu0
      %v393 = vadd.f32 %v313, %v392
      %v394 = vpop.f32.mrb[0].mxu0
      %395 = vmatprep.mubr.bf16.mxu0 0
      %396 = vmatmul.mubr.bf16.gmra.mrb[0].mxu0 %v323
      %v397 = vpop.f32.mrb[0].mxu0
      %v398 = vadd.f32 %v313, %v397
      %v399 = vpop.f32.mrb[0].mxu0
      %v400 = vpop.f32.mrb[0].mxu0
      %v401 = vadd.f32 %v313, %v400
      %v402 = vpop.f32.mrb[0].mxu0
      %403 = vmatprep.mubr.bf16.mxu0 0
      %404 = vmatmul.mubr.bf16.gmra.mrb[0].mxu0 %v326
      %v405 = vpop.f32.mrb[0].mxu0
      %v406 = vadd.f32 %v313, %v405
      %v407 = vpop.f32.mrb[0].mxu0
      %v408 = vpop.f32.mrb[0].mxu0
      %v409 = vadd.f32 %v313, %v408
      %v410 = vpop.f32.mrb[0].mxu0
      %411 = vmatprep.mubr.bf16.mxu0 0
      %412 = vmatmul.mubr.bf16.gmra.mrb[0].mxu0 %v329
      %v413 = vpop.f32.mrb[0].mxu0
      %v414 = vadd.f32 %v313, %v413
      %v415 = vpop.f32.mrb[0].mxu0
      %v416 = vpop.f32.mrb[0].mxu0
      %v417 = vadd.f32 %v313, %v416
      %v418 = vpop.f32.mrb[0].mxu0
      %419 = vmatprep.mubr.bf16.mxu0 0
      %420 = vmatmul.mubr.bf16.gmra.mrb[0].mxu0 %v332
      %v421 = vpop.f32.mrb[0].mxu0
      %v422 = vadd.f32 %v313, %v421
      %v423 = vpop.f32.mrb[0].mxu0
      %v424 = vpop.f32.mrb[0].mxu0
      %v425 = vadd.f32 %v313, %v424
      %v426 = vpop.f32.mrb[0].mxu0
      %427 = vmatprep.mubr.bf16.mxu0 0
      %428 = vmatmul.mubr.bf16.gmra.mrb[0].mxu0 %v335
      %v429 = vpop.f32.mrb[0].mxu0
      %v430 = vadd.f32 %v313, %v429
      %v431 = vpop.f32.mrb[0].mxu0
      %v432 = vpop.f32.mrb[0].mxu0
      %v433 = vadd.f32 %v313, %v432
      %v434 = vpop.f32.mrb[0].mxu0
      %435 = vmatprep.mubr.bf16.mxu0 0
      %436 = vmatmul.mubr.bf16.gmra.mrb[0].mxu0 %v338
      %v437 = vpop.f32.mrb[0].mxu0
      %v438 = vadd.f32 %v313, %v437
      %v439 = vpop.f32.mrb[0].mxu0
      %v440 = vpop.f32.mrb[0].mxu0
      %v441 = vadd.f32 %v313, %v440
      %v442 = vpop.f32.mrb[0].mxu0
      %443 = vdwg.mxu0
      %v444 = vmax.f32 %v382, 0.0
      %v445 = vmax.f32 %v385, 0.0
      %v446 = vmax.f32 %v390, 0.0
      %v447 = vmax.f32 %v393, 0.0
      %v448 = vmax.f32 %v398, 0.0
      %v449 = vmax.f32 %v401, 0.0
      %v450 = vmax.f32 %v406, 0.0
      %v451 = vmax.f32 %v409, 0.0
      %v452 = vmax.f32 %v414, 0.0
      %v453 = vmax.f32 %v417, 0.0
      %v454 = vmax.f32 %v422, 0.0
      %v455 = vmax.f32 %v425, 0.0
      %v456 = vmax.f32 %v430, 0.0
      %v457 = vmax.f32 %v433, 0.0
      %v458 = vmax.f32 %v438, 0.0
      %v459 = vmax.f32 %v441, 0.0
      %v460 = vld [vmem:[%s3] sm:$0xf]
      %v461 = vld [vmem:[%s3 + $0x4] sm:$0xf]
      %v462 = vld [vmem:[%s4] sm:$0x1]
      %v463 = vpack.c.bf16 %v445, %v444
      %v464 = vpack.c.bf16 %v447, %v446
      %v465 = vpack.c.bf16 %v449, %v448
      %v466 = vpack.c.bf16 %v451, %v450
      %v467 = vpack.c.bf16 %v453, %v452
      %v468 = vpack.c.bf16 %v455, %v454
      %v469 = vpack.c.bf16 %v457, %v456
      %v470 = vpack.c.bf16 %v459, %v458
      %v472 = vlaneseq
      %v473 = vshrl.u32 %v472, 7
      %v474 = vsub.s32 0, %v473
      %v475 = vrot.slane %v462, %v474
      %v479 = vunpack.c.l.b16 %v460
      %v480 = vunpack.c.l.b16 %v461
      %v481 = vpack.c.b16 %v480, %v479
      %vm483 = vcmask 130048
      %v485 = vsel %vm483, %v463, 0
      %v488 = vsel %vm483, %v464, 0
      %v491 = vsel %vm483, %v465, 0
      %v494 = vsel %vm483, %v466, 0
      %v497 = vsel %vm483, %v467, 0
      %v500 = vsel %vm483, %v468, 0
      %v503 = vsel %vm483, %v469, 0
      %v506 = vsel %vm483, %v470, 0
      %508 = vmatprep.subr.bf16.mxu0 0
      %509 = vmatpush1.bf16.msra.mxu0 %v481
      %510 = vmatprep.subr.bf16.mxu0 0
      %511 = vmatpush1.bf16.msra.mxu0 0
      %512 = vmatprep.subr.bf16.mxu0 0
      %513 = vmatpush1.bf16.msra.mxu0 0
      %514 = vmatprep.subr.bf16.mxu0 0
      %515 = vmatpush1.bf16.msra.mxu0 0
      %516 = vmatprep.subr.bf16.mxu0 0
      %517 = vmatpush1.bf16.msra.mxu0 0
      %518 = vmatprep.subr.bf16.mxu0 0
      %519 = vmatpush1.bf16.msra.mxu0 0
      %520 = vmatprep.subr.bf16.mxu0 0
      %521 = vmatpush1.bf16.msra.mxu0 0
      %522 = vmatprep.subr.bf16.mxu0 0
      %523 = vmatpush1.bf16.msra.mxu0 0
      %524 = vmatprep.subr.bf16.mxu0 0
      %525 = vmatpush1.bf16.msra.mxu0 0
      %526 = vmatprep.subr.bf16.mxu0 0
      %527 = vmatpush1.bf16.msra.mxu0 0
      %528 = vmatprep.subr.bf16.mxu0 0
      %529 = vmatpush1.bf16.msra.mxu0 0
      %530 = vmatprep.subr.bf16.mxu0 0
      %531 = vmatpush1.bf16.msra.mxu0 0
      %532 = vmatprep.subr.bf16.mxu0 0
      %533 = vmatpush1.bf16.msra.mxu0 0
      %534 = vmatprep.subr.bf16.mxu0 0
      %535 = vmatpush1.bf16.msra.mxu0 0
      %536 = vmatprep.subr.bf16.mxu0 0
      %537 = vmatpush1.bf16.msra.mxu0 0
      %538 = vmatprep.subr.bf16.mxu0 0
      %539 = vmatpush1.bf16.msra.mxu0 0
      %540 = vmatprep.mubr.bf16.mxu0 0
      %541 = vmatmul.mubr.bf16.gmra.mrb[0].mxu0 %v485
      %v542 = vpop.f32.mrb[0].mxu0
      %v543 = vadd.f32 %v475, %v542
      %v544 = vpop.f32.mrb[0].mxu0
      %v545 = vpop.f32.mrb[0].mxu0
      %v546 = vadd.f32 %v475, %v545
      %v547 = vpop.f32.mrb[0].mxu0
      %548 = vmatprep.mubr.bf16.mxu0 0
      %549 = vmatmul.mubr.bf16.gmra.mrb[0].mxu0 %v488
      %v550 = vpop.f32.mrb[0].mxu0
      %v551 = vadd.f32 %v475, %v550
      %v552 = vpop.f32.mrb[0].mxu0
      %v553 = vpop.f32.mrb[0].mxu0
      %v554 = vadd.f32 %v475, %v553
      %v555 = vpop.f32.mrb[0].mxu0
      %556 = vmatprep.mubr.bf16.mxu0 0
      %557 = vmatmul.mubr.bf16.gmra.mrb[0].mxu0 %v491
      %v558 = vpop.f32.mrb[0].mxu0
      %v559 = vadd.f32 %v475, %v558
      %v560 = vpop.f32.mrb[0].mxu0
      %v561 = vpop.f32.mrb[0].mxu0
      %v562 = vadd.f32 %v475, %v561
      %v563 = vpop.f32.mrb[0].mxu0
      %564 = vmatprep.mubr.bf16.mxu0 0
      %565 = vmatmul.mubr.bf16.gmra.mrb[0].mxu0 %v494
      %v566 = vpop.f32.mrb[0].mxu0
      %v567 = vadd.f32 %v475, %v566
      %v568 = vpop.f32.mrb[0].mxu0
      %v569 = vpop.f32.mrb[0].mxu0
      %v570 = vadd.f32 %v475, %v569
      %v571 = vpop.f32.mrb[0].mxu0
      %572 = vmatprep.mubr.bf16.mxu0 0
      %573 = vmatmul.mubr.bf16.gmra.mrb[0].mxu0 %v497
      %v574 = vpop.f32.mrb[0].mxu0
      %v575 = vadd.f32 %v475, %v574
      %v576 = vpop.f32.mrb[0].mxu0
      %v577 = vpop.f32.mrb[0].mxu0
      %v578 = vadd.f32 %v475, %v577
      %v579 = vpop.f32.mrb[0].mxu0
      %580 = vmatprep.mubr.bf16.mxu0 0
      %581 = vmatmul.mubr.bf16.gmra.mrb[0].mxu0 %v500
      %v582 = vpop.f32.mrb[0].mxu0
      %v583 = vadd.f32 %v475, %v582
      %v584 = vpop.f32.mrb[0].mxu0
      %v585 = vpop.f32.mrb[0].mxu0
      %v586 = vadd.f32 %v475, %v585
      %v587 = vpop.f32.mrb[0].mxu0
      %588 = vmatprep.mubr.bf16.mxu0 0
      %589 = vmatmul.mubr.bf16.gmra.mrb[0].mxu0 %v503
      %v590 = vpop.f32.mrb[0].mxu0
      %v591 = vadd.f32 %v475, %v590
      %v592 = vpop.f32.mrb[0].mxu0
      %v593 = vpop.f32.mrb[0].mxu0
      %v594 = vadd.f32 %v475, %v593
      %v595 = vpop.f32.mrb[0].mxu0
      %596 = vmatprep.mubr.bf16.mxu0 0
      %597 = vmatmul.mubr.bf16.gmra.mrb[0].mxu0 %v506
      %v598 = vpop.f32.mrb[0].mxu0
      %v599 = vadd.f32 %v475, %v598
      %v600 = vpop.f32.mrb[0].mxu0
      %v601 = vpop.f32.mrb[0].mxu0
      %v602 = vadd.f32 %v475, %v601
      %v603 = vpop.f32.mrb[0].mxu0
      %604 = vdwg.mxu0
      %v605 = vmax.f32 %v543, 0.0
      %v606 = vmax.f32 %v546, 0.0
      %v607 = vmax.f32 %v551, 0.0
      %v608 = vmax.f32 %v554, 0.0
      %v609 = vmax.f32 %v559, 0.0
      %v610 = vmax.f32 %v562, 0.0
      %v611 = vmax.f32 %v567, 0.0
      %v612 = vmax.f32 %v570, 0.0
      %v613 = vmax.f32 %v575, 0.0
      %v614 = vmax.f32 %v578, 0.0
      %v615 = vmax.f32 %v583, 0.0
      %v616 = vmax.f32 %v586, 0.0
      %v617 = vmax.f32 %v591, 0.0
      %v618 = vmax.f32 %v594, 0.0
      %v619 = vmax.f32 %v599, 0.0
      %v620 = vmax.f32 %v602, 0.0
      %v621 = vld [vmem:[%s5] sm:$0xf]
      %v622 = vld [vmem:[%s5 + $0x4] sm:$0xf]
      %v623 = vld [vmem:[%s6] sm:$0x1]
      %v624 = vpack.c.bf16 %v606, %v605
      %v625 = vpack.c.bf16 %v608, %v607
      %v626 = vpack.c.bf16 %v610, %v609
      %v627 = vpack.c.bf16 %v612, %v611
      %v628 = vpack.c.bf16 %v614, %v613
      %v629 = vpack.c.bf16 %v616, %v615
      %v630 = vpack.c.bf16 %v618, %v617
      %v631 = vpack.c.bf16 %v620, %v619
      %v633 = vlaneseq
      %v634 = vshrl.u32 %v633, 7
      %v635 = vsub.s32 0, %v634
      %v636 = vrot.slane %v623, %v635
      %v640 = vunpack.c.l.b16 %v621
      %v641 = vunpack.c.l.b16 %v622
      %v642 = vpack.c.b16 %v641, %v640
      %v645 = vsel %vm483, %v624, 0
      %v648 = vsel %vm483, %v625, 0
      %v651 = vsel %vm483, %v626, 0
      %v654 = vsel %vm483, %v627, 0
      %v657 = vsel %vm483, %v628, 0
      %v660 = vsel %vm483, %v629, 0
      %v663 = vsel %vm483, %v630, 0
      %v666 = vsel %vm483, %v631, 0
      %668 = vmatprep.subr.bf16.mxu0 0
      %669 = vmatpush1.bf16.msra.mxu0 %v642
      %670 = vmatprep.subr.bf16.mxu0 0
      %671 = vmatpush1.bf16.msra.mxu0 0
      %672 = vmatprep.subr.bf16.mxu0 0
      %673 = vmatpush1.bf16.msra.mxu0 0
      %674 = vmatprep.subr.bf16.mxu0 0
      %675 = vmatpush1.bf16.msra.mxu0 0
      %676 = vmatprep.subr.bf16.mxu0 0
      %677 = vmatpush1.bf16.msra.mxu0 0
      %678 = vmatprep.subr.bf16.mxu0 0
      %679 = vmatpush1.bf16.msra.mxu0 0
      %680 = vmatprep.subr.bf16.mxu0 0
      %681 = vmatpush1.bf16.msra.mxu0 0
      %682 = vmatprep.subr.bf16.mxu0 0
      %683 = vmatpush1.bf16.msra.mxu0 0
      %684 = vmatprep.subr.bf16.mxu0 0
      %685 = vmatpush1.bf16.msra.mxu0 0
      %686 = vmatprep.subr.bf16.mxu0 0
      %687 = vmatpush1.bf16.msra.mxu0 0
      %688 = vmatprep.subr.bf16.mxu0 0
      %689 = vmatpush1.bf16.msra.mxu0 0
      %690 = vmatprep.subr.bf16.mxu0 0
      %691 = vmatpush1.bf16.msra.mxu0 0
      %692 = vmatprep.subr.bf16.mxu0 0
      %693 = vmatpush1.bf16.msra.mxu0 0
      %694 = vmatprep.subr.bf16.mxu0 0
      %695 = vmatpush1.bf16.msra.mxu0 0
      %696 = vmatprep.subr.bf16.mxu0 0
      %697 = vmatpush1.bf16.msra.mxu0 0
      %698 = vmatprep.subr.bf16.mxu0 0
      %699 = vmatpush1.bf16.msra.mxu0 0
      %700 = vmatprep.mubr.bf16.mxu0 0
      %701 = vmatmul.mubr.bf16.gmra.mrb[0].mxu0 %v645
      %v702 = vpop.f32.mrb[0].mxu0
      %v703 = vadd.f32 %v636, %v702
      %v704 = vpop.f32.mrb[0].mxu0
      %v705 = vpop.f32.mrb[0].mxu0
      %v706 = vadd.f32 %v636, %v705
      %v707 = vpop.f32.mrb[0].mxu0
      %708 = vmatprep.mubr.bf16.mxu0 0
      %709 = vmatmul.mubr.bf16.gmra.mrb[0].mxu0 %v648
      %v710 = vpop.f32.mrb[0].mxu0
      %v711 = vadd.f32 %v636, %v710
      %v712 = vpop.f32.mrb[0].mxu0
      %v713 = vpop.f32.mrb[0].mxu0
      %v714 = vadd.f32 %v636, %v713
      %v715 = vpop.f32.mrb[0].mxu0
      %716 = vmatprep.mubr.bf16.mxu0 0
      %717 = vmatmul.mubr.bf16.gmra.mrb[0].mxu0 %v651
      %v718 = vpop.f32.mrb[0].mxu0
      %v719 = vadd.f32 %v636, %v718
      %v720 = vpop.f32.mrb[0].mxu0
      %v721 = vpop.f32.mrb[0].mxu0
      %v722 = vadd.f32 %v636, %v721
      %v723 = vpop.f32.mrb[0].mxu0
      %724 = vmatprep.mubr.bf16.mxu0 0
      %725 = vmatmul.mubr.bf16.gmra.mrb[0].mxu0 %v654
      %v726 = vpop.f32.mrb[0].mxu0
      %v727 = vadd.f32 %v636, %v726
      %v728 = vpop.f32.mrb[0].mxu0
      %v729 = vpop.f32.mrb[0].mxu0
      %v730 = vadd.f32 %v636, %v729
      %v731 = vpop.f32.mrb[0].mxu0
      %732 = vmatprep.mubr.bf16.mxu0 0
      %733 = vmatmul.mubr.bf16.gmra.mrb[0].mxu0 %v657
      %v734 = vpop.f32.mrb[0].mxu0
      %v735 = vadd.f32 %v636, %v734
      %v736 = vpop.f32.mrb[0].mxu0
      %v737 = vpop.f32.mrb[0].mxu0
      %v738 = vadd.f32 %v636, %v737
      %v739 = vpop.f32.mrb[0].mxu0
      %740 = vmatprep.mubr.bf16.mxu0 0
      %741 = vmatmul.mubr.bf16.gmra.mrb[0].mxu0 %v660
      %v742 = vpop.f32.mrb[0].mxu0
      %v743 = vadd.f32 %v636, %v742
      %v744 = vpop.f32.mrb[0].mxu0
      %v745 = vpop.f32.mrb[0].mxu0
      %v746 = vadd.f32 %v636, %v745
      %v747 = vpop.f32.mrb[0].mxu0
      %748 = vmatprep.mubr.bf16.mxu0 0
      %749 = vmatmul.mubr.bf16.gmra.mrb[0].mxu0 %v663
      %v750 = vpop.f32.mrb[0].mxu0
      %v751 = vadd.f32 %v636, %v750
      %v752 = vpop.f32.mrb[0].mxu0
      %v753 = vpop.f32.mrb[0].mxu0
      %v754 = vadd.f32 %v636, %v753
      %v755 = vpop.f32.mrb[0].mxu0
      %756 = vmatprep.mubr.bf16.mxu0 0
      %757 = vmatmul.mubr.bf16.gmra.mrb[0].mxu0 %v666
      %v758 = vpop.f32.mrb[0].mxu0
      %v759 = vadd.f32 %v636, %v758
      %v760 = vpop.f32.mrb[0].mxu0
      %v761 = vpop.f32.mrb[0].mxu0
      %v762 = vadd.f32 %v636, %v761
      %v763 = vpop.f32.mrb[0].mxu0
      %764 = vdwg.mxu0
      %v765 = vmax.f32 %v703, 0.0
      %v766 = vmax.f32 %v706, 0.0
      %v767 = vmax.f32 %v711, 0.0
      %v768 = vmax.f32 %v714, 0.0
      %v769 = vmax.f32 %v719, 0.0
      %v770 = vmax.f32 %v722, 0.0
      %v771 = vmax.f32 %v727, 0.0
      %v772 = vmax.f32 %v730, 0.0
      %v773 = vmax.f32 %v735, 0.0
      %v774 = vmax.f32 %v738, 0.0
      %v775 = vmax.f32 %v743, 0.0
      %v776 = vmax.f32 %v746, 0.0
      %v777 = vmax.f32 %v751, 0.0
      %v778 = vmax.f32 %v754, 0.0
      %v779 = vmax.f32 %v759, 0.0
      %v780 = vmax.f32 %v762, 0.0
      %vm781 = vcmask 261120
      %v782 = vsel %vm781, %v765, -inf
      %v783 = vrot.slane %v782, 4
      %v784 = vmax.f32 %v782, %v783
      %v785 = vrot.slane %v784, 2
      %v786 = vmax.f32 %v784, %v785
      %v787 = vrot.slane %v786, 1
      %v788 = vmax.f32 %v786, %v787
      %v789 = vsel %vm781, %v766, -inf
      %v790 = vrot.slane %v789, 4
      %v791 = vmax.f32 %v789, %v790
      %v792 = vrot.slane %v791, 2
      %v793 = vmax.f32 %v791, %v792
      %v794 = vrot.slane %v793, 1
      %v795 = vmax.f32 %v793, %v794
      %v796 = vsel %vm781, %v767, -inf
      %v797 = vrot.slane %v796, 4
      %v798 = vmax.f32 %v796, %v797
      %v799 = vrot.slane %v798, 2
      %v800 = vmax.f32 %v798, %v799
      %v801 = vrot.slane %v800, 1
      %v802 = vmax.f32 %v800, %v801
      %v803 = vsel %vm781, %v768, -inf
      %v804 = vrot.slane %v803, 4
      %v805 = vmax.f32 %v803, %v804
      %v806 = vrot.slane %v805, 2
      %v807 = vmax.f32 %v805, %v806
      %v808 = vrot.slane %v807, 1
      %v809 = vmax.f32 %v807, %v808
      %v810 = vsel %vm781, %v769, -inf
      %v811 = vrot.slane %v810, 4
      %v812 = vmax.f32 %v810, %v811
      %v813 = vrot.slane %v812, 2
      %v814 = vmax.f32 %v812, %v813
      %v815 = vrot.slane %v814, 1
      %v816 = vmax.f32 %v814, %v815
      %v817 = vsel %vm781, %v770, -inf
      %v818 = vrot.slane %v817, 4
      %v819 = vmax.f32 %v817, %v818
      %v820 = vrot.slane %v819, 2
      %v821 = vmax.f32 %v819, %v820
      %v822 = vrot.slane %v821, 1
      %v823 = vmax.f32 %v821, %v822
      %v824 = vsel %vm781, %v771, -inf
      %v825 = vrot.slane %v824, 4
      %v826 = vmax.f32 %v824, %v825
      %v827 = vrot.slane %v826, 2
      %v828 = vmax.f32 %v826, %v827
      %v829 = vrot.slane %v828, 1
      %v830 = vmax.f32 %v828, %v829
      %v831 = vsel %vm781, %v772, -inf
      %v832 = vrot.slane %v831, 4
      %v833 = vmax.f32 %v831, %v832
      %v834 = vrot.slane %v833, 2
      %v835 = vmax.f32 %v833, %v834
      %v836 = vrot.slane %v835, 1
      %v837 = vmax.f32 %v835, %v836
      %v838 = vsel %vm781, %v773, -inf
      %v839 = vrot.slane %v838, 4
      %v840 = vmax.f32 %v838, %v839
      %v841 = vrot.slane %v840, 2
      %v842 = vmax.f32 %v840, %v841
      %v843 = vrot.slane %v842, 1
      %v844 = vmax.f32 %v842, %v843
      %v845 = vsel %vm781, %v774, -inf
      %v846 = vrot.slane %v845, 4
      %v847 = vmax.f32 %v845, %v846
      %v848 = vrot.slane %v847, 2
      %v849 = vmax.f32 %v847, %v848
      %v850 = vrot.slane %v849, 1
      %v851 = vmax.f32 %v849, %v850
      %v852 = vsel %vm781, %v775, -inf
      %v853 = vrot.slane %v852, 4
      %v854 = vmax.f32 %v852, %v853
      %v855 = vrot.slane %v854, 2
      %v856 = vmax.f32 %v854, %v855
      %v857 = vrot.slane %v856, 1
      %v858 = vmax.f32 %v856, %v857
      %v859 = vsel %vm781, %v776, -inf
      %v860 = vrot.slane %v859, 4
      %v861 = vmax.f32 %v859, %v860
      %v862 = vrot.slane %v861, 2
      %v863 = vmax.f32 %v861, %v862
      %v864 = vrot.slane %v863, 1
      %v865 = vmax.f32 %v863, %v864
      %v866 = vsel %vm781, %v777, -inf
      %v867 = vrot.slane %v866, 4
      %v868 = vmax.f32 %v866, %v867
      %v869 = vrot.slane %v868, 2
      %v870 = vmax.f32 %v868, %v869
      %v871 = vrot.slane %v870, 1
      %v872 = vmax.f32 %v870, %v871
      %v873 = vsel %vm781, %v778, -inf
      %v874 = vrot.slane %v873, 4
      %v875 = vmax.f32 %v873, %v874
      %v876 = vrot.slane %v875, 2
      %v877 = vmax.f32 %v875, %v876
      %v878 = vrot.slane %v877, 1
      %v879 = vmax.f32 %v877, %v878
      %v880 = vsel %vm781, %v779, -inf
      %v881 = vrot.slane %v880, 4
      %v882 = vmax.f32 %v880, %v881
      %v883 = vrot.slane %v882, 2
      %v884 = vmax.f32 %v882, %v883
      %v885 = vrot.slane %v884, 1
      %v886 = vmax.f32 %v884, %v885
      %v887 = vsel %vm781, %v780, -inf
      %v888 = vrot.slane %v887, 4
      %v889 = vmax.f32 %v887, %v888
      %v890 = vrot.slane %v889, 2
      %v891 = vmax.f32 %v889, %v890
      %v892 = vrot.slane %v891, 1
      %v893 = vmax.f32 %v891, %v892
      %vm910 = vcmask 1041409
      %v911 = vsel %vm910, %v795, %v788
      %vm912 = vcmask 1042434
      %v913 = vsel %vm912, %v802, %v911
      %vm914 = vcmask 1043459
      %v915 = vsel %vm914, %v809, %v913
      %vm916 = vcmask 1044484
      %v917 = vsel %vm916, %v816, %v915
      %vm918 = vcmask 1045509
      %v919 = vsel %vm918, %v823, %v917
      %vm920 = vcmask 1046534
      %v921 = vsel %vm920, %v830, %v919
      %vm922 = vcmask 1047559
      %v923 = vsel %vm922, %v837, %v921
      %v924 = vsel %vm910, %v851, %v844
      %v925 = vsel %vm912, %v858, %v924
      %v926 = vsel %vm914, %v865, %v925
      %v927 = vsel %vm916, %v872, %v926
      %v928 = vsel %vm918, %v879, %v927
      %v929 = vsel %vm920, %v886, %v928
      %v930 = vsel %vm922, %v893, %v929
      %933 = vst.msk [vmem:[%s280] sm:$0xff] %vm781, %v923
      %934 = vst.msk [vmem:[%s280 + $0x8] sm:$0xff] %vm781, %v930
      %s935 = smul.u32 2, %s18
      %p936 = scmp.lt.s32.totalorder %s935, 3
      %s937 = scalar_select %p936, %s935, 3
      %s938 = smul.addr %s937, 8
      %s939 = scalar_lea.vmem %s7, %s938
      // Predicated region
      $region49: #{_lambda_.3} parent=47 // pred_check
        %p940 = pneg %p188
      $region50: #{_lambda_.3} parent=47 // pred_check_branch
        %942 = sbr.rel (%p940) target = $region52
      $region51: #{_lambda_.3} parent=47 // pred_region
        %s943 = smul.u32 2, %s18
      $region52: #{_lambda_.3} parent=47 // pred_fallthru
        _
    $region48: #{_lambda_.3} parent=5 // pred_fallthru
      _
    %p944 = scmp.le.s32.totalorder 2, %s13
    // Predicated region
    $region53: #{_lambda_.3} parent=5 // pred_check
      %p945 = pneg %p944
    $region54: #{_lambda_.3} parent=5 // pred_check_branch
      %947 = sbr.rel (%p945) target = $region56
    $region55: #{_lambda_.3} parent=5 // pred_region
      %s948 = ssub.s32 %s13, 2
      // Predicated region
      $region57: #{_lambda_.3} parent=55 // pred_check
        %p949 = pneg %p194
      $region58: #{_lambda_.3} parent=55 // pred_check_branch
        %951 = sbr.rel (%p949) target = $region60
      $region59: #{_lambda_.3} parent=55 // pred_region
        %s952 = smul.u32 2, %s19
        %p953 = scmp.lt.s32.totalorder %s952, 3
        %s954 = scalar_select %p953, %s952, 3
        %s955 = smul.addr %s954, 8
        %s956 = scalar_lea.vmem %s7, %s955
      $region60: #{_lambda_.3} parent=55 // pred_fallthru
        _
    $region56: #{_lambda_.3} parent=5 // pred_fallthru
      _
  $region6: #{_lambda_.3} parent=0 // loop_footer
    %s17 = sadd.s32 1, %s13
  $region7: #{_lambda_.3} parent=0 // loop_footer_branch
    %12 = sbr.rel target = $region3
  $region8: #{_lambda_.3} parent=0 // loop_exit
    _

// kernel: _lambda_.5
$region0: #{_lambda_.5}
  #allocation0 [shape = 'u32[]', space=smem, size = 0x4, offset = 0x4, fixed_abs, tag = 'smem constant byte address 0x4 - core index']
  #allocation1 [shape = 'u32[144,128]{1,0:T(1,128)}', space=vmem, size = 0x12000, scoped, tag = 'internal scratch']
  %s0 = inlined_call_operand.vmem [shape: f32[2,8,64], index: 0, kind: input, shape index: {}]
  %s1 = inlined_call_operand.vmem [shape: f32[2,8,3], index: 1, kind: input, shape index: {}]
  %s2 = inlined_call_operand.vmem [shape: f32[2,1,3], index: 2, kind: input, shape index: {}]
  %s3 = inlined_call_operand.vmem [shape: bf16[64,64], index: 3, kind: input, shape index: {}]
  %s4 = inlined_call_operand.vmem [shape: bf16[3,64], index: 4, kind: input, shape index: {}]
  %s5 = inlined_call_operand.vmem [shape: f32[1,64], index: 5, kind: input, shape index: {}]
  %s6 = inlined_call_operand.vmem [shape: bf16[64,64], index: 6, kind: input, shape index: {}]
  %s7 = inlined_call_operand.vmem [shape: f32[1,64], index: 7, kind: input, shape index: {}]
  %s8 = inlined_call_operand.vmem [shape: bf16[64,128], index: 8, kind: input, shape index: {}]
  %s9 = inlined_call_operand.vmem [shape: f32[1,128], index: 9, kind: input, shape index: {}]
  %s10 = inlined_call_operand.vmem [shape: bf16[128,128], index: 10, kind: input, shape index: {}]
  %s11 = inlined_call_operand.vmem [shape: bf16[3,128], index: 11, kind: input, shape index: {}]
  %s12 = inlined_call_operand.vmem [shape: f32[1,128], index: 12, kind: input, shape index: {}]
  %s13 = inlined_call_operand.vmem [shape: bf16[128,64], index: 13, kind: input, shape index: {}]
  %s14 = inlined_call_operand.vmem [shape: f32[1,64], index: 14, kind: input, shape index: {}]
  %s15 = inlined_call_operand.vmem [shape: bf16[64,59], index: 15, kind: input, shape index: {}]
  %s16 = inlined_call_operand.vmem [shape: f32[1,59], index: 16, kind: input, shape index: {}]
  %s17 = inlined_call_operand.hbm [shape: f32[2,1,59], index: 17, kind: output, shape index: {}]
  %s18 = sld [smem:[#allocation0]]
  $region101: #{_lambda_.5} parent=0
    _
  %s20 = ssub.s32 1, %s18
  %s21 = scalar_select 0, %s20, %s18
  $region1: #{_lambda_.5} parent=0
    #allocation2 [shape = 'u8[1024]{0}', space=vmem, size = 0x400, scoped, tag = 'output window, operand 0']
    #allocation3 [shape = 's32[2]{0}', space=sflag, size = 0x8, scoped, tag = 'scoped memory for _lambda_.5']
    %22 = vsyncpa [#allocation3], 0
    %s23 = scalar_lea.sflag [#allocation3], 1
    %24 = vsyncpa %s23, 0
    loop: start=0, step=1, limit=4
    $region2: #{_lambda_.5} parent=1 // loop_pre_header
      _
    $region3: #{_lambda_.5} parent=1 // loop_header
      %s26 = sphi 0, %s30
      %p27 = scmp.ge.s32.totalorder %s26, 4
      %s36 = sphi 0, %s38
      %s39 = sphi 0, %s36
      %s40 = sphi 0, %s39
      %s56 = sphi 0, %s40
      %s62 = sphi 0, %s64
      %s65 = sphi 0, %s62
      %s66 = sphi 0, %s65
      %s82 = sphi 0, %s66
      %s88 = sphi 0, %s90
      %s91 = sphi 0, %s88
      %s92 = sphi 0, %s91
      %s108 = sphi 0, %s92
      %s112 = sphi 0, %s112
      %s114 = sphi 0, %s112
      %s115 = sphi 0, %s114
      %s129 = sphi 0, %s115
      %s133 = sphi 0, %s133
      %s135 = sphi 0, %s133
      %s136 = sphi 0, %s135
      %s150 = sphi 0, %s136
      %s154 = sphi 0, %s154
      %s156 = sphi 0, %s154
      %s157 = sphi 0, %s156
      %s171 = sphi 0, %s157
      %s175 = sphi 0, %s175
      %s177 = sphi 0, %s175
      %s178 = sphi 0, %s177
      %s192 = sphi 0, %s178
      %s196 = sphi 0, %s196
      %s198 = sphi 0, %s196
      %s199 = sphi 0, %s198
      %s213 = sphi 0, %s199
      %s217 = sphi 0, %s217
      %s219 = sphi 0, %s217
      %s220 = sphi 0, %s219
      %s234 = sphi 0, %s220
      %s238 = sphi 0, %s238
      %s240 = sphi 0, %s238
      %s241 = sphi 0, %s240
      %s255 = sphi 0, %s241
      %s259 = sphi 0, %s259
      %s261 = sphi 0, %s259
      %s262 = sphi 0, %s261
      %s276 = sphi 0, %s262
      %s280 = sphi 0, %s280
      %s282 = sphi 0, %s280
      %s283 = sphi 0, %s282
      %s297 = sphi 0, %s283
      %s301 = sphi 0, %s301
      %s303 = sphi 0, %s301
      %s304 = sphi 0, %s303
      %s318 = sphi 0, %s304
      %s322 = sphi 0, %s322
      %s324 = sphi 0, %s322
      %s325 = sphi 0, %s324
      %s339 = sphi 0, %s325
      %s343 = sphi 0, %s343
      %s345 = sphi 0, %s343
      %s346 = sphi 0, %s345
      %s360 = sphi 0, %s346
      %s364 = sphi 0, %s364
      %s366 = sphi 0, %s364
      %s367 = sphi 0, %s366
      %s381 = sphi 0, %s367
      %s385 = sphi 0, %s385
      %s387 = sphi 0, %s385
      %s388 = sphi 0, %s387
      %s402 = sphi 0, %s388
      %s408 = sphi 0, %s410
      %s411 = sphi 0, %s408
      %s412 = sphi 0, %s411
      %s428 = sphi 0, %s412
    $region4: #{_lambda_.5} parent=1 // loop_header_branch
      %29 = sbr.rel (%p27) target = $region8
    $region5: #{_lambda_.5} parent=1 // loop_body
      %s31 = ssub.s32 %s26, 1
      %s32 = ssub.s32 %s26, 2
      %s33 = sadd.s32 %s26, 1
      %s34 = ssub.s32 %s26, %s33
      %p35 = scmp.eq.s32.totalorder %s34, 0
      %s37 = sadd.s32 %s36, 1
      %s38 = scalar_select %p35, %s36, %s37
      %p41 = pneg %p35
      %p42 = scmp.eq.s32.totalorder %s26, 1
      %p43 = por %p41, %p42
      %p44 = scmp.ne.s32.totalorder %s36, %s39
      %p45 = scmp.eq.s32.totalorder %s26, 0
      %p46 = por %p44, %p45
      %p47 = scmp.ne.s32.totalorder %s36, %s39
      %p48 = scmp.eq.s32.totalorder %s31, 1
      %p49 = por %p47, %p48
      %p50 = scmp.ne.s32.totalorder %s39, %s40
      %p51 = scmp.eq.s32.totalorder %s31, 0
      %p52 = por %p50, %p51
      %p53 = scmp.ne.s32.totalorder %s39, %s40
      %p54 = scmp.eq.s32.totalorder %s32, 1
      %p55 = por %p53, %p54
      %p57 = scmp.ne.s32.totalorder %s40, %s56
      %p58 = scmp.eq.s32.totalorder %s32, 0
      %p59 = por %p57, %p58
      %s60 = ssub.s32 %s26, %s33
      %p61 = scmp.eq.s32.totalorder %s60, 0
      %s63 = sadd.s32 %s62, 1
      %s64 = scalar_select %p61, %s62, %s63
      %p67 = pneg %p61
      %p68 = scmp.eq.s32.totalorder %s26, 1
      %p69 = por %p67, %p68
      %p70 = scmp.ne.s32.totalorder %s62, %s65
      %p71 = scmp.eq.s32.totalorder %s26, 0
      %p72 = por %p70, %p71
      %p73 = scmp.ne.s32.totalorder %s62, %s65
      %p74 = scmp.eq.s32.totalorder %s31, 1
      %p75 = por %p73, %p74
      %p76 = scmp.ne.s32.totalorder %s65, %s66
      %p77 = scmp.eq.s32.totalorder %s31, 0
      %p78 = por %p76, %p77
      %p79 = scmp.ne.s32.totalorder %s65, %s66
      %p80 = scmp.eq.s32.totalorder %s32, 1
      %p81 = por %p79, %p80
      %p83 = scmp.ne.s32.totalorder %s66, %s82
      %p84 = scmp.eq.s32.totalorder %s32, 0
      %p85 = por %p83, %p84
      %s86 = ssub.s32 %s26, %s33
      %p87 = scmp.eq.s32.totalorder %s86, 0
      %s89 = sadd.s32 %s88, 1
      %s90 = scalar_select %p87, %s88, %s89
      %p93 = pneg %p87
      %p94 = scmp.eq.s32.totalorder %s26, 1
      %p95 = por %p93, %p94
      %p96 = scmp.ne.s32.totalorder %s88, %s91
      %p97 = scmp.eq.s32.totalorder %s26, 0
      %p98 = por %p96, %p97
      %p99 = scmp.ne.s32.totalorder %s88, %s91
      %p100 = scmp.eq.s32.totalorder %s31, 1
      %p101 = por %p99, %p100
      %p102 = scmp.ne.s32.totalorder %s91, %s92
      %p103 = scmp.eq.s32.totalorder %s31, 0
      %p104 = por %p102, %p103
      %p105 = scmp.ne.s32.totalorder %s91, %s92
      %p106 = scmp.eq.s32.totalorder %s32, 1
      %p107 = por %p105, %p106
      %p109 = scmp.ne.s32.totalorder %s92, %s108
      %p110 = scmp.eq.s32.totalorder %s32, 0
      %p111 = por %p109, %p110
      %s113 = sadd.s32 %s112, 1
      %p116 = scmp.eq.s32.totalorder %s26, 1
      %p117 = scmp.ne.s32.totalorder %s112, %s114
      %p118 = scmp.eq.s32.totalorder %s26, 0
      %p119 = por %p117, %p118
      %p120 = scmp.ne.s32.totalorder %s112, %s114
      %p121 = scmp.eq.s32.totalorder %s31, 1
      %p122 = por %p120, %p121
      %p123 = scmp.ne.s32.totalorder %s114, %s115
      %p124 = scmp.eq.s32.totalorder %s31, 0
      %p125 = por %p123, %p124
      %p126 = scmp.ne.s32.totalorder %s114, %s115
      %p127 = scmp.eq.s32.totalorder %s32, 1
      %p128 = por %p126, %p127
      %p130 = scmp.ne.s32.totalorder %s115, %s129
      %p131 = scmp.eq.s32.totalorder %s32, 0
      %p132 = por %p130, %p131
      %s134 = sadd.s32 %s133, 1
      %p137 = scmp.eq.s32.totalorder %s26, 1
      %p138 = scmp.ne.s32.totalorder %s133, %s135
      %p139 = scmp.eq.s32.totalorder %s26, 0
      %p140 = por %p138, %p139
      %p141 = scmp.ne.s32.totalorder %s133, %s135
      %p142 = scmp.eq.s32.totalorder %s31, 1
      %p143 = por %p141, %p142
      %p144 = scmp.ne.s32.totalorder %s135, %s136
      %p145 = scmp.eq.s32.totalorder %s31, 0
      %p146 = por %p144, %p145
      %p147 = scmp.ne.s32.totalorder %s135, %s136
      %p148 = scmp.eq.s32.totalorder %s32, 1
      %p149 = por %p147, %p148
      %p151 = scmp.ne.s32.totalorder %s136, %s150
      %p152 = scmp.eq.s32.totalorder %s32, 0
      %p153 = por %p151, %p152
      %s155 = sadd.s32 %s154, 1
      %p158 = scmp.eq.s32.totalorder %s26, 1
      %p159 = scmp.ne.s32.totalorder %s154, %s156
      %p160 = scmp.eq.s32.totalorder %s26, 0
      %p161 = por %p159, %p160
      %p162 = scmp.ne.s32.totalorder %s154, %s156
      %p163 = scmp.eq.s32.totalorder %s31, 1
      %p164 = por %p162, %p163
      %p165 = scmp.ne.s32.totalorder %s156, %s157
      %p166 = scmp.eq.s32.totalorder %s31, 0
      %p167 = por %p165, %p166
      %p168 = scmp.ne.s32.totalorder %s156, %s157
      %p169 = scmp.eq.s32.totalorder %s32, 1
      %p170 = por %p168, %p169
      %p172 = scmp.ne.s32.totalorder %s157, %s171
      %p173 = scmp.eq.s32.totalorder %s32, 0
      %p174 = por %p172, %p173
      %s176 = sadd.s32 %s175, 1
      %p179 = scmp.eq.s32.totalorder %s26, 1
      %p180 = scmp.ne.s32.totalorder %s175, %s177
      %p181 = scmp.eq.s32.totalorder %s26, 0
      %p182 = por %p180, %p181
      %p183 = scmp.ne.s32.totalorder %s175, %s177
      %p184 = scmp.eq.s32.totalorder %s31, 1
      %p185 = por %p183, %p184
      %p186 = scmp.ne.s32.totalorder %s177, %s178
      %p187 = scmp.eq.s32.totalorder %s31, 0
      %p188 = por %p186, %p187
      %p189 = scmp.ne.s32.totalorder %s177, %s178
      %p190 = scmp.eq.s32.totalorder %s32, 1
      %p191 = por %p189, %p190
      %p193 = scmp.ne.s32.totalorder %s178, %s192
      %p194 = scmp.eq.s32.totalorder %s32, 0
      %p195 = por %p193, %p194
      %s197 = sadd.s32 %s196, 1
      %p200 = scmp.eq.s32.totalorder %s26, 1
      %p201 = scmp.ne.s32.totalorder %s196, %s198
      %p202 = scmp.eq.s32.totalorder %s26, 0
      %p203 = por %p201, %p202
      %p204 = scmp.ne.s32.totalorder %s196, %s198
      %p205 = scmp.eq.s32.totalorder %s31, 1
      %p206 = por %p204, %p205
      %p207 = scmp.ne.s32.totalorder %s198, %s199
      %p208 = scmp.eq.s32.totalorder %s31, 0
      %p209 = por %p207, %p208
      %p210 = scmp.ne.s32.totalorder %s198, %s199
      %p211 = scmp.eq.s32.totalorder %s32, 1
      %p212 = por %p210, %p211
      %p214 = scmp.ne.s32.totalorder %s199, %s213
      %p215 = scmp.eq.s32.totalorder %s32, 0
      %p216 = por %p214, %p215
      %s218 = sadd.s32 %s217, 1
      %p221 = scmp.eq.s32.totalorder %s26, 1
      %p222 = scmp.ne.s32.totalorder %s217, %s219
      %p223 = scmp.eq.s32.totalorder %s26, 0
      %p224 = por %p222, %p223
      %p225 = scmp.ne.s32.totalorder %s217, %s219
      %p226 = scmp.eq.s32.totalorder %s31, 1
      %p227 = por %p225, %p226
      %p228 = scmp.ne.s32.totalorder %s219, %s220
      %p229 = scmp.eq.s32.totalorder %s31, 0
      %p230 = por %p228, %p229
      %p231 = scmp.ne.s32.totalorder %s219, %s220
      %p232 = scmp.eq.s32.totalorder %s32, 1
      %p233 = por %p231, %p232
      %p235 = scmp.ne.s32.totalorder %s220, %s234
      %p236 = scmp.eq.s32.totalorder %s32, 0
      %p237 = por %p235, %p236
      %s239 = sadd.s32 %s238, 1
      %p242 = scmp.eq.s32.totalorder %s26, 1
      %p243 = scmp.ne.s32.totalorder %s238, %s240
      %p244 = scmp.eq.s32.totalorder %s26, 0
      %p245 = por %p243, %p244
      %p246 = scmp.ne.s32.totalorder %s238, %s240
      %p247 = scmp.eq.s32.totalorder %s31, 1
      %p248 = por %p246, %p247
      %p249 = scmp.ne.s32.totalorder %s240, %s241
      %p250 = scmp.eq.s32.totalorder %s31, 0
      %p251 = por %p249, %p250
      %p252 = scmp.ne.s32.totalorder %s240, %s241
      %p253 = scmp.eq.s32.totalorder %s32, 1
      %p254 = por %p252, %p253
      %p256 = scmp.ne.s32.totalorder %s241, %s255
      %p257 = scmp.eq.s32.totalorder %s32, 0
      %p258 = por %p256, %p257
      %s260 = sadd.s32 %s259, 1
      %p263 = scmp.eq.s32.totalorder %s26, 1
      %p264 = scmp.ne.s32.totalorder %s259, %s261
      %p265 = scmp.eq.s32.totalorder %s26, 0
      %p266 = por %p264, %p265
      %p267 = scmp.ne.s32.totalorder %s259, %s261
      %p268 = scmp.eq.s32.totalorder %s31, 1
      %p269 = por %p267, %p268
      %p270 = scmp.ne.s32.totalorder %s261, %s262
      %p271 = scmp.eq.s32.totalorder %s31, 0
      %p272 = por %p270, %p271
      %p273 = scmp.ne.s32.totalorder %s261, %s262
      %p274 = scmp.eq.s32.totalorder %s32, 1
      %p275 = por %p273, %p274
      %p277 = scmp.ne.s32.totalorder %s262, %s276
      %p278 = scmp.eq.s32.totalorder %s32, 0
      %p279 = por %p277, %p278
      %s281 = sadd.s32 %s280, 1
      %p284 = scmp.eq.s32.totalorder %s26, 1
      %p285 = scmp.ne.s32.totalorder %s280, %s282
      %p286 = scmp.eq.s32.totalorder %s26, 0
      %p287 = por %p285, %p286
      %p288 = scmp.ne.s32.totalorder %s280, %s282
      %p289 = scmp.eq.s32.totalorder %s31, 1
      %p290 = por %p288, %p289
      %p291 = scmp.ne.s32.totalorder %s282, %s283
      %p292 = scmp.eq.s32.totalorder %s31, 0
      %p293 = por %p291, %p292
      %p294 = scmp.ne.s32.totalorder %s282, %s283
      %p295 = scmp.eq.s32.totalorder %s32, 1
      %p296 = por %p294, %p295
      %p298 = scmp.ne.s32.totalorder %s283, %s297
      %p299 = scmp.eq.s32.totalorder %s32, 0
      %p300 = por %p298, %p299
      %s302 = sadd.s32 %s301, 1
      %p305 = scmp.eq.s32.totalorder %s26, 1
      %p306 = scmp.ne.s32.totalorder %s301, %s303
      %p307 = scmp.eq.s32.totalorder %s26, 0
      %p308 = por %p306, %p307
      %p309 = scmp.ne.s32.totalorder %s301, %s303
      %p310 = scmp.eq.s32.totalorder %s31, 1
      %p311 = por %p309, %p310
      %p312 = scmp.ne.s32.totalorder %s303, %s304
      %p313 = scmp.eq.s32.totalorder %s31, 0
      %p314 = por %p312, %p313
      %p315 = scmp.ne.s32.totalorder %s303, %s304
      %p316 = scmp.eq.s32.totalorder %s32, 1
      %p317 = por %p315, %p316
      %p319 = scmp.ne.s32.totalorder %s304, %s318
      %p320 = scmp.eq.s32.totalorder %s32, 0
      %p321 = por %p319, %p320
      %s323 = sadd.s32 %s322, 1
      %p326 = scmp.eq.s32.totalorder %s26, 1
      %p327 = scmp.ne.s32.totalorder %s322, %s324
      %p328 = scmp.eq.s32.totalorder %s26, 0
      %p329 = por %p327, %p328
      %p330 = scmp.ne.s32.totalorder %s322, %s324
      %p331 = scmp.eq.s32.totalorder %s31, 1
      %p332 = por %p330, %p331
      %p333 = scmp.ne.s32.totalorder %s324, %s325
      %p334 = scmp.eq.s32.totalorder %s31, 0
      %p335 = por %p333, %p334
      %p336 = scmp.ne.s32.totalorder %s324, %s325
      %p337 = scmp.eq.s32.totalorder %s32, 1
      %p338 = por %p336, %p337
      %p340 = scmp.ne.s32.totalorder %s325, %s339
      %p341 = scmp.eq.s32.totalorder %s32, 0
      %p342 = por %p340, %p341
      %s344 = sadd.s32 %s343, 1
      %p347 = scmp.eq.s32.totalorder %s26, 1
      %p348 = scmp.ne.s32.totalorder %s343, %s345
      %p349 = scmp.eq.s32.totalorder %s26, 0
      %p350 = por %p348, %p349
      %p351 = scmp.ne.s32.totalorder %s343, %s345
      %p352 = scmp.eq.s32.totalorder %s31, 1
      %p353 = por %p351, %p352
      %p354 = scmp.ne.s32.totalorder %s345, %s346
      %p355 = scmp.eq.s32.totalorder %s31, 0
      %p356 = por %p354, %p355
      %p357 = scmp.ne.s32.totalorder %s345, %s346
      %p358 = scmp.eq.s32.totalorder %s32, 1
      %p359 = por %p357, %p358
      %p361 = scmp.ne.s32.totalorder %s346, %s360
      %p362 = scmp.eq.s32.totalorder %s32, 0
      %p363 = por %p361, %p362
      %s365 = sadd.s32 %s364, 1
      %p368 = scmp.eq.s32.totalorder %s26, 1
      %p369 = scmp.ne.s32.totalorder %s364, %s366
      %p370 = scmp.eq.s32.totalorder %s26, 0
      %p371 = por %p369, %p370
      %p372 = scmp.ne.s32.totalorder %s364, %s366
      %p373 = scmp.eq.s32.totalorder %s31, 1
      %p374 = por %p372, %p373
      %p375 = scmp.ne.s32.totalorder %s366, %s367
      %p376 = scmp.eq.s32.totalorder %s31, 0
      %p377 = por %p375, %p376
      %p378 = scmp.ne.s32.totalorder %s366, %s367
      %p379 = scmp.eq.s32.totalorder %s32, 1
      %p380 = por %p378, %p379
      %p382 = scmp.ne.s32.totalorder %s367, %s381
      %p383 = scmp.eq.s32.totalorder %s32, 0
      %p384 = por %p382, %p383
      %s386 = sadd.s32 %s385, 1
      %p389 = scmp.eq.s32.totalorder %s26, 1
      %p390 = scmp.ne.s32.totalorder %s385, %s387
      %p391 = scmp.eq.s32.totalorder %s26, 0
      %p392 = por %p390, %p391
      %p393 = scmp.ne.s32.totalorder %s385, %s387
      %p394 = scmp.eq.s32.totalorder %s31, 1
      %p395 = por %p393, %p394
      %p396 = scmp.ne.s32.totalorder %s387, %s388
      %p397 = scmp.eq.s32.totalorder %s31, 0
      %p398 = por %p396, %p397
      %p399 = scmp.ne.s32.totalorder %s387, %s388
      %p400 = scmp.eq.s32.totalorder %s32, 1
      %p401 = por %p399, %p400
      %p403 = scmp.ne.s32.totalorder %s388, %s402
      %p404 = scmp.eq.s32.totalorder %s32, 0
      %p405 = por %p403, %p404
      %s406 = ssub.s32 %s26, %s33
      %p407 = scmp.eq.s32.totalorder %s406, 0
      %s409 = sadd.s32 %s408, 1
      %s410 = scalar_select %p407, %s408, %s409
      %p413 = pneg %p407
      %p414 = scmp.eq.s32.totalorder %s26, 1
      %p415 = por %p413, %p414
      %p416 = scmp.ne.s32.totalorder %s408, %s411
      %p417 = scmp.eq.s32.totalorder %s26, 0
      %p418 = por %p416, %p417
      %p419 = scmp.ne.s32.totalorder %s408, %s411
      %p420 = scmp.eq.s32.totalorder %s31, 1
      %p421 = por %p419, %p420
      %p422 = scmp.ne.s32.totalorder %s411, %s412
      %p423 = scmp.eq.s32.totalorder %s31, 0
      %p424 = por %p422, %p423
      %p425 = scmp.ne.s32.totalorder %s411, %s412
      %p426 = scmp.eq.s32.totalorder %s32, 1
      %p427 = por %p425, %p426
      %p429 = scmp.ne.s32.totalorder %s412, %s428
      %p430 = scmp.eq.s32.totalorder %s32, 0
      %p431 = por %p429, %p430
      %p432 = scmp.le.s32.totalorder 1, %s26
      %p433 = scmp.lt.s32.totalorder %s26, 3
      %p434 = pnand %p432, %p433
      %p435 = pneg %p434
      // Predicated region
      $region9: #{_lambda_.5} parent=5 // pred_check
        _
      $region10: #{_lambda_.5} parent=5 // pred_check_branch
        %437 = sbr.rel (%p434) target = $region12
      $region11: #{_lambda_.5} parent=5 // pred_region
        %s438 = ssub.s32 %s26, 1
        // Predicated region
        $region13: #{_lambda_.5} parent=11 // pred_check
          %p439 = pneg %p125
        $region14: #{_lambda_.5} parent=11 // pred_check_branch
          %441 = sbr.rel (%p439) target = $region16
        $region15: #{_lambda_.5} parent=11 // pred_region
          _
        $region16: #{_lambda_.5} parent=11 // pred_fallthru
          _
        // Predicated region
        $region17: #{_lambda_.5} parent=11 // pred_check
          %p442 = pneg %p146
        $region18: #{_lambda_.5} parent=11 // pred_check_branch
          %444 = sbr.rel (%p442) target = $region20
        $region19: #{_lambda_.5} parent=11 // pred_region
          _
        $region20: #{_lambda_.5} parent=11 // pred_fallthru
          _
        // Predicated region
        $region21: #{_lambda_.5} parent=11 // pred_check
          %p445 = pneg %p167
        $region22: #{_lambda_.5} parent=11 // pred_check_branch
          %447 = sbr.rel (%p445) target = $region24
        $region23: #{_lambda_.5} parent=11 // pred_region
          _
        $region24: #{_lambda_.5} parent=11 // pred_fallthru
          _
        // Predicated region
        $region25: #{_lambda_.5} parent=11 // pred_check
          %p448 = pneg %p188
        $region26: #{_lambda_.5} parent=11 // pred_check_branch
          %450 = sbr.rel (%p448) target = $region28
        $region27: #{_lambda_.5} parent=11 // pred_region
          _
        $region28: #{_lambda_.5} parent=11 // pred_fallthru
          _
        // Predicated region
        $region29: #{_lambda_.5} parent=11 // pred_check
          %p451 = pneg %p209
        $region30: #{_lambda_.5} parent=11 // pred_check_branch
          %453 = sbr.rel (%p451) target = $region32
        $region31: #{_lambda_.5} parent=11 // pred_region
          _
        $region32: #{_lambda_.5} parent=11 // pred_fallthru
          _
        // Predicated region
        $region33: #{_lambda_.5} parent=11 // pred_check
          %p454 = pneg %p230
        $region34: #{_lambda_.5} parent=11 // pred_check_branch
          %456 = sbr.rel (%p454) target = $region36
        $region35: #{_lambda_.5} parent=11 // pred_region
          _
        $region36: #{_lambda_.5} parent=11 // pred_fallthru
          _
        // Predicated region
        $region37: #{_lambda_.5} parent=11 // pred_check
          %p457 = pneg %p251
        $region38: #{_lambda_.5} parent=11 // pred_check_branch
          %459 = sbr.rel (%p457) target = $region40
        $region39: #{_lambda_.5} parent=11 // pred_region
          _
        $region40: #{_lambda_.5} parent=11 // pred_fallthru
          _
        // Predicated region
        $region41: #{_lambda_.5} parent=11 // pred_check
          %p460 = pneg %p272
        $region42: #{_lambda_.5} parent=11 // pred_check_branch
          %462 = sbr.rel (%p460) target = $region44
        $region43: #{_lambda_.5} parent=11 // pred_region
          _
        $region44: #{_lambda_.5} parent=11 // pred_fallthru
          _
        // Predicated region
        $region45: #{_lambda_.5} parent=11 // pred_check
          %p463 = pneg %p293
        $region46: #{_lambda_.5} parent=11 // pred_check_branch
          %465 = sbr.rel (%p463) target = $region48
        $region47: #{_lambda_.5} parent=11 // pred_region
          _
        $region48: #{_lambda_.5} parent=11 // pred_fallthru
          _
        // Predicated region
        $region49: #{_lambda_.5} parent=11 // pred_check
          %p466 = pneg %p314
        $region50: #{_lambda_.5} parent=11 // pred_check_branch
          %468 = sbr.rel (%p466) target = $region52
        $region51: #{_lambda_.5} parent=11 // pred_region
          _
        $region52: #{_lambda_.5} parent=11 // pred_fallthru
          _
        // Predicated region
        $region53: #{_lambda_.5} parent=11 // pred_check
          %p469 = pneg %p335
        $region54: #{_lambda_.5} parent=11 // pred_check_branch
          %471 = sbr.rel (%p469) target = $region56
        $region55: #{_lambda_.5} parent=11 // pred_region
          _
        $region56: #{_lambda_.5} parent=11 // pred_fallthru
          _
        // Predicated region
        $region57: #{_lambda_.5} parent=11 // pred_check
          %p472 = pneg %p356
        $region58: #{_lambda_.5} parent=11 // pred_check_branch
          %474 = sbr.rel (%p472) target = $region60
        $region59: #{_lambda_.5} parent=11 // pred_region
          _
        $region60: #{_lambda_.5} parent=11 // pred_fallthru
          _
        // Predicated region
        $region61: #{_lambda_.5} parent=11 // pred_check
          %p475 = pneg %p377
        $region62: #{_lambda_.5} parent=11 // pred_check_branch
          %477 = sbr.rel (%p475) target = $region64
        $region63: #{_lambda_.5} parent=11 // pred_region
          _
        $region64: #{_lambda_.5} parent=11 // pred_fallthru
          _
        // Predicated region
        $region65: #{_lambda_.5} parent=11 // pred_check
          %p478 = pneg %p398
        $region66: #{_lambda_.5} parent=11 // pred_check_branch
          %480 = sbr.rel (%p478) target = $region68
        $region67: #{_lambda_.5} parent=11 // pred_region
          _
        $region68: #{_lambda_.5} parent=11 // pred_fallthru
          _
      $region12: #{_lambda_.5} parent=5 // pred_fallthru
        _
      %p481 = scmp.lt.s32.totalorder %s26, 2
      // Predicated region
      $region69: #{_lambda_.5} parent=5 // pred_check
        %p482 = pneg %p481
      $region70: #{_lambda_.5} parent=5 // pred_check_branch
        %484 = sbr.rel (%p482) target = $region72
      $region71: #{_lambda_.5} parent=5 // pred_region
        // Predicated region
        $region73: #{_lambda_.5} parent=71 // pred_check
          %p485 = pneg %p46
        $region74: #{_lambda_.5} parent=71 // pred_check_branch
          %487 = sbr.rel (%p485) target = $region76
        $region75: #{_lambda_.5} parent=71 // pred_region
          %p488 = scmp.lt.s32.totalorder %s26, 1
          %s489 = scalar_select %p488, %s26, 1
          %s490 = smul.addr %s489, 8
          %s491 = scalar_lea.vmem %s0, %s490
        $region76: #{_lambda_.5} parent=71 // pred_fallthru
          _
        // Predicated region
        $region77: #{_lambda_.5} parent=71 // pred_check
          %p492 = pneg %p72
        $region78: #{_lambda_.5} parent=71 // pred_check_branch
          %494 = sbr.rel (%p492) target = $region80
        $region79: #{_lambda_.5} parent=71 // pred_region
          %p495 = scmp.lt.s32.totalorder %s26, 1
          %s496 = scalar_select %p495, %s26, 1
          %s497 = smul.addr %s496, 8
          %s498 = scalar_lea.vmem %s1, %s497
        $region80: #{_lambda_.5} parent=71 // pred_fallthru
          _
        // Predicated region
        $region81: #{_lambda_.5} parent=71 // pred_check
          %p499 = pneg %p98
        $region82: #{_lambda_.5} parent=71 // pred_check_branch
          %501 = sbr.rel (%p499) target = $region84
        $region83: #{_lambda_.5} parent=71 // pred_region
          %p502 = scmp.lt.s32.totalorder %s26, 1
          %s503 = scalar_select %p502, %s26, 1
          %s504 = scalar_lea.vmem %s2, %s503
        $region84: #{_lambda_.5} parent=71 // pred_fallthru
          _
      $region72: #{_lambda_.5} parent=5 // pred_fallthru
        _
      %p505 = scmp.le.s32.totalorder 1, %s26
      %p506 = scmp.lt.s32.totalorder %s26, 3
      %p507 = pnand %p505, %p506
      %p508 = pneg %p507
      // Predicated region
      $region85: #{_lambda_.5} parent=5 // pred_check
        _
      $region86: #{_lambda_.5} parent=5 // pred_check_branch
        %510 = sbr.rel (%p507) target = $region88
      $region87: #{_lambda_.5} parent=5 // pred_region
        %s511 = ssub.s32 %s26, 1
        %p512 = scmp.lt.s32.totalorder %s31, 1
        %s513 = scalar_select %p512, %s31, 1
        %s514 = smul.addr %s513, 8
        %s515 = scalar_lea.vmem %s0, %s514
        %p516 = pneg %p52
        %p517 = pneg %p49
        %p518 = scmp.lt.s32.totalorder %s31, 1
        %s519 = scalar_select %p518, %s31, 1
        %s520 = smul.addr %s519, 8
        %s521 = scalar_lea.vmem %s1, %s520
        %p522 = pneg %p78
        %p523 = pneg %p75
        %p524 = scmp.lt.s32.totalorder %s31, 1
        %s525 = scalar_select %p524, %s31, 1
        %s526 = scalar_lea.vmem %s2, %s525
        %p527 = pneg %p104
        %p528 = pneg %p101
        %p529 = pneg %p125
        %p530 = pneg %p122
        %p531 = pneg %p146
        %p532 = pneg %p143
        %p533 = pneg %p167
        %p534 = pneg %p164
        %p535 = pneg %p188
        %p536 = pneg %p185
        %p537 = pneg %p209
        %p538 = pneg %p206
        %p539 = pneg %p230
        %p540 = pneg %p227
        %p541 = pneg %p251
        %p542 = pneg %p248
        %p543 = pneg %p272
        %p544 = pneg %p269
        %p545 = pneg %p293
        %p546 = pneg %p290
        %p547 = pneg %p314
        %p548 = pneg %p311
        %p549 = pneg %p335
        %p550 = pneg %p332
        %p551 = pneg %p356
        %p552 = pneg %p353
        %p553 = pneg %p377
        %p554 = pneg %p374
        %p555 = pneg %p398
        %p556 = pneg %p395
        %p557 = pneg %p424
        %p558 = pneg %p421
        %s559 = sand.u32 %s411, 1
        %s560 = scalar_lea.sflag [#allocation3], %s559
        %s561 = sand.u32 %s411, 1
        %s562 = scalar_lea.vmem [#allocation2], %s561
        %p563 = scmp.lt.s32.totalorder %s31, 1
        %s564 = scalar_select %p563, %s31, 1
        %s565 = smul.addr %s564, 8
        %s566 = scalar_lea.vmem %s0, %s565
        %p567 = scmp.lt.s32.totalorder %s31, 1
        %s568 = scalar_select %p567, %s31, 1
        %s569 = smul.addr %s568, 8
        %s570 = scalar_lea.vmem %s1, %s569
        %p571 = scmp.lt.s32.totalorder %s31, 1
        %s572 = scalar_select %p571, %s31, 1
        %s573 = scalar_lea.vmem %s2, %s572
        %v575 = vld [vmem:[%s566] sm:$0xff]
        %v576 = vld [vmem:[%s570] sm:$0xff]
        %v577 = vld [vmem:[%s3] sm:$0xf]
        %v578 = vld [vmem:[%s3 + $0x4] sm:$0xf]
        %v579 = vld [vmem:[%s3 + $0x8] sm:$0xf]
        %v580 = vld [vmem:[%s3 + $0xc] sm:$0xf]
        %v581 = vld [vmem:[%s3 + $0x10] sm:$0xf]
        %v582 = vld [vmem:[%s3 + $0x14] sm:$0xf]
        %v583 = vld [vmem:[%s3 + $0x18] sm:$0xf]
        %v584 = vld [vmem:[%s3 + $0x1c] sm:$0xf]
        %v585 = vpack.c.bf16 %v575, %v575
        %v586 = vld [vmem:[%s4] sm:$0x3]
        %v587 = vpack.c.bf16 %v576, %v576
        %vm588 = vcmask 23552
        %v590 = vsel %vm588, %v587, 0
        %vm592 = vcmask 1040384
        %vm593 = vcmask 1041408
        %v594 = vsel %vm592, 4294967295, 65535
        %v595 = vsel %vm593, %v594, 0
        %v597 = vand.u32 %v586, %v595
        %599 = vmatprep.subr.bf16.mxu0 0
        %600 = vmatpush1.bf16.msra.mxu0 %v597
        %601 = vmatprep.subr.bf16.mxu0 0
        %602 = vmatpush1.bf16.msra.mxu0 0
        %603 = vmatprep.subr.bf16.mxu0 0
        %604 = vmatpush1.bf16.msra.mxu0 0
        %605 = vmatprep.subr.bf16.mxu0 0
        %606 = vmatpush1.bf16.msra.mxu0 0
        %607 = vmatprep.subr.bf16.mxu0 0
        %608 = vmatpush1.bf16.msra.mxu0 0
        %609 = vmatprep.subr.bf16.mxu0 0
        %610 = vmatpush1.bf16.msra.mxu0 0
        %611 = vmatprep.subr.bf16.mxu0 0
        %612 = vmatpush1.bf16.msra.mxu0 0
        %613 = vmatprep.subr.bf16.mxu0 0
        %614 = vmatpush1.bf16.msra.mxu0 0
        %615 = vmatprep.subr.bf16.mxu0 0
        %616 = vmatpush1.bf16.msra.mxu0 0
        %617 = vmatprep.subr.bf16.mxu0 0
        %618 = vmatpush1.bf16.msra.mxu0 0
        %619 = vmatprep.subr.bf16.mxu0 0
        %620 = vmatpush1.bf16.msra.mxu0 0
        %621 = vmatprep.subr.bf16.mxu0 0
        %622 = vmatpush1.bf16.msra.mxu0 0
        %623 = vmatprep.subr.bf16.mxu0 0
        %624 = vmatpush1.bf16.msra.mxu0 0
        %625 = vmatprep.subr.bf16.mxu0 0
        %626 = vmatpush1.bf16.msra.mxu0 0
        %627 = vmatprep.subr.bf16.mxu0 0
        %628 = vmatpush1.bf16.msra.mxu0 0
        %629 = vmatprep.subr.bf16.mxu0 0
        %630 = vmatpush1.bf16.msra.mxu0 0
        %631 = vmatprep.mubr.bf16.mxu0 0
        %632 = vmatmul.mubr.bf16.gmra.mrb[0].mxu0 %v590
        %v633 = vpop.f32.mrb[0].mxu0
        %v634 = vadd.f32 0.0, %v633
        %v635 = vpop.f32.mrb[0].mxu0
        %v636 = vpop.f32.mrb[0].mxu0
        %v637 = vpop.f32.mrb[0].mxu0
        %638 = vdwg.mxu0
        %v647 = vunpack.c.l.b16 %v577
        %v648 = vunpack.c.l.b16 %v578
        %v649 = vunpack.c.l.b16 %v579
        %v650 = vunpack.c.l.b16 %v580
        %v651 = vunpack.c.l.b16 %v581
        %v652 = vunpack.c.l.b16 %v582
        %v653 = vunpack.c.l.b16 %v583
        %v654 = vunpack.c.l.b16 %v584
        %v655 = vpack.c.b16 %v648, %v647
        %v656 = vpack.c.b16 %v650, %v649
        %v657 = vpack.c.b16 %v652, %v651
        %v658 = vpack.c.b16 %v654, %v653
        %vm663 = vcmask 523264
        %v665 = vsel %vm663, %v585, 0
        %667 = vmatprep.subr.bf16.mxu0 0
        %668 = vmatpush1.bf16.msra.mxu0 %v655
        %669 = vmatprep.subr.bf16.mxu0 0
        %670 = vmatpush1.bf16.msra.mxu0 %v656
        %671 = vmatprep.subr.bf16.mxu0 0
        %672 = vmatpush1.bf16.msra.mxu0 %v657
        %673 = vmatprep.subr.bf16.mxu0 0
        %674 = vmatpush1.bf16.msra.mxu0 %v658
        %675 = vmatprep.subr.bf16.mxu0 0
        %676 = vmatpush1.bf16.msra.mxu0 0
        %677 = vmatprep.subr.bf16.mxu0 0
        %678 = vmatpush1.bf16.msra.mxu0 0
        %679 = vmatprep.subr.bf16.mxu0 0
        %680 = vmatpush1.bf16.msra.mxu0 0
        %681 = vmatprep.subr.bf16.mxu0 0
        %682 = vmatpush1.bf16.msra.mxu0 0
        %683 = vmatprep.subr.bf16.mxu0 0
        %684 = vmatpush1.bf16.msra.mxu0 0
        %685 = vmatprep.subr.bf16.mxu0 0
        %686 = vmatpush1.bf16.msra.mxu0 0
        %687 = vmatprep.subr.bf16.mxu0 0
        %688 = vmatpush1.bf16.msra.mxu0 0
        %689 = vmatprep.subr.bf16.mxu0 0
        %690 = vmatpush1.bf16.msra.mxu0 0
        %691 = vmatprep.subr.bf16.mxu0 0
        %692 = vmatpush1.bf16.msra.mxu0 0
        %693 = vmatprep.subr.bf16.mxu0 0
        %694 = vmatpush1.bf16.msra.mxu0 0
        %695 = vmatprep.subr.bf16.mxu0 0
        %696 = vmatpush1.bf16.msra.mxu0 0
        %697 = vmatprep.subr.bf16.mxu0 0
        %698 = vmatpush1.bf16.msra.mxu0 0
        %699 = vmatprep.mubr.bf16.mxu0 0
        %700 = vmatmul.mubr.bf16.gmra.mrb[0].mxu0 %v665
        %v701 = vpop.f32.mrb[0].mxu0
        %v702 = vadd.f32 %v634, %v701
        %v703 = vpop.f32.mrb[0].mxu0
        %v704 = vpop.f32.mrb[0].mxu0
        %v705 = vpop.f32.mrb[0].mxu0
        %706 = vdwg.mxu0
        %v707 = vld [vmem:[%s5] sm:$0x1]
        %v709 = vlaneseq
        %v710 = vshrl.u32 %v709, 7
        %v711 = vsub.s32 0, %v710
        %v712 = vrot.slane %v707, %v711
        %v714 = vadd.f32 %v702, %v712
        %v715 = vmax.f32 %v714, 0.0
        %v716 = vld [vmem:[%s6] sm:$0xf]
        %v717 = vld [vmem:[%s6 + $0x4] sm:$0xf]
        %v718 = vld [vmem:[%s6 + $0x8] sm:$0xf]
        %v719 = vld [vmem:[%s6 + $0xc] sm:$0xf]
        %v720 = vld [vmem:[%s6 + $0x10] sm:$0xf]
        %v721 = vld [vmem:[%s6 + $0x14] sm:$0xf]
        %v722 = vld [vmem:[%s6 + $0x18] sm:$0xf]
        %v723 = vld [vmem:[%s6 + $0x1c] sm:$0xf]
        %v724 = vld [vmem:[%s7] sm:$0x1]
        %v725 = vpack.c.bf16 %v715, %v715
        %v727 = vlaneseq
        %v728 = vshrl.u32 %v727, 7
        %v729 = vsub.s32 0, %v728
        %v730 = vrot.slane %v724, %v729
        %v740 = vunpack.c.l.b16 %v716
        %v741 = vunpack.c.l.b16 %v717
        %v742 = vunpack.c.l.b16 %v718
        %v743 = vunpack.c.l.b16 %v719
        %v744 = vunpack.c.l.b16 %v720
        %v745 = vunpack.c.l.b16 %v721
        %v746 = vunpack.c.l.b16 %v722
        %v747 = vunpack.c.l.b16 %v723
        %v748 = vpack.c.b16 %v741, %v740
        %v749 = vpack.c.b16 %v743, %v742
        %v750 = vpack.c.b16 %v745, %v744
        %v751 = vpack.c.b16 %v747, %v746
        %v757 = vsel %vm663, %v725, 0
        %759 = vmatprep.subr.bf16.mxu0 0
        %760 = vmatpush1.bf16.msra.mxu0 %v748
        %761 = vmatprep.subr.bf16.mxu0 0
        %762 = vmatpush1.bf16.msra.mxu0 %v749
        %763 = vmatprep.subr.bf16.mxu0 0
        %764 = vmatpush1.bf16.msra.mxu0 %v750
        %765 = vmatprep.subr.bf16.mxu0 0
        %766 = vmatpush1.bf16.msra.mxu0 %v751
        %767 = vmatprep.subr.bf16.mxu0 0
        %768 = vmatpush1.bf16.msra.mxu0 0
        %769 = vmatprep.subr.bf16.mxu0 0
        %770 = vmatpush1.bf16.msra.mxu0 0
        %771 = vmatprep.subr.bf16.mxu0 0
        %772 = vmatpush1.bf16.msra.mxu0 0
        %773 = vmatprep.subr.bf16.mxu0 0
        %774 = vmatpush1.bf16.msra.mxu0 0
        %775 = vmatprep.subr.bf16.mxu0 0
        %776 = vmatpush1.bf16.msra.mxu0 0
        %777 = vmatprep.subr.bf16.mxu0 0
        %778 = vmatpush1.bf16.msra.mxu0 0
        %779 = vmatprep.subr.bf16.mxu0 0
        %780 = vmatpush1.bf16.msra.mxu0 0
        %781 = vmatprep.subr.bf16.mxu0 0
        %782 = vmatpush1.bf16.msra.mxu0 0
        %783 = vmatprep.subr.bf16.mxu0 0
        %784 = vmatpush1.bf16.msra.mxu0 0
        %785 = vmatprep.subr.bf16.mxu0 0
        %786 = vmatpush1.bf16.msra.mxu0 0
        %787 = vmatprep.subr.bf16.mxu0 0
        %788 = vmatpush1.bf16.msra.mxu0 0
        %789 = vmatprep.subr.bf16.mxu0 0
        %790 = vmatpush1.bf16.msra.mxu0 0
        %791 = vmatprep.mubr.bf16.mxu0 0
        %792 = vmatmul.mubr.bf16.gmra.mrb[0].mxu0 %v757
        %v793 = vpop.f32.mrb[0].mxu0
        %v794 = vadd.f32 %v730, %v793
        %v795 = vpop.f32.mrb[0].mxu0
        %v796 = vpop.f32.mrb[0].mxu0
        %v797 = vpop.f32.mrb[0].mxu0
        %798 = vdwg.mxu0
        %v799 = vmax.f32 %v794, 0.0
        %v800 = vld [vmem:[%s8] sm:$0xf]
        %v801 = vld [vmem:[%s8 + $0x4] sm:$0xf]
        %v802 = vld [vmem:[%s8 + $0x8] sm:$0xf]
        %v803 = vld [vmem:[%s8 + $0xc] sm:$0xf]
        %v804 = vld [vmem:[%s8 + $0x10] sm:$0xf]
        %v805 = vld [vmem:[%s8 + $0x14] sm:$0xf]
        %v806 = vld [vmem:[%s8 + $0x18] sm:$0xf]
        %v807 = vld [vmem:[%s8 + $0x1c] sm:$0xf]
        %v808 = vld [vmem:[%s9] sm:$0x1]
        %v809 = vpack.c.bf16 %v799, %v799
        %v811 = vlaneseq
        %v812 = vshrl.u32 %v811, 7
        %v813 = vsub.s32 0, %v812
        %v814 = vrot.slane %v808, %v813
        %v824 = vunpack.c.l.b16 %v800
        %v825 = vunpack.c.l.b16 %v801
        %v826 = vunpack.c.l.b16 %v802
        %v827 = vunpack.c.l.b16 %v803
        %v828 = vunpack.c.l.b16 %v804
        %v829 = vunpack.c.l.b16 %v805
        %v830 = vunpack.c.l.b16 %v806
        %v831 = vunpack.c.l.b16 %v807
        %v832 = vpack.c.b16 %v825, %v824
        %v833 = vpack.c.b16 %v827, %v826
        %v834 = vpack.c.b16 %v829, %v828
        %v835 = vpack.c.b16 %v831, %v830
        %v841 = vsel %vm663, %v809, 0
        %843 = vmatprep.subr.bf16.mxu0 0
        %844 = vmatpush1.bf16.msra.mxu0 %v832
        %845 = vmatprep.subr.bf16.mxu0 0
        %846 = vmatpush1.bf16.msra.mxu0 %v833
        %847 = vmatprep.subr.bf16.mxu0 0
        %848 = vmatpush1.bf16.msra.mxu0 %v834
        %849 = vmatprep.subr.bf16.mxu0 0
        %850 = vmatpush1.bf16.msra.mxu0 %v835
        %851 = vmatprep.subr.bf16.mxu0 0
        %852 = vmatpush1.bf16.msra.mxu0 0
        %853 = vmatprep.subr.bf16.mxu0 0
        %854 = vmatpush1.bf16.msra.mxu0 0
        %855 = vmatprep.subr.bf16.mxu0 0
        %856 = vmatpush1.bf16.msra.mxu0 0
        %857 = vmatprep.subr.bf16.mxu0 0
        %858 = vmatpush1.bf16.msra.mxu0 0
        %859 = vmatprep.subr.bf16.mxu0 0
        %860 = vmatpush1.bf16.msra.mxu0 0
        %861 = vmatprep.subr.bf16.mxu0 0
        %862 = vmatpush1.bf16.msra.mxu0 0
        %863 = vmatprep.subr.bf16.mxu0 0
        %864 = vmatpush1.bf16.msra.mxu0 0
        %865 = vmatprep.subr.bf16.mxu0 0
        %866 = vmatpush1.bf16.msra.mxu0 0
        %867 = vmatprep.subr.bf16.mxu0 0
        %868 = vmatpush1.bf16.msra.mxu0 0
        %869 = vmatprep.subr.bf16.mxu0 0
        %870 = vmatpush1.bf16.msra.mxu0 0
        %871 = vmatprep.subr.bf16.mxu0 0
        %872 = vmatpush1.bf16.msra.mxu0 0
        %873 = vmatprep.subr.bf16.mxu0 0
        %874 = vmatpush1.bf16.msra.mxu0 0
        %875 = vmatprep.mubr.bf16.mxu0 0
        %876 = vmatmul.mubr.bf16.gmra.mrb[0].mxu0 %v841
        %v877 = vpop.f32.mrb[0].mxu0
        %v878 = vadd.f32 %v814, %v877
        %v879 = vpop.f32.mrb[0].mxu0
        %v880 = vpop.f32.mrb[0].mxu0
        %v881 = vpop.f32.mrb[0].mxu0
        %882 = vdwg.mxu0
        %v883 = vmax.f32 %v878, 0.0
        %v884 = vrot.slane %v883, 4
        %v885 = vmax.f32 %v883, %v884
        %v886 = vrot.slane %v885, 2
        %v887 = vmax.f32 %v885, %v886
        %v888 = vrot.slane %v887, 1
        %v889 = vmax.f32 %v887, %v888
        %v890 = vld [vmem:[%s573] sm:$0x1]
        %v891 = vld [vmem:[%s10] sm:$0xf]
        %v892 = vld [vmem:[%s10 + $0x4] sm:$0xf]
        %v893 = vld [vmem:[%s10 + $0x8] sm:$0xf]
        %v894 = vld [vmem:[%s10 + $0xc] sm:$0xf]
        %v895 = vld [vmem:[%s10 + $0x10] sm:$0xf]
        %v896 = vld [vmem:[%s10 + $0x14] sm:$0xf]
        %v897 = vld [vmem:[%s10 + $0x18] sm:$0xf]
        %v898 = vld [vmem:[%s10 + $0x1c] sm:$0xf]
        %v899 = vld [vmem:[%s10 + $0x20] sm:$0xf]
        %v900 = vld [vmem:[%s10 + $0x24] sm:$0xf]
        %v901 = vld [vmem:[%s10 + $0x28] sm:$0xf]
        %v902 = vld [vmem:[%s10 + $0x2c] sm:$0xf]
        %v903 = vld [vmem:[%s10 + $0x30] sm:$0xf]
        %v904 = vld [vmem:[%s10 + $0x34] sm:$0xf]
        %v905 = vld [vmem:[%s10 + $0x38] sm:$0xf]
        %v906 = vld [vmem:[%s10 + $0x3c] sm:$0xf]
        %v907 = vpack.c.bf16 %v889, %v889
        %v908 = vld [vmem:[%s11] sm:$0x3]
        %v909 = vpack.c.bf16 %v890, %v890
        %v911 = vsel %vm588, %v909, 0
        %v914 = vand.u32 %v908, %v595
        %916 = vmatprep.subr.bf16.mxu0 0
        %917 = vmatpush1.bf16.msra.mxu0 %v914
        %918 = vmatprep.subr.bf16.mxu0 0
        %919 = vmatpush1.bf16.msra.mxu0 0
        %920 = vmatprep.subr.bf16.mxu0 0
        %921 = vmatpush1.bf16.msra.mxu0 0
        %922 = vmatprep.subr.bf16.mxu0 0
        %923 = vmatpush1.bf16.msra.mxu0 0
        %924 = vmatprep.subr.bf16.mxu0 0
        %925 = vmatpush1.bf16.msra.mxu0 0
        %926 = vmatprep.subr.bf16.mxu0 0
        %927 = vmatpush1.bf16.msra.mxu0 0
        %928 = vmatprep.subr.bf16.mxu0 0
        %929 = vmatpush1.bf16.msra.mxu0 0
        %930 = vmatprep.subr.bf16.mxu0 0
        %931 = vmatpush1.bf16.msra.mxu0 0
        %932 = vmatprep.subr.bf16.mxu0 0
        %933 = vmatpush1.bf16.msra.mxu0 0
        %934 = vmatprep.subr.bf16.mxu0 0
        %935 = vmatpush1.bf16.msra.mxu0 0
        %936 = vmatprep.subr.bf16.mxu0 0
        %937 = vmatpush1.bf16.msra.mxu0 0
        %938 = vmatprep.subr.bf16.mxu0 0
        %939 = vmatpush1.bf16.msra.mxu0 0
        %940 = vmatprep.subr.bf16.mxu0 0
        %941 = vmatpush1.bf16.msra.mxu0 0
        %942 = vmatprep.subr.bf16.mxu0 0
        %943 = vmatpush1.bf16.msra.mxu0 0
        %944 = vmatprep.subr.bf16.mxu0 0
        %945 = vmatpush1.bf16.msra.mxu0 0
        %946 = vmatprep.subr.bf16.mxu0 0
        %947 = vmatpush1.bf16.msra.mxu0 0
        %948 = vmatprep.mubr.bf16.mxu0 0
        %949 = vmatmul.mubr.bf16.gmra.mrb[0].mxu0 %v911
        %v950 = vpop.f32.mrb[0].mxu0
        %v951 = vadd.f32 0.0, %v950
        %v952 = vpop.f32.mrb[0].mxu0
        %v953 = vpop.f32.mrb[0].mxu0
        %v954 = vpop.f32.mrb[0].mxu0
        %955 = vdwg.mxu0
        %v972 = vunpack.c.l.b16 %v891
        %v973 = vunpack.c.l.b16 %v892
        %v974 = vunpack.c.l.b16 %v893
        %v975 = vunpack.c.l.b16 %v894
        %v976 = vunpack.c.l.b16 %v895
        %v977 = vunpack.c.l.b16 %v896
        %v978 = vunpack.c.l.b16 %v897
        %v979 = vunpack.c.l.b16 %v898
        %v980 = vunpack.c.l.b16 %v899
        %v981 = vunpack.c.l.b16 %v900
        %v982 = vunpack.c.l.b16 %v901
        %v983 = vunpack.c.l.b16 %v902
        %v984 = vunpack.c.l.b16 %v903
        %v985 = vunpack.c.l.b16 %v904
        %v986 = vunpack.c.l.b16 %v905
        %v987 = vunpack.c.l.b16 %v906
        %v988 = vpack.c.b16 %v973, %v972
        %v989 = vpack.c.b16 %v975, %v974
        %v990 = vpack.c.b16 %v977, %v976
        %v991 = vpack.c.b16 %v979, %v978
        %v992 = vpack.c.b16 %v981, %v980
        %v993 = vpack.c.b16 %v983, %v982
        %v994 = vpack.c.b16 %v985, %v984
        %v995 = vpack.c.b16 %v987, %v986
        %1004 = vmatprep.subr.bf16.mxu0 0
        %1005 = vmatpush1.bf16.msra.mxu0 %v988
        %1006 = vmatprep.subr.bf16.mxu0 0
        %1007 = vmatpush1.bf16.msra.mxu0 %v989
        %1008 = vmatprep.subr.bf16.mxu0 0
        %1009 = vmatpush1.bf16.msra.mxu0 %v990
        %1010 = vmatprep.subr.bf16.mxu0 0
        %1011 = vmatpush1.bf16.msra.mxu0 %v991
        %1012 = vmatprep.subr.bf16.mxu0 0
        %1013 = vmatpush1.bf16.msra.mxu0 %v992
        %1014 = vmatprep.subr.bf16.mxu0 0
        %1015 = vmatpush1.bf16.msra.mxu0 %v993
        %1016 = vmatprep.subr.bf16.mxu0 0
        %1017 = vmatpush1.bf16.msra.mxu0 %v994
        %1018 = vmatprep.subr.bf16.mxu0 0
        %1019 = vmatpush1.bf16.msra.mxu0 %v995
        %1020 = vmatprep.subr.bf16.mxu0 0
        %1021 = vmatpush1.bf16.msra.mxu0 0
        %1022 = vmatprep.subr.bf16.mxu0 0
        %1023 = vmatpush1.bf16.msra.mxu0 0
        %1024 = vmatprep.subr.bf16.mxu0 0
        %1025 = vmatpush1.bf16.msra.mxu0 0
        %1026 = vmatprep.subr.bf16.mxu0 0
        %1027 = vmatpush1.bf16.msra.mxu0 0
        %1028 = vmatprep.subr.bf16.mxu0 0
        %1029 = vmatpush1.bf16.msra.mxu0 0
        %1030 = vmatprep.subr.bf16.mxu0 0
        %1031 = vmatpush1.bf16.msra.mxu0 0
        %1032 = vmatprep.subr.bf16.mxu0 0
        %1033 = vmatpush1.bf16.msra.mxu0 0
        %1034 = vmatprep.subr.bf16.mxu0 0
        %1035 = vmatpush1.bf16.msra.mxu0 0
        %1036 = vmatprep.mubr.bf16.mxu0 0
        %1037 = vmatmul.mubr.bf16.gmra.mrb[0].mxu0 %v907
        %v1038 = vpop.f32.mrb[0].mxu0
        %v1039 = vadd.f32 %v951, %v1038
        %v1040 = vpop.f32.mrb[0].mxu0
        %v1041 = vpop.f32.mrb[0].mxu0
        %v1042 = vpop.f32.mrb[0].mxu0
        %1043 = vdwg.mxu0
        %v1044 = vld [vmem:[%s12] sm:$0x1]
        %v1045 = vadd.f32 %v1039, %v1044
        %v1046 = vmax.f32 %v1045, 0.0
        %v1047 = vld [vmem:[%s13] sm:$0xf]
        %v1048 = vld [vmem:[%s13 + $0x4] sm:$0xf]
        %v1049 = vld [vmem:[%s13 + $0x8] sm:$0xf]
        %v1050 = vld [vmem:[%s13 + $0xc] sm:$0xf]
        %v1051 = vld [vmem:[%s13 + $0x10] sm:$0xf]
        %v1052 = vld [vmem:[%s13 + $0x14] sm:$0xf]
        %v1053 = vld [vmem:[%s13 + $0x18] sm:$0xf]
        %v1054 = vld [vmem:[%s13 + $0x1c] sm:$0xf]
        %v1055 = vld [vmem:[%s13 + $0x20] sm:$0xf]
        %v1056 = vld [vmem:[%s13 + $0x24] sm:$0xf]
        %v1057 = vld [vmem:[%s13 + $0x28] sm:$0xf]
        %v1058 = vld [vmem:[%s13 + $0x2c] sm:$0xf]
        %v1059 = vld [vmem:[%s13 + $0x30] sm:$0xf]
        %v1060 = vld [vmem:[%s13 + $0x34] sm:$0xf]
        %v1061 = vld [vmem:[%s13 + $0x38] sm:$0xf]
        %v1062 = vld [vmem:[%s13 + $0x3c] sm:$0xf]
        %v1063 = vld [vmem:[%s14] sm:$0x1]
        %v1064 = vpack.c.bf16 %v1046, %v1046
        %v1081 = vunpack.c.l.b16 %v1047
        %v1082 = vunpack.c.l.b16 %v1048
        %v1083 = vunpack.c.l.b16 %v1049
        %v1084 = vunpack.c.l.b16 %v1050
        %v1085 = vunpack.c.l.b16 %v1051
        %v1086 = vunpack.c.l.b16 %v1052
        %v1087 = vunpack.c.l.b16 %v1053
        %v1088 = vunpack.c.l.b16 %v1054
        %v1089 = vunpack.c.l.b16 %v1055
        %v1090 = vunpack.c.l.b16 %v1056
        %v1091 = vunpack.c.l.b16 %v1057
        %v1092 = vunpack.c.l.b16 %v1058
        %v1093 = vunpack.c.l.b16 %v1059
        %v1094 = vunpack.c.l.b16 %v1060
        %v1095 = vunpack.c.l.b16 %v1061
        %v1096 = vunpack.c.l.b16 %v1062
        %v1097 = vpack.c.b16 %v1082, %v1081
        %v1098 = vpack.c.b16 %v1084, %v1083
        %v1099 = vpack.c.b16 %v1086, %v1085
        %v1100 = vpack.c.b16 %v1088, %v1087
        %v1101 = vpack.c.b16 %v1090, %v1089
        %v1102 = vpack.c.b16 %v1092, %v1091
        %v1103 = vpack.c.b16 %v1094, %v1093
        %v1104 = vpack.c.b16 %v1096, %v1095
        %1113 = vmatprep.subr.bf16.mxu0 0
        %1114 = vmatpush1.bf16.msra.mxu0 %v1097
        %1115 = vmatprep.subr.bf16.mxu0 0
        %1116 = vmatpush1.bf16.msra.mxu0 %v1098
        %1117 = vmatprep.subr.bf16.mxu0 0
        %1118 = vmatpush1.bf16.msra.mxu0 %v1099
        %1119 = vmatprep.subr.bf16.mxu0 0
        %1120 = vmatpush1.bf16.msra.mxu0 %v1100
        %1121 = vmatprep.subr.bf16.mxu0 0
        %1122 = vmatpush1.bf16.msra.mxu0 %v1101
        %1123 = vmatprep.subr.bf16.mxu0 0
        %1124 = vmatpush1.bf16.msra.mxu0 %v1102
        %1125 = vmatprep.subr.bf16.mxu0 0
        %1126 = vmatpush1.bf16.msra.mxu0 %v1103
        %1127 = vmatprep.subr.bf16.mxu0 0
        %1128 = vmatpush1.bf16.msra.mxu0 %v1104
        %1129 = vmatprep.subr.bf16.mxu0 0
        %1130 = vmatpush1.bf16.msra.mxu0 0
        %1131 = vmatprep.subr.bf16.mxu0 0
        %1132 = vmatpush1.bf16.msra.mxu0 0
        %1133 = vmatprep.subr.bf16.mxu0 0
        %1134 = vmatpush1.bf16.msra.mxu0 0
        %1135 = vmatprep.subr.bf16.mxu0 0
        %1136 = vmatpush1.bf16.msra.mxu0 0
        %1137 = vmatprep.subr.bf16.mxu0 0
        %1138 = vmatpush1.bf16.msra.mxu0 0
        %1139 = vmatprep.subr.bf16.mxu0 0
        %1140 = vmatpush1.bf16.msra.mxu0 0
        %1141 = vmatprep.subr.bf16.mxu0 0
        %1142 = vmatpush1.bf16.msra.mxu0 0
        %1143 = vmatprep.subr.bf16.mxu0 0
        %1144 = vmatpush1.bf16.msra.mxu0 0
        %1145 = vmatprep.mubr.bf16.mxu0 0
        %1146 = vmatmul.mubr.bf16.gmra.mrb[0].mxu0 %v1064
        %v1147 = vpop.f32.mrb[0].mxu0
        %v1148 = vadd.f32 %v1063, %v1147
        %v1149 = vpop.f32.mrb[0].mxu0
        %v1150 = vpop.f32.mrb[0].mxu0
        %v1151 = vpop.f32.mrb[0].mxu0
        %1152 = vdwg.mxu0
        %v1153 = vmax.f32 %v1148, 0.0
        %v1154 = vld [vmem:[%s15] sm:$0xf]
        %v1155 = vld [vmem:[%s15 + $0x4] sm:$0xf]
        %v1156 = vld [vmem:[%s15 + $0x8] sm:$0xf]
        %v1157 = vld [vmem:[%s15 + $0xc] sm:$0xf]
        %v1158 = vld [vmem:[%s15 + $0x10] sm:$0xf]
        %v1159 = vld [vmem:[%s15 + $0x14] sm:$0xf]
        %v1160 = vld [vmem:[%s15 + $0x18] sm:$0xf]
        %v1161 = vld [vmem:[%s15 + $0x1c] sm:$0xf]
        %v1162 = vld [vmem:[%s16] sm:$0x1]
        %v1163 = vpack.c.bf16 %v1153, %v1153
        %v1172 = vunpack.c.l.b16 %v1154
        %v1173 = vunpack.c.l.b16 %v1155
        %v1174 = vunpack.c.l.b16 %v1156
        %v1175 = vunpack.c.l.b16 %v1157
        %v1176 = vunpack.c.l.b16 %v1158
        %v1177 = vunpack.c.l.b16 %v1159
        %v1178 = vunpack.c.l.b16 %v1160
        %v1179 = vunpack.c.l.b16 %v1161
        %v1180 = vpack.c.b16 %v1173, %v1172
        %v1181 = vpack.c.b16 %v1175, %v1174
        %v1182 = vpack.c.b16 %v1177, %v1176
        %v1183 = vpack.c.b16 %v1179, %v1178
        %v1189 = vsel %vm663, %v1163, 0
        %1191 = vmatprep.subr.bf16.mxu0 0
        %1192 = vmatpush1.bf16.msra.mxu0 %v1180
        %1193 = vmatprep.subr.bf16.mxu0 0
        %1194 = vmatpush1.bf16.msra.mxu0 %v1181
        %1195 = vmatprep.subr.bf16.mxu0 0
        %1196 = vmatpush1.bf16.msra.mxu0 %v1182
        %1197 = vmatprep.subr.bf16.mxu0 0
        %1198 = vmatpush1.bf16.msra.mxu0 %v1183
        %1199 = vmatprep.subr.bf16.mxu0 0
        %1200 = vmatpush1.bf16.msra.mxu0 0
        %1201 = vmatprep.subr.bf16.mxu0 0
        %1202 = vmatpush1.bf16.msra.mxu0 0
        %1203 = vmatprep.subr.bf16.mxu0 0
        %1204 = vmatpush1.bf16.msra.mxu0 0
        %1205 = vmatprep.subr.bf16.mxu0 0
        %1206 = vmatpush1.bf16.msra.mxu0 0
        %1207 = vmatprep.subr.bf16.mxu0 0
        %1208 = vmatpush1.bf16.msra.mxu0 0
        %1209 = vmatprep.subr.bf16.mxu0 0
        %1210 = vmatpush1.bf16.msra.mxu0 0
        %1211 = vmatprep.subr.bf16.mxu0 0
        %1212 = vmatpush1.bf16.msra.mxu0 0
        %1213 = vmatprep.subr.bf16.mxu0 0
        %1214 = vmatpush1.bf16.msra.mxu0 0
        %1215 = vmatprep.subr.bf16.mxu0 0
        %1216 = vmatpush1.bf16.msra.mxu0 0
        %1217 = vmatprep.subr.bf16.mxu0 0
        %1218 = vmatpush1.bf16.msra.mxu0 0
        %1219 = vmatprep.subr.bf16.mxu0 0
        %1220 = vmatpush1.bf16.msra.mxu0 0
        %1221 = vmatprep.subr.bf16.mxu0 0
        %1222 = vmatpush1.bf16.msra.mxu0 0
        %1223 = vmatprep.mubr.bf16.mxu0 0
        %1224 = vmatmul.mubr.bf16.gmra.mrb[0].mxu0 %v1189
        %v1225 = vpop.f32.mrb[0].mxu0
        %v1226 = vadd.f32 %v1162, %v1225
        %v1227 = vpop.f32.mrb[0].mxu0
        %v1228 = vpop.f32.mrb[0].mxu0
        %v1229 = vpop.f32.mrb[0].mxu0
        %1230 = vdwg.mxu0
        %vm1231 = vcmask 475136
        %1232 = vst.msk [vmem:[%s562] sm:$0x1] %vm1231, %v1226
        %s1233 = sand.u32 %s411, 1
        %s1234 = scalar_lea.sflag [#allocation3], %s1233
        %s1235 = sand.u32 %s411, 1
        %s1236 = scalar_lea.vmem [#allocation2], %s1235
        // Predicated region
        $region89: #{_lambda_.5} parent=87 // pred_check
          %p1237 = pneg %p421
        $region90: #{_lambda_.5} parent=87 // pred_check_branch
          %1239 = sbr.rel (%p1237) target = $region92
        $region91: #{_lambda_.5} parent=87 // pred_region
          %s1241 = ssub.s32 16, 16
          %1242 = vsyncadd %s1234, %s1241
          %s1243 = smul.addr %s31, 16
          %s1244 = scalar_lea.hbm %s17, %s1243
          %s1246 = sshll.u32 %s1236, 4
          %s1247 = int_to_ptr.vmem [resolvable:$true] %s1246
          %1249 = dma.vmem_to_hbm [thread:$0]  %s1247, 16, %s1244, %s1234
        $region92: #{_lambda_.5} parent=87 // pred_fallthru
          _
      $region88: #{_lambda_.5} parent=5 // pred_fallthru
        _
      %p1250 = scmp.le.s32.totalorder 2, %s26
      // Predicated region
      $region93: #{_lambda_.5} parent=5 // pred_check
        %p1251 = pneg %p1250
      $region94: #{_lambda_.5} parent=5 // pred_check_branch
        %1253 = sbr.rel (%p1251) target = $region96
      $region95: #{_lambda_.5} parent=5 // pred_region
        %s1254 = ssub.s32 %s26, 2
        // Predicated region
        $region97: #{_lambda_.5} parent=95 // pred_check
          %p1255 = pneg %p427
        $region98: #{_lambda_.5} parent=95 // pred_check_branch
          %1257 = sbr.rel (%p1255) target = $region100
        $region99: #{_lambda_.5} parent=95 // pred_region
          %s1258 = sand.u32 %s412, 1
          %s1259 = scalar_lea.sflag [#allocation3], %s1258
          %s1260 = sand.u32 %s412, 1
          %s1261 = scalar_lea.vmem [#allocation2], %s1260
          %1262 = dma.done %s1259, 16
        $region100: #{_lambda_.5} parent=95 // pred_fallthru
          _
      $region96: #{_lambda_.5} parent=5 // pred_fallthru
        _
    $region6: #{_lambda_.5} parent=1 // loop_footer
      %s30 = sadd.s32 1, %s26
    $region7: #{_lambda_.5} parent=1 // loop_footer_branch
      %25 = sbr.rel target = $region3
    $region8: #{_lambda_.5} parent=1 // loop_exit
      _
    %1263 = vsyncpa [#allocation3], 1
    %s1264 = scalar_lea.sflag [#allocation3], 1
    %1265 = vsyncpa %s1264, 1

</llo_original>
